<compile_context>
chip_gen: v6e
topology: v6e:2x2x1
jax: 0.10.0
libtpu: 0.0.40
codegen_flags: <defaults>
</compile_context>

<pallas_src>
import functools

import jax
import jax.numpy as jnp
from jax.experimental import pallas as pl
from jax.experimental.pallas import tpu as pltpu


def _attn_cls_kernel(x_ref, wvu_ref, bvu_ref, ww_ref, bw_ref, wc_ref, bc_ref,
                     pred_ref,
                     m_sc, d_sc, acc_sc,
                     *, num_tiles, rem):
    i = pl.program_id(1)                 # instance-tile index (reduction axis)
    block_n = x_ref.shape[0]
    K = acc_sc.shape[0]
    D = wvu_ref.shape[1] // 2

    @pl.when(i == 0)
    def _init():
        m_sc[...] = jnp.full_like(m_sc, -jnp.inf)
        d_sc[...] = jnp.zeros_like(d_sc)
        acc_sc[...] = jnp.zeros_like(acc_sc)

    x = x_ref[...]                                                 # (bn, L) f32

    # Fused gated-attention matmul: one (bn, 2D) MXU matmul, bf16 in / f32 acc.
    h = jnp.dot(x.astype(jnp.bfloat16), wvu_ref[...],
                preferred_element_type=jnp.float32) + bvu_ref[...]
    gated = jnp.tanh(h[:, :D]) * jax.nn.sigmoid(h[:, D:])         # (bn, D) f32

    if K == 1:
        # K == 1 (module default): keep the N=1-output matmul off the MXU —
        # VPU broadcast-multiply against the (1, D) weight row + lane reduce.
        logits = (jnp.sum(gated * ww_ref[...], axis=1, keepdims=True)
                  + bw_ref[...])                                   # (bn, 1)
    else:
        logits = jax.lax.dot_general(
            gated.astype(jnp.bfloat16), ww_ref[...],
            (((1,), (0,)), ((), ())),
            preferred_element_type=jnp.float32) + bw_ref[...]      # (bn, K)

    # Ragged-tile masking: only the (statically known) last tile can hold
    # out-of-bounds rows, so the mask work is hoisted off the steady state.
    if rem < block_n:
        def _mask(xv, lg):
            ridx = jax.lax.broadcasted_iota(jnp.int32, (block_n, 1), 0)
            keep = ridx < rem
            # zero the raw x rows (not just p): OOB rows may decode to Inf/NaN
            # and 0 * Inf = NaN in the p*x accumulation.
            return jnp.where(keep, xv, 0.0), jnp.where(keep, lg, -jnp.inf)

        if num_tiles == 1:
            x, logits = _mask(x, logits)
        else:
            x, logits = jax.lax.cond(i == num_tiles - 1, _mask,
                                     lambda xv, lg: (xv, lg), x, logits)

    # Online softmax over the instance axis, streamed across grid steps.
    m_old = m_sc[...]                                              # (1, K)
    m_new = jnp.maximum(m_old, jnp.max(logits, axis=0, keepdims=True))
    alpha = jnp.exp(m_old - m_new)                                 # (1, K)
    p = jnp.exp(logits - m_new)                                    # (bn, K)
    d_sc[...] = alpha * d_sc[...] + jnp.sum(p, axis=0, keepdims=True)

    if K == 1:
        # VPU multiply + sublane reduce; the f32 x tile is reused directly.
        contrib = jnp.sum(p * x, axis=0, keepdims=True)            # (1, L)
        acc_sc[...] = alpha * acc_sc[...] + contrib
    else:
        contrib = jax.lax.dot_general(
            p.astype(jnp.bfloat16), x.astype(jnp.bfloat16),
            (((0,), (0,)), ((), ())),
            preferred_element_type=jnp.float32)                    # (K, L)
        acc_sc[...] = alpha.reshape(K, 1) * acc_sc[...] + contrib
    m_sc[...] = m_new

    @pl.when(i == num_tiles - 1)
    def _finalize():
        # Exact divide: runs once per bag, so the approx reciprocal's ~1e-3
        # relative error is not worth it.
        if K == 1:
            afeat = acc_sc[...] / d_sc[...]                        # (1, L) f32
        else:
            afeat = acc_sc[...] / d_sc[...].reshape(K, 1)
        pred = jnp.dot(afeat.astype(jnp.bfloat16), wc_ref[...],
                       preferred_element_type=jnp.float32) + bc_ref[...]
        pred_ref[...] = pred.astype(pred_ref.dtype)                # (K, cls_pad)


@functools.partial(jax.jit, static_argnames=("block_n",))
def attention_with_classifier_batched(x, params, *, block_n=2048):
    """x: (G, N, L) float32 — G independent (pseudo-)bags. Returns (G, K, num_cls)."""
    G, N, L = x.shape
    D = params["wv"].shape[1]
    K = params["ww"].shape[1]
    num_cls = params["wc"].shape[1]

    # Instance-axis tile: multiple of 256 when large (clean MXU M-tiling),
    # capped at 4096 so the working set fits v7x's 64 MiB VMEM, never larger
    # than the (rounded-up) bag.
    block_n = max(8, min(int(block_n), 4096))
    if block_n >= 256:
        block_n = (block_n // 256) * 256
    else:
        block_n = (block_n // 8) * 8
    block_n = min(block_n, ((N + 7) // 8) * 8)
    num_tiles = pl.cdiv(N, block_n)
    rem = N - (num_tiles - 1) * block_n        # valid rows in the last tile

    # x stays f32 and is streamed exactly once; the bf16 cast for the MXU
    # happens inside the kernel (no wrapper-side cast/pad HBM passes).
    x = x.astype(jnp.float32)

    wvu = jnp.concatenate([params["wv"], params["wu"]], axis=1).astype(jnp.bfloat16)
    bvu = jnp.concatenate([params["bv"], params["bu"]], axis=1).astype(jnp.float32)
    if K == 1:
        ww = params["ww"].reshape(1, D).astype(jnp.float32)   # row layout, VPU path
    else:
        ww = params["ww"].astype(jnp.bfloat16)                # (D, K) for the MXU
    bw = params["bw"].astype(jnp.float32)

    # Lane-dense classifier output: pad num_cls up to a multiple of 128.
    cls_pad = 128 * pl.cdiv(num_cls, 128)
    wc = jnp.zeros((L, cls_pad), jnp.bfloat16).at[:, :num_cls].set(
        params["wc"].astype(jnp.bfloat16))
    bc = jnp.zeros((1, cls_pad), jnp.float32).at[:, :num_cls].set(
        params["bc"].astype(jnp.float32))

    kernel = functools.partial(_attn_cls_kernel, num_tiles=num_tiles, rem=rem)

    grid_spec = pltpu.PrefetchScalarGridSpec(
        num_scalar_prefetch=0,
        grid=(G, num_tiles),
        in_specs=[
            pl.BlockSpec((None, block_n, L), lambda g, i: (g, i, 0)),  # x tiles
            # TODO(synk): the constant-index weights below could carry
            # pipeline_mode=pl.Buffered(1) to reclaim ~1 MiB of double-buffer
            # VMEM when block_n is pushed up on v7x.
            pl.BlockSpec((L, 2 * D), lambda g, i: (0, 0)),     # fused Wv || Wu
            pl.BlockSpec((1, 2 * D), lambda g, i: (0, 0)),     # fused bv || bu
            pl.BlockSpec(ww.shape, lambda g, i: (0, 0)),       # Ww ((1,D) row if K==1)
            pl.BlockSpec((1, K), lambda g, i: (0, 0)),         # bw
            pl.BlockSpec((L, cls_pad), lambda g, i: (0, 0)),   # Wc (lane-padded)
            pl.BlockSpec((1, cls_pad), lambda g, i: (0, 0)),   # bc (lane-padded)
        ],
        out_specs=pl.BlockSpec((None, K, cls_pad), lambda g, i: (g, 0, 0)),
        scratch_shapes=[
            pltpu.VMEM((1, K), jnp.float32),    # running max
            pltpu.VMEM((1, K), jnp.float32),    # running denominator
            pltpu.VMEM((K, L), jnp.float32),    # unnormalized afeat accumulator
        ],
    )

    flops = G * (2 * N * L * 2 * D + 2 * N * D * K + 2 * N * L * K
                 + 2 * K * L * cls_pad)
    bytes_accessed = (G * N * L * 4                                  # x (single pass)
                      + (L * 2 * D + ww.size + L * cls_pad) * 2      # bf16/f32 weights
                      + (2 * D + K + cls_pad) * 4                    # biases
                      + G * K * cls_pad * 4)                         # output
    cost = pl.CostEstimate(flops=flops,
                           transcendentals=G * (2 * N * D + N * K),
                           bytes_accessed=bytes_accessed)

    pred = pl.pallas_call(
        kernel,
        out_shape=jax.ShapeDtypeStruct((G, K, cls_pad), jnp.float32),
        grid_spec=grid_spec,
        compiler_params=pltpu.CompilerParams(
            # bag axis "parallel" (uses both v7x TensorCores / megacore),
            # instance axis is the streamed softmax reduction.
            dimension_semantics=("parallel", "arbitrary"),
            # 48 MiB: enough for block_n=4096 double-buffered f32 tiles while
            # leaving headroom under v7x's 64 MiB physical VMEM.
            vmem_limit_bytes=48 * 1024 * 1024),
        cost_estimate=cost,
    )(x, wvu, bvu, ww, bw, wc, bc)

    return pred[:, :, :num_cls]


def attention_with_classifier(x, params, *, block_n=2048):
    """x: (N, L) float32 — matches the PyTorch module forward. Returns (K, num_cls)."""
    return attention_with_classifier_batched(x[None], params, block_n=block_n)[0]


def init_params(key, L=512, D=128, K=1, num_cls=2):
    """Deterministic synthetic parameters (Linear weights stored as (in, out))."""
    ks = jax.random.split(key, 8)
    s = lambda fan_in: 1.0 / jnp.sqrt(fan_in)
    return {
        "wv": jax.random.uniform(ks[0], (L, D), jnp.float32, -s(L), s(L)),
        "bv": jax.random.uniform(ks[1], (1, D), jnp.float32, -s(L), s(L)),
        "wu": jax.random.uniform(ks[2], (L, D), jnp.float32, -s(L), s(L)),
        "bu": jax.random.uniform(ks[3], (1, D), jnp.float32, -s(L), s(L)),
        "ww": jax.random.uniform(ks[4], (D, K), jnp.float32, -s(D), s(D)),
        "bw": jax.random.uniform(ks[5], (1, K), jnp.float32, -s(D), s(D)),
        "wc": jax.random.uniform(ks[6], (L, num_cls), jnp.float32, -s(L), s(L)),
        "bc": jax.random.uniform(ks[7], (1, num_cls), jnp.float32, -s(L), s(L)),
    }


def reference(x, p):
    a_v = jnp.tanh(x @ p["wv"] + p["bv"])
    a_u = jax.nn.sigmoid(x @ p["wu"] + p["bu"])
    logits = (a_v * a_u) @ p["ww"] + p["bw"]          # (N, K)
    attn = jax.nn.softmax(logits.T, axis=1)           # (K, N)
    afeat = attn @ x                                  # (K, L)
    return afeat @ p["wc"] + p["bc"]                  # (K, num_cls)


if __name__ == "__main__":
    # Module defaults: L=512, D=128, K=1.  N=300 exercises ragged-tile masking.
    N, L, D, K, NUM_CLS = 300, 512, 128, 1, 2

    key = jax.random.PRNGKey(0)
    kx, kp, kb = jax.random.split(key, 3)
    x = jax.random.normal(kx, (N, L), jnp.float32)
    params = init_params(kp, L=L, D=D, K=K, num_cls=NUM_CLS)
    ref = reference(x, params)

    # 1) Single bag, default tile (single ragged tile).
    pred = jax.block_until_ready(attention_with_classifier(x, params))
    assert pred.shape == (K, NUM_CLS)
    err = float(jnp.max(jnp.abs(pred - ref)))
    assert jnp.allclose(pred, ref, atol=2e-2, rtol=2e-2), f"max abs err = {err}"

    # 2) Single bag, multi-tile streaming + ragged last tile (300 = 2*128 + 44).
    pred_mt = jax.block_until_ready(attention_with_classifier(x, params, block_n=128))
    err = float(jnp.max(jnp.abs(pred_mt - ref)))
    assert jnp.allclose(pred_mt, ref, atol=2e-2, rtol=2e-2), f"max abs err = {err}"

    # 3) Batched pseudo-bags (DTFD numGroup) along the parallel grid axis.
    G = 4
    xb = jax.random.normal(kb, (G, 256, L), jnp.float32)
    preds_b = jax.block_until_ready(attention_with_classifier_batched(xb, params))
    refs_b = jnp.stack([reference(xb[g], params) for g in range(G)])
    assert preds_b.shape == (G, K, NUM_CLS)
    err = float(jnp.max(jnp.abs(preds_b - refs_b)))
    assert jnp.allclose(preds_b, refs_b, atol=2e-2, rtol=2e-2), f"max abs err = {err}"

    print("KERNEL_OK")
</pallas_src>

<mosaic_0001>
module attributes {stable_mosaic.version = 11 : i64} {
  func.func @_attn_cls_kernel(%arg0: i32, %arg1: i32, %arg2: memref<1x304x512xf32, #tpu.memory_space<vmem>>, %arg3: memref<512x256xbf16, #tpu.memory_space<vmem>>, %arg4: memref<1x256xf32, #tpu.memory_space<vmem>>, %arg5: memref<1x128xf32, #tpu.memory_space<vmem>>, %arg6: memref<1x1xf32, #tpu.memory_space<vmem>>, %arg7: memref<512x128xbf16, #tpu.memory_space<vmem>>, %arg8: memref<1x128xf32, #tpu.memory_space<vmem>>, %arg9: memref<1x1x128xf32, #tpu.memory_space<vmem>>, %arg10: memref<1x1xf32, #tpu.memory_space<vmem>>, %arg11: memref<1x1xf32, #tpu.memory_space<vmem>>, %arg12: memref<1x512xf32, #tpu.memory_space<vmem>>) attributes {dimension_semantics = [#tpu.dimension_semantics<parallel>, #tpu.dimension_semantics<arbitrary>], iteration_bounds = array<i64: 1, 1>, scalar_prefetch = 0 : i64, scratch_operands = 3 : i64, tpu.core_type = #tpu.core_type<tc>, window_params = [{transform_indices = @transform_0, window_bounds = array<i64: 1, 304, 512>}, {pipeline_mode = #tpu.pipeline_mode<synchronous>, transform_indices = @transform_1, window_bounds = array<i64: 512, 256>}, {pipeline_mode = #tpu.pipeline_mode<synchronous>, transform_indices = @transform_2, window_bounds = array<i64: 1, 256>}, {pipeline_mode = #tpu.pipeline_mode<synchronous>, transform_indices = @transform_3, window_bounds = array<i64: 1, 128>}, {pipeline_mode = #tpu.pipeline_mode<synchronous>, transform_indices = @transform_4, window_bounds = array<i64: 1, 1>}, {pipeline_mode = #tpu.pipeline_mode<synchronous>, transform_indices = @transform_5, window_bounds = array<i64: 512, 128>}, {pipeline_mode = #tpu.pipeline_mode<synchronous>, transform_indices = @transform_6, window_bounds = array<i64: 1, 128>}, {transform_indices = @transform_7, window_bounds = array<i64: 1, 1, 128>}]} {
    %c0_i32 = arith.constant 0 : i32
    %0 = arith.cmpi eq, %arg1, %c0_i32 : i32
    %1 = arith.extui %0 : i1 to i32
    %c0_i32_0 = arith.constant 0 : i32
    %2 = arith.cmpi ne, %1, %c0_i32_0 : i32
    scf.if %2 {
      %cst_32 = arith.constant 0xFF800000 : f32
      %65 = vector.broadcast %cst_32 : f32 to vector<1x1xf32>
      %c0_33 = arith.constant 0 : index
      %c0_34 = arith.constant 0 : index
      %66 = vector.load %arg10[%c0_33, %c0_34] : memref<1x1xf32, #tpu.memory_space<vmem>>, vector<1x1xf32>
      tpu.vector_store %arg10[%c0_33, %c0_34], %65 {strides = array<i32>} : memref<1x1xf32, #tpu.memory_space<vmem>>, vector<1x1xf32>,
      %cst_35 = arith.constant 0.000000e+00 : f32
      %67 = vector.broadcast %cst_35 : f32 to vector<1x1xf32>
      %c0_36 = arith.constant 0 : index
      %c0_37 = arith.constant 0 : index
      %68 = vector.load %arg11[%c0_36, %c0_37] : memref<1x1xf32, #tpu.memory_space<vmem>>, vector<1x1xf32>
      tpu.vector_store %arg11[%c0_36, %c0_37], %67 {strides = array<i32>} : memref<1x1xf32, #tpu.memory_space<vmem>>, vector<1x1xf32>,
      %cst_38 = arith.constant 0.000000e+00 : f32
      %69 = vector.broadcast %cst_38 : f32 to vector<1x512xf32>
      %c0_39 = arith.constant 0 : index
      %c0_40 = arith.constant 0 : index
      %70 = vector.load %arg12[%c0_39, %c0_40] : memref<1x512xf32, #tpu.memory_space<vmem>>, vector<1x512xf32>
      tpu.vector_store %arg12[%c0_39, %c0_40], %69 {strides = array<i32>} : memref<1x512xf32, #tpu.memory_space<vmem>>, vector<1x512xf32>,
    } else {
    }
    %c0 = arith.constant 0 : index
    %c0_1 = arith.constant 0 : index
    %c0_2 = arith.constant 0 : index
    %3 = vector.load %arg2[%c0, %c0_1, %c0_2] : memref<1x304x512xf32, #tpu.memory_space<vmem>>, vector<1x304x512xf32>
    %4 = vector.shape_cast %3 : vector<1x304x512xf32> to vector<304x512xf32>
    %5 = arith.truncf %4 : vector<304x512xf32> to vector<304x512xbf16>
    %c0_3 = arith.constant 0 : index
    %c0_4 = arith.constant 0 : index
    %6 = vector.load %arg3[%c0_3, %c0_4] : memref<512x256xbf16, #tpu.memory_space<vmem>>, vector<512x256xbf16>
    %cst = arith.constant dense<0.000000e+00> : vector<304x256xf32>
    %7 = tpu.matmul %5, %6, %cst {dimension_numbers = #tpu.dot_dimension_numbers<[1], [0], [0], [1], [0, 0, 1, 1], [], []>} : vector<304x512xbf16>, vector<512x256xbf16>, vector<304x256xf32> -> vector<304x256xf32>
    %c0_5 = arith.constant 0 : index
    %c0_6 = arith.constant 0 : index
    %8 = vector.load %arg4[%c0_5, %c0_6] : memref<1x256xf32, #tpu.memory_space<vmem>>, vector<1x256xf32>
    %9 = vector.broadcast %8 : vector<1x256xf32> to vector<304x256xf32>
    %10 = arith.addf %7, %9 : vector<304x256xf32>
    %11 = vector.extract_strided_slice %10 {offsets = [0, 0], sizes = [304, 128], strides = [1, 1]} : vector<304x256xf32> to vector<304x128xf32>
    %12 = math.tanh %11 : vector<304x128xf32>
    %13 = vector.extract_strided_slice %10 {offsets = [0, 128], sizes = [304, 128], strides = [1, 1]} : vector<304x256xf32> to vector<304x128xf32>
    %14 = arith.negf %13 : vector<304x128xf32>
    %15 = math.exp %14 : vector<304x128xf32>
    %cst_7 = arith.constant 1.000000e+00 : f32
    %16 = vector.broadcast %cst_7 : f32 to vector<304x128xf32>
    %17 = arith.addf %16, %15 : vector<304x128xf32>
    %18 = arith.divf %16, %17 : vector<304x128xf32>
    %19 = arith.mulf %12, %18 : vector<304x128xf32>
    %c0_8 = arith.constant 0 : index
    %c0_9 = arith.constant 0 : index
    %20 = vector.load %arg5[%c0_8, %c0_9] : memref<1x128xf32, #tpu.memory_space<vmem>>, vector<1x128xf32>
    %21 = vector.broadcast %20 : vector<1x128xf32> to vector<304x128xf32>
    %22 = arith.mulf %19, %21 : vector<304x128xf32>
    %cst_10 = arith.constant dense<0.000000e+00> : vector<304xf32>
    %23 = vector.multi_reduction <add>, %22, %cst_10 [1] : vector<304x128xf32> to vector<304xf32>
    %24 = vector.shape_cast %23 : vector<304xf32> to vector<304x1xf32>
    %c0_11 = arith.constant 0 : index
    %c0_12 = arith.constant 0 : index
    %25 = vector.load %arg6[%c0_11, %c0_12] : memref<1x1xf32, #tpu.memory_space<vmem>>, vector<1x1xf32>
    %26 = vector.broadcast %25 : vector<1x1xf32> to vector<304x1xf32>
    %27 = arith.addf %24, %26 : vector<304x1xf32>
    %28 = tpu.iota {dimensions = array<i32: 0>} : vector<304x1xi32>
    %c300_i32 = arith.constant 300 : i32
    %29 = vector.broadcast %c300_i32 : i32 to vector<304x1xi32>
    %30 = arith.cmpi slt, %28, %29 : vector<304x1xi32>
    %cst_13 = arith.constant 0.000000e+00 : f32
    %31 = vector.shape_cast %30 : vector<304x1xi1> to vector<304x1xi1>
    %32 = vector.broadcast %31 : vector<304x1xi1> to vector<304x512xi1>
    %33 = vector.broadcast %cst_13 : f32 to vector<304x512xf32>
    %34 = arith.select %32, %4, %33 : vector<304x512xi1>, vector<304x512xf32>
    %cst_14 = arith.constant 0xFF800000 : f32
    %35 = vector.broadcast %cst_14 : f32 to vector<304x1xf32>
    %36 = arith.select %30, %27, %35 : vector<304x1xi1>, vector<304x1xf32>
    %c0_15 = arith.constant 0 : index
    %c0_16 = arith.constant 0 : index
    %37 = vector.load %arg10[%c0_15, %c0_16] : memref<1x1xf32, #tpu.memory_space<vmem>>, vector<1x1xf32>
    %cst_17 = arith.constant dense<0xFF800000> : vector<1xf32>
    %38 = vector.multi_reduction <maximumf>, %36, %cst_17 [0] : vector<304x1xf32> to vector<1xf32>
    %39 = vector.shape_cast %38 : vector<1xf32> to vector<1x1xf32>
    %40 = arith.maximumf %37, %39 : vector<1x1xf32>
    %41 = arith.subf %37, %40 : vector<1x1xf32>
    %42 = math.exp %41 : vector<1x1xf32>
    %43 = vector.broadcast %40 : vector<1x1xf32> to vector<304x1xf32>
    %44 = arith.subf %36, %43 : vector<304x1xf32>
    %45 = math.exp %44 : vector<304x1xf32>
    %c0_18 = arith.constant 0 : index
    %c0_19 = arith.constant 0 : index
    %46 = vector.load %arg11[%c0_18, %c0_19] : memref<1x1xf32, #tpu.memory_space<vmem>>, vector<1x1xf32>
    %47 = arith.mulf %42, %46 : vector<1x1xf32>
    %cst_20 = arith.constant dense<0.000000e+00> : vector<1xf32>
    %48 = vector.multi_reduction <add>, %45, %cst_20 [0] : vector<304x1xf32> to vector<1xf32>
    %49 = vector.shape_cast %48 : vector<1xf32> to vector<1x1xf32>
    %50 = arith.addf %47, %49 : vector<1x1xf32>
    %c0_21 = arith.constant 0 : index
    %c0_22 = arith.constant 0 : index
    %51 = vector.load %arg11[%c0_21, %c0_22] : memref<1x1xf32, #tpu.memory_space<vmem>>, vector<1x1xf32>
    tpu.vector_store %arg11[%c0_21, %c0_22], %50 {strides = array<i32>} : memref<1x1xf32, #tpu.memory_space<vmem>>, vector<1x1xf32>,
    %52 = vector.broadcast %45 : vector<304x1xf32> to vector<304x512xf32>
    %53 = arith.mulf %52, %34 : vector<304x512xf32>
    %cst_23 = arith.constant dense<0.000000e+00> : vector<512xf32>
    %54 = vector.multi_reduction <add>, %53, %cst_23 [0] : vector<304x512xf32> to vector<512xf32>
    %55 = vector.shape_cast %54 : vector<512xf32> to vector<1x512xf32>
    %c0_24 = arith.constant 0 : index
    %c0_25 = arith.constant 0 : index
    %56 = vector.load %arg12[%c0_24, %c0_25] : memref<1x512xf32, #tpu.memory_space<vmem>>, vector<1x512xf32>
    %57 = vector.broadcast %42 : vector<1x1xf32> to vector<1x512xf32>
    %58 = arith.mulf %57, %56 : vector<1x512xf32>
    %59 = arith.addf %58, %55 : vector<1x512xf32>
    %c0_26 = arith.constant 0 : index
    %c0_27 = arith.constant 0 : index
    %60 = vector.load %arg12[%c0_26, %c0_27] : memref<1x512xf32, #tpu.memory_space<vmem>>, vector<1x512xf32>
    tpu.vector_store %arg12[%c0_26, %c0_27], %59 {strides = array<i32>} : memref<1x512xf32, #tpu.memory_space<vmem>>, vector<1x512xf32>,
    %c0_28 = arith.constant 0 : index
    %c0_29 = arith.constant 0 : index
    %61 = vector.load %arg10[%c0_28, %c0_29] : memref<1x1xf32, #tpu.memory_space<vmem>>, vector<1x1xf32>
    tpu.vector_store %arg10[%c0_28, %c0_29], %40 {strides = array<i32>} : memref<1x1xf32, #tpu.memory_space<vmem>>, vector<1x1xf32>,
    %c0_i32_30 = arith.constant 0 : i32
    %62 = arith.cmpi eq, %arg1, %c0_i32_30 : i32
    %63 = arith.extui %62 : i1 to i32
    %c0_i32_31 = arith.constant 0 : i32
    %64 = arith.cmpi ne, %63, %c0_i32_31 : i32
    scf.if %64 {
      %c0_32 = arith.constant 0 : index
      %c0_33 = arith.constant 0 : index
      %65 = vector.load %arg12[%c0_32, %c0_33] : memref<1x512xf32, #tpu.memory_space<vmem>>, vector<1x512xf32>
      %c0_34 = arith.constant 0 : index
      %c0_35 = arith.constant 0 : index
      %66 = vector.load %arg11[%c0_34, %c0_35] : memref<1x1xf32, #tpu.memory_space<vmem>>, vector<1x1xf32>
      %67 = vector.broadcast %66 : vector<1x1xf32> to vector<1x512xf32>
      %68 = arith.divf %65, %67 : vector<1x512xf32>
      %69 = arith.truncf %68 : vector<1x512xf32> to vector<1x512xbf16>
      %c0_36 = arith.constant 0 : index
      %c0_37 = arith.constant 0 : index
      %70 = vector.load %arg7[%c0_36, %c0_37] : memref<512x128xbf16, #tpu.memory_space<vmem>>, vector<512x128xbf16>
      %cst_38 = arith.constant dense<0.000000e+00> : vector<1x128xf32>
      %71 = tpu.matmul %69, %70, %cst_38 {dimension_numbers = #tpu.dot_dimension_numbers<[1], [0], [0], [1], [0, 0, 1, 1], [], []>} : vector<1x512xbf16>, vector<512x128xbf16>, vector<1x128xf32> -> vector<1x128xf32>
      %c0_39 = arith.constant 0 : index
      %c0_40 = arith.constant 0 : index
      %72 = vector.load %arg8[%c0_39, %c0_40] : memref<1x128xf32, #tpu.memory_space<vmem>>, vector<1x128xf32>
      %73 = arith.addf %71, %72 : vector<1x128xf32>
      %c0_41 = arith.constant 0 : index
      %c0_42 = arith.constant 0 : index
      %c0_43 = arith.constant 0 : index
      %74 = vector.load %arg9[%c0_41, %c0_42, %c0_43] : memref<1x1x128xf32, #tpu.memory_space<vmem>>, vector<1x1x128xf32>
      %75 = vector.shape_cast %74 : vector<1x1x128xf32> to vector<1x128xf32>
      %76 = vector.shape_cast %73 : vector<1x128xf32> to vector<1x1x128xf32>
      tpu.vector_store %arg9[%c0_41, %c0_42, %c0_43], %76 {strides = array<i32>} : memref<1x1x128xf32, #tpu.memory_space<vmem>>, vector<1x1x128xf32>,
    } else {
    }
    return
  }
  func.func @transform_0(%arg0: i32, %arg1: i32) -> (i32, i32, i32) {
    %c0_i32 = arith.constant 0 : i32
    %c0_i32_0 = arith.constant 0 : i32
    return %arg0, %arg1, %c0_i32 : i32, i32, i32
  }
  func.func @transform_1(%arg0: i32, %arg1: i32) -> (i32, i32) {
    %c0_i32 = arith.constant 0 : i32
    %c0_i32_0 = arith.constant 0 : i32
    %c0_i32_1 = arith.constant 0 : i32
    return %c0_i32, %c0_i32_0 : i32, i32
  }
  func.func @transform_2(%arg0: i32, %arg1: i32) -> (i32, i32) {
    %c0_i32 = arith.constant 0 : i32
    %c0_i32_0 = arith.constant 0 : i32
    %c0_i32_1 = arith.constant 0 : i32
    return %c0_i32, %c0_i32_0 : i32, i32
  }
  func.func @transform_3(%arg0: i32, %arg1: i32) -> (i32, i32) {
    %c0_i32 = arith.constant 0 : i32
    %c0_i32_0 = arith.constant 0 : i32
    %c0_i32_1 = arith.constant 0 : i32
    return %c0_i32, %c0_i32_0 : i32, i32
  }
  func.func @transform_4(%arg0: i32, %arg1: i32) -> (i32, i32) {
    %c0_i32 = arith.constant 0 : i32
    %c0_i32_0 = arith.constant 0 : i32
    %c0_i32_1 = arith.constant 0 : i32
    return %c0_i32, %c0_i32_0 : i32, i32
  }
  func.func @transform_5(%arg0: i32, %arg1: i32) -> (i32, i32) {
    %c0_i32 = arith.constant 0 : i32
    %c0_i32_0 = arith.constant 0 : i32
    %c0_i32_1 = arith.constant 0 : i32
    return %c0_i32, %c0_i32_0 : i32, i32
  }
  func.func @transform_6(%arg0: i32, %arg1: i32) -> (i32, i32) {
    %c0_i32 = arith.constant 0 : i32
    %c0_i32_0 = arith.constant 0 : i32
    %c0_i32_1 = arith.constant 0 : i32
    return %c0_i32, %c0_i32_0 : i32, i32
  }
  func.func @transform_7(%arg0: i32, %arg1: i32) -> (i32, i32, i32) {
    %c0_i32 = arith.constant 0 : i32
    %c0_i32_0 = arith.constant 0 : i32
    %c0_i32_1 = arith.constant 0 : i32
    return %arg0, %c0_i32, %c0_i32_0 : i32, i32, i32
  }
}

</mosaic_0001>

<llo_original>
// kernel: attention_with_classifier_batched.1
$region0: #{attention_with_classifier_batched.1}
  #allocation0 [shape = 'u32[]', space=smem, size = 0x4, offset = 0x4, fixed_abs, tag = 'smem constant byte address 0x4 - core index']
  #allocation1 [shape = 'u32[144,128]{1,0:T(1,128)}', space=vmem, size = 0x12000, scoped, tag = 'internal scratch']
  #allocation2 [shape = 'f32[1,1]{1,0:T(1,128)}', space=vmem, size = 0x200, scoped, tag = 'scratch operand']
  #allocation3 [shape = 'f32[1,1]{1,0:T(1,128)}', space=vmem, size = 0x200, scoped, tag = 'scratch operand']
  #allocation4 [shape = 'f32[1,512]{1,0:T(1,128)}', space=vmem, size = 0x800, scoped, tag = 'scratch operand']
  #allocation5 [shape = 'f32[1,1]{1,0:T(1,128)S(1)}', space=vmem, size = 0x200, scoped, tag = 'scoped memory for attention_with_classifier_batched.1']
  %s0 = inlined_call_operand.vmem [shape: f32[1,300,512], index: 0, kind: input, shape index: {}]
  %s1 = inlined_call_operand.vmem [shape: bf16[512,256], index: 1, kind: input, shape index: {}]
  %s2 = inlined_call_operand.vmem [shape: f32[1,256], index: 2, kind: input, shape index: {}]
  %s3 = inlined_call_operand.vmem [shape: f32[1,128], index: 3, kind: input, shape index: {}]
  %s4 = inlined_call_operand.<no memory space> [shape: f32[1,1], index: 4, kind: input, shape index: {}]
  %s5 = inlined_call_operand.vmem [shape: bf16[512,128], index: 5, kind: input, shape index: {}]
  %s6 = inlined_call_operand.vmem [shape: f32[1,128], index: 6, kind: input, shape index: {}]
  %s7 = inlined_call_operand.hbm [shape: f32[1,1,128], index: 7, kind: output, shape index: {}]
  %s8 = sld [smem:[#allocation0]]
  $region46: #{attention_with_classifier_batched.1} parent=0
    _
  %s10 = ssub.s32 1, %s8
  %s11 = scalar_select 0, %s10, %s8
  %v12 = vstv %s4
  %13 = vst [vmem:[#allocation5] sm:$0x1] %v12
  $region1: #{attention_with_classifier_batched.1} parent=0
    #allocation6 [shape = 'u8[512]{0}', space=vmem, size = 0x400, scoped, tag = 'output window, operand 0, single buffered']
    #allocation7 [shape = 's32[1]{0}', space=sflag, size = 0x4, scoped, tag = 'scoped memory for attention_with_classifier_batched.1']
    %14 = vsyncpa [#allocation7], 0
    // Predicated region
    $region2: #{attention_with_classifier_batched.1} parent=1 // pred_check
      _
    $region3: #{attention_with_classifier_batched.1} parent=1 // pred_check_branch
      %16 = sbr.rel (0) target = $region5
    $region4: #{attention_with_classifier_batched.1} parent=1 // pred_region
      _
    $region5: #{attention_with_classifier_batched.1} parent=1 // pred_fallthru
      _
    // Predicated region
    $region6: #{attention_with_classifier_batched.1} parent=1 // pred_check
      _
    $region7: #{attention_with_classifier_batched.1} parent=1 // pred_check_branch
      %18 = sbr.rel (0) target = $region9
    $region8: #{attention_with_classifier_batched.1} parent=1 // pred_region
      _
    $region9: #{attention_with_classifier_batched.1} parent=1 // pred_fallthru
      _
    // Predicated region
    $region10: #{attention_with_classifier_batched.1} parent=1 // pred_check
      _
    $region11: #{attention_with_classifier_batched.1} parent=1 // pred_check_branch
      %20 = sbr.rel (0) target = $region13
    $region12: #{attention_with_classifier_batched.1} parent=1 // pred_region
      _
    $region13: #{attention_with_classifier_batched.1} parent=1 // pred_fallthru
      _
    // Predicated region
    $region14: #{attention_with_classifier_batched.1} parent=1 // pred_check
      _
    $region15: #{attention_with_classifier_batched.1} parent=1 // pred_check_branch
      %22 = sbr.rel (0) target = $region17
    $region16: #{attention_with_classifier_batched.1} parent=1 // pred_region
      _
    $region17: #{attention_with_classifier_batched.1} parent=1 // pred_fallthru
      _
    // Predicated region
    $region18: #{attention_with_classifier_batched.1} parent=1 // pred_check
      _
    $region19: #{attention_with_classifier_batched.1} parent=1 // pred_check_branch
      %24 = sbr.rel (0) target = $region21
    $region20: #{attention_with_classifier_batched.1} parent=1 // pred_region
      _
    $region21: #{attention_with_classifier_batched.1} parent=1 // pred_fallthru
      _
    // Predicated region
    $region22: #{attention_with_classifier_batched.1} parent=1 // pred_check
      _
    $region23: #{attention_with_classifier_batched.1} parent=1 // pred_check_branch
      %26 = sbr.rel (0) target = $region25
    $region24: #{attention_with_classifier_batched.1} parent=1 // pred_region
      _
    $region25: #{attention_with_classifier_batched.1} parent=1 // pred_fallthru
      _
    // Predicated region
    $region26: #{attention_with_classifier_batched.1} parent=1 // pred_check
      _
    $region27: #{attention_with_classifier_batched.1} parent=1 // pred_check_branch
      %28 = sbr.rel (0) target = $region29
    $region28: #{attention_with_classifier_batched.1} parent=1 // pred_region
      _
    $region29: #{attention_with_classifier_batched.1} parent=1 // pred_fallthru
      _
    %p30 = scmp.eq.s32.totalorder 0, 0
    // Predicated region
    $region30: #{attention_with_classifier_batched.1} parent=1 // pred_check
      %p31 = pneg %p30
    $region31: #{attention_with_classifier_batched.1} parent=1 // pred_check_branch
      %33 = sbr.rel (%p31) target = $region33
    $region32: #{attention_with_classifier_batched.1} parent=1 // pred_region
      %vm34 = vcmask 0
      %35 = vst.msk [vmem:[#allocation2] sm:$0x1] %vm34, -inf
      %36 = vst.msk [vmem:[#allocation3] sm:$0x1] %vm34, 0.0
      %v37 = vlaneseq
      %vm38 = vcmp.ge.s32.totalorder %v37, 0
      %vm39 = vcmp.lt.s32.totalorder %v37, 512
      %vm40 = vmand %vm38, %vm39
      %41 = vst.msk [vmem:[#allocation4] sm:$0xf] %vm40, 0.0
    $region33: #{attention_with_classifier_batched.1} parent=1 // pred_fallthru
      _
    %v42 = vld [vmem:[%s0] sm:$0xff]
    %v43 = vld [vmem:[%s0 + $0x8] sm:$0xff]
    %v44 = vld [vmem:[%s0 + $0x10] sm:$0xff]
    %v45 = vld [vmem:[%s0 + $0x18] sm:$0xff]
    %v46 = vld [vmem:[%s0 + $0x20] sm:$0xff]
    %v47 = vld [vmem:[%s0 + $0x28] sm:$0xff]
    %v48 = vld [vmem:[%s0 + $0x30] sm:$0xff]
    %v49 = vld [vmem:[%s0 + $0x38] sm:$0xff]
    %v50 = vld [vmem:[%s0 + $0x40] sm:$0xff]
    %v51 = vld [vmem:[%s0 + $0x48] sm:$0xff]
    %v52 = vld [vmem:[%s0 + $0x50] sm:$0xff]
    %v53 = vld [vmem:[%s0 + $0x58] sm:$0xff]
    %v54 = vld [vmem:[%s0 + $0x60] sm:$0xff]
    %v55 = vld [vmem:[%s0 + $0x68] sm:$0xff]
    %v56 = vld [vmem:[%s0 + $0x70] sm:$0xff]
    %v57 = vld [vmem:[%s0 + $0x78] sm:$0xff]
    %v58 = vld [vmem:[%s0 + $0x80] sm:$0xff]
    %v59 = vld [vmem:[%s0 + $0x88] sm:$0xff]
    %v60 = vld [vmem:[%s0 + $0x90] sm:$0xff]
    %v61 = vld [vmem:[%s0 + $0x98] sm:$0xff]
    %v62 = vld [vmem:[%s0 + $0xa0] sm:$0xff]
    %v63 = vld [vmem:[%s0 + $0xa8] sm:$0xff]
    %v64 = vld [vmem:[%s0 + $0xb0] sm:$0xff]
    %v65 = vld [vmem:[%s0 + $0xb8] sm:$0xff]
    %v66 = vld [vmem:[%s0 + $0xc0] sm:$0xff]
    %v67 = vld [vmem:[%s0 + $0xc8] sm:$0xff]
    %v68 = vld [vmem:[%s0 + $0xd0] sm:$0xff]
    %v69 = vld [vmem:[%s0 + $0xd8] sm:$0xff]
    %v70 = vld [vmem:[%s0 + $0xe0] sm:$0xff]
    %v71 = vld [vmem:[%s0 + $0xe8] sm:$0xff]
    %v72 = vld [vmem:[%s0 + $0xf0] sm:$0xff]
    %v73 = vld [vmem:[%s0 + $0xf8] sm:$0xff]
    %v74 = vld [vmem:[%s0 + $0x100] sm:$0xff]
    %v75 = vld [vmem:[%s0 + $0x108] sm:$0xff]
    %v76 = vld [vmem:[%s0 + $0x110] sm:$0xff]
    %v77 = vld [vmem:[%s0 + $0x118] sm:$0xff]
    %v78 = vld [vmem:[%s0 + $0x120] sm:$0xff]
    %v79 = vld [vmem:[%s0 + $0x128] sm:$0xff]
    %v80 = vld [vmem:[%s0 + $0x130] sm:$0xff]
    %v81 = vld [vmem:[%s0 + $0x138] sm:$0xff]
    %v82 = vld [vmem:[%s0 + $0x140] sm:$0xff]
    %v83 = vld [vmem:[%s0 + $0x148] sm:$0xff]
    %v84 = vld [vmem:[%s0 + $0x150] sm:$0xff]
    %v85 = vld [vmem:[%s0 + $0x158] sm:$0xff]
    %v86 = vld [vmem:[%s0 + $0x160] sm:$0xff]
    %v87 = vld [vmem:[%s0 + $0x168] sm:$0xff]
    %v88 = vld [vmem:[%s0 + $0x170] sm:$0xff]
    %v89 = vld [vmem:[%s0 + $0x178] sm:$0xff]
    %v90 = vld [vmem:[%s0 + $0x180] sm:$0xff]
    %v91 = vld [vmem:[%s0 + $0x188] sm:$0xff]
    %v92 = vld [vmem:[%s0 + $0x190] sm:$0xff]
    %v93 = vld [vmem:[%s0 + $0x198] sm:$0xff]
    %v94 = vld [vmem:[%s0 + $0x1a0] sm:$0xff]
    %v95 = vld [vmem:[%s0 + $0x1a8] sm:$0xff]
    %v96 = vld [vmem:[%s0 + $0x1b0] sm:$0xff]
    %v97 = vld [vmem:[%s0 + $0x1b8] sm:$0xff]
    %v98 = vld [vmem:[%s0 + $0x1c0] sm:$0xff]
    %v99 = vld [vmem:[%s0 + $0x1c8] sm:$0xff]
    %v100 = vld [vmem:[%s0 + $0x1d0] sm:$0xff]
    %v101 = vld [vmem:[%s0 + $0x1d8] sm:$0xff]
    %v102 = vld [vmem:[%s0 + $0x1e0] sm:$0xff]
    %v103 = vld [vmem:[%s0 + $0x1e8] sm:$0xff]
    %v104 = vld [vmem:[%s0 + $0x1f0] sm:$0xff]
    %v105 = vld [vmem:[%s0 + $0x1f8] sm:$0xff]
    %v106 = vld [vmem:[%s0 + $0x200] sm:$0xff]
    %v107 = vld [vmem:[%s0 + $0x208] sm:$0xff]
    %v108 = vld [vmem:[%s0 + $0x210] sm:$0xff]
    %v109 = vld [vmem:[%s0 + $0x218] sm:$0xff]
    %v110 = vld [vmem:[%s0 + $0x220] sm:$0xff]
    %v111 = vld [vmem:[%s0 + $0x228] sm:$0xff]
    %v112 = vld [vmem:[%s0 + $0x230] sm:$0xff]
    %v113 = vld [vmem:[%s0 + $0x238] sm:$0xff]
    %v114 = vld [vmem:[%s0 + $0x240] sm:$0xff]
    %v115 = vld [vmem:[%s0 + $0x248] sm:$0xff]
    %v116 = vld [vmem:[%s0 + $0x250] sm:$0xff]
    %v117 = vld [vmem:[%s0 + $0x258] sm:$0xff]
    %v118 = vld [vmem:[%s0 + $0x260] sm:$0xff]
    %v119 = vld [vmem:[%s0 + $0x268] sm:$0xff]
    %v120 = vld [vmem:[%s0 + $0x270] sm:$0xff]
    %v121 = vld [vmem:[%s0 + $0x278] sm:$0xff]
    %v122 = vld [vmem:[%s0 + $0x280] sm:$0xff]
    %v123 = vld [vmem:[%s0 + $0x288] sm:$0xff]
    %v124 = vld [vmem:[%s0 + $0x290] sm:$0xff]
    %v125 = vld [vmem:[%s0 + $0x298] sm:$0xff]
    %v126 = vld [vmem:[%s0 + $0x2a0] sm:$0xff]
    %v127 = vld [vmem:[%s0 + $0x2a8] sm:$0xff]
    %v128 = vld [vmem:[%s0 + $0x2b0] sm:$0xff]
    %v129 = vld [vmem:[%s0 + $0x2b8] sm:$0xff]
    %v130 = vld [vmem:[%s0 + $0x2c0] sm:$0xff]
    %v131 = vld [vmem:[%s0 + $0x2c8] sm:$0xff]
    %v132 = vld [vmem:[%s0 + $0x2d0] sm:$0xff]
    %v133 = vld [vmem:[%s0 + $0x2d8] sm:$0xff]
    %v134 = vld [vmem:[%s0 + $0x2e0] sm:$0xff]
    %v135 = vld [vmem:[%s0 + $0x2e8] sm:$0xff]
    %v136 = vld [vmem:[%s0 + $0x2f0] sm:$0xff]
    %v137 = vld [vmem:[%s0 + $0x2f8] sm:$0xff]
    %v138 = vld [vmem:[%s0 + $0x300] sm:$0xff]
    %v139 = vld [vmem:[%s0 + $0x308] sm:$0xff]
    %v140 = vld [vmem:[%s0 + $0x310] sm:$0xff]
    %v141 = vld [vmem:[%s0 + $0x318] sm:$0xff]
    %v142 = vld [vmem:[%s0 + $0x320] sm:$0xff]
    %v143 = vld [vmem:[%s0 + $0x328] sm:$0xff]
    %v144 = vld [vmem:[%s0 + $0x330] sm:$0xff]
    %v145 = vld [vmem:[%s0 + $0x338] sm:$0xff]
    %v146 = vld [vmem:[%s0 + $0x340] sm:$0xff]
    %v147 = vld [vmem:[%s0 + $0x348] sm:$0xff]
    %v148 = vld [vmem:[%s0 + $0x350] sm:$0xff]
    %v149 = vld [vmem:[%s0 + $0x358] sm:$0xff]
    %v150 = vld [vmem:[%s0 + $0x360] sm:$0xff]
    %v151 = vld [vmem:[%s0 + $0x368] sm:$0xff]
    %v152 = vld [vmem:[%s0 + $0x370] sm:$0xff]
    %v153 = vld [vmem:[%s0 + $0x378] sm:$0xff]
    %v154 = vld [vmem:[%s0 + $0x380] sm:$0xff]
    %v155 = vld [vmem:[%s0 + $0x388] sm:$0xff]
    %v156 = vld [vmem:[%s0 + $0x390] sm:$0xff]
    %v157 = vld [vmem:[%s0 + $0x398] sm:$0xff]
    %v158 = vld [vmem:[%s0 + $0x3a0] sm:$0xff]
    %v159 = vld [vmem:[%s0 + $0x3a8] sm:$0xff]
    %v160 = vld [vmem:[%s0 + $0x3b0] sm:$0xff]
    %v161 = vld [vmem:[%s0 + $0x3b8] sm:$0xff]
    %v162 = vld [vmem:[%s0 + $0x3c0] sm:$0xff]
    %v163 = vld [vmem:[%s0 + $0x3c8] sm:$0xff]
    %v164 = vld [vmem:[%s0 + $0x3d0] sm:$0xff]
    %v165 = vld [vmem:[%s0 + $0x3d8] sm:$0xff]
    %v166 = vld [vmem:[%s0 + $0x3e0] sm:$0xff]
    %v167 = vld [vmem:[%s0 + $0x3e8] sm:$0xff]
    %v168 = vld [vmem:[%s0 + $0x3f0] sm:$0xff]
    %v169 = vld [vmem:[%s0 + $0x3f8] sm:$0xff]
    %v170 = vld [vmem:[%s0 + $0x400] sm:$0xff]
    %v171 = vld [vmem:[%s0 + $0x408] sm:$0xff]
    %v172 = vld [vmem:[%s0 + $0x410] sm:$0xff]
    %v173 = vld [vmem:[%s0 + $0x418] sm:$0xff]
    %v174 = vld [vmem:[%s0 + $0x420] sm:$0xff]
    %v175 = vld [vmem:[%s0 + $0x428] sm:$0xff]
    %v176 = vld [vmem:[%s0 + $0x430] sm:$0xff]
    %v177 = vld [vmem:[%s0 + $0x438] sm:$0xff]
    %v178 = vld [vmem:[%s0 + $0x440] sm:$0xff]
    %v179 = vld [vmem:[%s0 + $0x448] sm:$0xff]
    %v180 = vld [vmem:[%s0 + $0x450] sm:$0xff]
    %v181 = vld [vmem:[%s0 + $0x458] sm:$0xff]
    %v182 = vld [vmem:[%s0 + $0x460] sm:$0xff]
    %v183 = vld [vmem:[%s0 + $0x468] sm:$0xff]
    %v184 = vld [vmem:[%s0 + $0x470] sm:$0xff]
    %v185 = vld [vmem:[%s0 + $0x478] sm:$0xff]
    %v186 = vld [vmem:[%s0 + $0x480] sm:$0xff]
    %v187 = vld [vmem:[%s0 + $0x488] sm:$0xff]
    %v188 = vld [vmem:[%s0 + $0x490] sm:$0xff]
    %v189 = vld [vmem:[%s0 + $0x498] sm:$0xff]
    %v190 = vld [vmem:[%s0 + $0x4a0] sm:$0xff]
    %v191 = vld [vmem:[%s0 + $0x4a8] sm:$0xff]
    %v192 = vld [vmem:[%s0 + $0x4b0] sm:$0xff]
    %v193 = vld [vmem:[%s0 + $0x4b8] sm:$0xff]
    %v194 = vpack.c.bf16 %v46, %v42
    %v195 = vpack.c.bf16 %v47, %v43
    %v196 = vpack.c.bf16 %v48, %v44
    %v197 = vpack.c.bf16 %v49, %v45
    %v198 = vpack.c.bf16 %v54, %v50
    %v199 = vpack.c.bf16 %v55, %v51
    %v200 = vpack.c.bf16 %v56, %v52
    %v201 = vpack.c.bf16 %v57, %v53
    %v202 = vpack.c.bf16 %v62, %v58
    %v203 = vpack.c.bf16 %v63, %v59
    %v204 = vpack.c.bf16 %v64, %v60
    %v205 = vpack.c.bf16 %v65, %v61
    %v206 = vpack.c.bf16 %v70, %v66
    %v207 = vpack.c.bf16 %v71, %v67
    %v208 = vpack.c.bf16 %v72, %v68
    %v209 = vpack.c.bf16 %v73, %v69
    %v210 = vpack.c.bf16 %v78, %v74
    %v211 = vpack.c.bf16 %v79, %v75
    %v212 = vpack.c.bf16 %v80, %v76
    %v213 = vpack.c.bf16 %v81, %v77
    %v214 = vpack.c.bf16 %v86, %v82
    %v215 = vpack.c.bf16 %v87, %v83
    %v216 = vpack.c.bf16 %v88, %v84
    %v217 = vpack.c.bf16 %v89, %v85
    %v218 = vpack.c.bf16 %v94, %v90
    %v219 = vpack.c.bf16 %v95, %v91
    %v220 = vpack.c.bf16 %v96, %v92
    %v221 = vpack.c.bf16 %v97, %v93
    %v222 = vpack.c.bf16 %v102, %v98
    %v223 = vpack.c.bf16 %v103, %v99
    %v224 = vpack.c.bf16 %v104, %v100
    %v225 = vpack.c.bf16 %v105, %v101
    %v226 = vpack.c.bf16 %v110, %v106
    %v227 = vpack.c.bf16 %v111, %v107
    %v228 = vpack.c.bf16 %v112, %v108
    %v229 = vpack.c.bf16 %v113, %v109
    %v230 = vpack.c.bf16 %v118, %v114
    %v231 = vpack.c.bf16 %v119, %v115
    %v232 = vpack.c.bf16 %v120, %v116
    %v233 = vpack.c.bf16 %v121, %v117
    %v234 = vpack.c.bf16 %v126, %v122
    %v235 = vpack.c.bf16 %v127, %v123
    %v236 = vpack.c.bf16 %v128, %v124
    %v237 = vpack.c.bf16 %v129, %v125
    %v238 = vpack.c.bf16 %v134, %v130
    %v239 = vpack.c.bf16 %v135, %v131
    %v240 = vpack.c.bf16 %v136, %v132
    %v241 = vpack.c.bf16 %v137, %v133
    %v242 = vpack.c.bf16 %v142, %v138
    %v243 = vpack.c.bf16 %v143, %v139
    %v244 = vpack.c.bf16 %v144, %v140
    %v245 = vpack.c.bf16 %v145, %v141
    %v246 = vpack.c.bf16 %v150, %v146
    %v247 = vpack.c.bf16 %v151, %v147
    %v248 = vpack.c.bf16 %v152, %v148
    %v249 = vpack.c.bf16 %v153, %v149
    %v250 = vpack.c.bf16 %v158, %v154
    %v251 = vpack.c.bf16 %v159, %v155
    %v252 = vpack.c.bf16 %v160, %v156
    %v253 = vpack.c.bf16 %v161, %v157
    %v254 = vpack.c.bf16 %v166, %v162
    %v255 = vpack.c.bf16 %v167, %v163
    %v256 = vpack.c.bf16 %v168, %v164
    %v257 = vpack.c.bf16 %v169, %v165
    %v258 = vpack.c.bf16 %v174, %v170
    %v259 = vpack.c.bf16 %v175, %v171
    %v260 = vpack.c.bf16 %v176, %v172
    %v261 = vpack.c.bf16 %v177, %v173
    %v262 = vpack.c.bf16 %v182, %v178
    %v263 = vpack.c.bf16 %v183, %v179
    %v264 = vpack.c.bf16 %v184, %v180
    %v265 = vpack.c.bf16 %v185, %v181
    %v266 = vpack.c.bf16 %v190, %v186
    %v267 = vpack.c.bf16 %v191, %v187
    %v268 = vpack.c.bf16 %v192, %v188
    %v269 = vpack.c.bf16 %v193, %v189
    %v270 = vld [vmem:[%s1] sm:$0xff]
    %v271 = vld [vmem:[%s1 + $0x8] sm:$0xff]
    %v272 = vld [vmem:[%s1 + $0x10] sm:$0xff]
    %v273 = vld [vmem:[%s1 + $0x18] sm:$0xff]
    %v274 = vld [vmem:[%s1 + $0x20] sm:$0xff]
    %v275 = vld [vmem:[%s1 + $0x28] sm:$0xff]
    %v276 = vld [vmem:[%s1 + $0x30] sm:$0xff]
    %v277 = vld [vmem:[%s1 + $0x38] sm:$0xff]
    %v278 = vld [vmem:[%s1 + $0x40] sm:$0xff]
    %v279 = vld [vmem:[%s1 + $0x48] sm:$0xff]
    %v280 = vld [vmem:[%s1 + $0x50] sm:$0xff]
    %v281 = vld [vmem:[%s1 + $0x58] sm:$0xff]
    %v282 = vld [vmem:[%s1 + $0x60] sm:$0xff]
    %v283 = vld [vmem:[%s1 + $0x68] sm:$0xff]
    %v284 = vld [vmem:[%s1 + $0x70] sm:$0xff]
    %v285 = vld [vmem:[%s1 + $0x78] sm:$0xff]
    %v286 = vld [vmem:[%s1 + $0x80] sm:$0xff]
    %v287 = vld [vmem:[%s1 + $0x88] sm:$0xff]
    %v288 = vld [vmem:[%s1 + $0x90] sm:$0xff]
    %v289 = vld [vmem:[%s1 + $0x98] sm:$0xff]
    %v290 = vld [vmem:[%s1 + $0xa0] sm:$0xff]
    %v291 = vld [vmem:[%s1 + $0xa8] sm:$0xff]
    %v292 = vld [vmem:[%s1 + $0xb0] sm:$0xff]
    %v293 = vld [vmem:[%s1 + $0xb8] sm:$0xff]
    %v294 = vld [vmem:[%s1 + $0xc0] sm:$0xff]
    %v295 = vld [vmem:[%s1 + $0xc8] sm:$0xff]
    %v296 = vld [vmem:[%s1 + $0xd0] sm:$0xff]
    %v297 = vld [vmem:[%s1 + $0xd8] sm:$0xff]
    %v298 = vld [vmem:[%s1 + $0xe0] sm:$0xff]
    %v299 = vld [vmem:[%s1 + $0xe8] sm:$0xff]
    %v300 = vld [vmem:[%s1 + $0xf0] sm:$0xff]
    %v301 = vld [vmem:[%s1 + $0xf8] sm:$0xff]
    %v302 = vld [vmem:[%s1 + $0x100] sm:$0xff]
    %v303 = vld [vmem:[%s1 + $0x108] sm:$0xff]
    %v304 = vld [vmem:[%s1 + $0x110] sm:$0xff]
    %v305 = vld [vmem:[%s1 + $0x118] sm:$0xff]
    %v306 = vld [vmem:[%s1 + $0x120] sm:$0xff]
    %v307 = vld [vmem:[%s1 + $0x128] sm:$0xff]
    %v308 = vld [vmem:[%s1 + $0x130] sm:$0xff]
    %v309 = vld [vmem:[%s1 + $0x138] sm:$0xff]
    %v310 = vld [vmem:[%s1 + $0x140] sm:$0xff]
    %v311 = vld [vmem:[%s1 + $0x148] sm:$0xff]
    %v312 = vld [vmem:[%s1 + $0x150] sm:$0xff]
    %v313 = vld [vmem:[%s1 + $0x158] sm:$0xff]
    %v314 = vld [vmem:[%s1 + $0x160] sm:$0xff]
    %v315 = vld [vmem:[%s1 + $0x168] sm:$0xff]
    %v316 = vld [vmem:[%s1 + $0x170] sm:$0xff]
    %v317 = vld [vmem:[%s1 + $0x178] sm:$0xff]
    %v318 = vld [vmem:[%s1 + $0x180] sm:$0xff]
    %v319 = vld [vmem:[%s1 + $0x188] sm:$0xff]
    %v320 = vld [vmem:[%s1 + $0x190] sm:$0xff]
    %v321 = vld [vmem:[%s1 + $0x198] sm:$0xff]
    %v322 = vld [vmem:[%s1 + $0x1a0] sm:$0xff]
    %v323 = vld [vmem:[%s1 + $0x1a8] sm:$0xff]
    %v324 = vld [vmem:[%s1 + $0x1b0] sm:$0xff]
    %v325 = vld [vmem:[%s1 + $0x1b8] sm:$0xff]
    %v326 = vld [vmem:[%s1 + $0x1c0] sm:$0xff]
    %v327 = vld [vmem:[%s1 + $0x1c8] sm:$0xff]
    %v328 = vld [vmem:[%s1 + $0x1d0] sm:$0xff]
    %v329 = vld [vmem:[%s1 + $0x1d8] sm:$0xff]
    %v330 = vld [vmem:[%s1 + $0x1e0] sm:$0xff]
    %v331 = vld [vmem:[%s1 + $0x1e8] sm:$0xff]
    %v332 = vld [vmem:[%s1 + $0x1f0] sm:$0xff]
    %v333 = vld [vmem:[%s1 + $0x1f8] sm:$0xff]
    %v334 = vld [vmem:[%s2] sm:$0x3]
    %v336 = vlaneseq
    %v337 = vshrl.u32 %v336, 7
    %v338 = vsub.s32 0, %v337
    %v339 = vrot.slane %v334, %v338
    %v340 = vlaneseq
    %v341 = vshrl.u32 %v340, 7
    %v342 = vsub.s32 1, %v341
    %v343 = vrot.slane %v334, %v342
    %v410 = vunpack.c.l.b16 %v270
    %v411 = vunpack.c.h.b16 %v270
    %v412 = vunpack.c.l.b16 %v271
    %v413 = vunpack.c.h.b16 %v271
    %v414 = vunpack.c.l.b16 %v272
    %v415 = vunpack.c.h.b16 %v272
    %v416 = vunpack.c.l.b16 %v273
    %v417 = vunpack.c.h.b16 %v273
    %v418 = vunpack.c.l.b16 %v274
    %v419 = vunpack.c.h.b16 %v274
    %v420 = vunpack.c.l.b16 %v275
    %v421 = vunpack.c.h.b16 %v275
    %v422 = vunpack.c.l.b16 %v276
    %v423 = vunpack.c.h.b16 %v276
    %v424 = vunpack.c.l.b16 %v277
    %v425 = vunpack.c.h.b16 %v277
    %v426 = vunpack.c.l.b16 %v278
    %v427 = vunpack.c.h.b16 %v278
    %v428 = vunpack.c.l.b16 %v279
    %v429 = vunpack.c.h.b16 %v279
    %v430 = vunpack.c.l.b16 %v280
    %v431 = vunpack.c.h.b16 %v280
    %v432 = vunpack.c.l.b16 %v281
    %v433 = vunpack.c.h.b16 %v281
    %v434 = vunpack.c.l.b16 %v282
    %v435 = vunpack.c.h.b16 %v282
    %v436 = vunpack.c.l.b16 %v283
    %v437 = vunpack.c.h.b16 %v283
    %v438 = vunpack.c.l.b16 %v284
    %v439 = vunpack.c.h.b16 %v284
    %v440 = vunpack.c.l.b16 %v285
    %v441 = vunpack.c.h.b16 %v285
    %v442 = vunpack.c.l.b16 %v286
    %v443 = vunpack.c.h.b16 %v286
    %v444 = vunpack.c.l.b16 %v287
    %v445 = vunpack.c.h.b16 %v287
    %v446 = vunpack.c.l.b16 %v288
    %v447 = vunpack.c.h.b16 %v288
    %v448 = vunpack.c.l.b16 %v289
    %v449 = vunpack.c.h.b16 %v289
    %v450 = vunpack.c.l.b16 %v290
    %v451 = vunpack.c.h.b16 %v290
    %v452 = vunpack.c.l.b16 %v291
    %v453 = vunpack.c.h.b16 %v291
    %v454 = vunpack.c.l.b16 %v292
    %v455 = vunpack.c.h.b16 %v292
    %v456 = vunpack.c.l.b16 %v293
    %v457 = vunpack.c.h.b16 %v293
    %v458 = vunpack.c.l.b16 %v294
    %v459 = vunpack.c.h.b16 %v294
    %v460 = vunpack.c.l.b16 %v295
    %v461 = vunpack.c.h.b16 %v295
    %v462 = vunpack.c.l.b16 %v296
    %v463 = vunpack.c.h.b16 %v296
    %v464 = vunpack.c.l.b16 %v297
    %v465 = vunpack.c.h.b16 %v297
    %v466 = vunpack.c.l.b16 %v298
    %v467 = vunpack.c.h.b16 %v298
    %v468 = vunpack.c.l.b16 %v299
    %v469 = vunpack.c.h.b16 %v299
    %v470 = vunpack.c.l.b16 %v300
    %v471 = vunpack.c.h.b16 %v300
    %v472 = vunpack.c.l.b16 %v301
    %v473 = vunpack.c.h.b16 %v301
    %v474 = vunpack.c.l.b16 %v302
    %v475 = vunpack.c.h.b16 %v302
    %v476 = vunpack.c.l.b16 %v303
    %v477 = vunpack.c.h.b16 %v303
    %v478 = vunpack.c.l.b16 %v304
    %v479 = vunpack.c.h.b16 %v304
    %v480 = vunpack.c.l.b16 %v305
    %v481 = vunpack.c.h.b16 %v305
    %v482 = vunpack.c.l.b16 %v306
    %v483 = vunpack.c.h.b16 %v306
    %v484 = vunpack.c.l.b16 %v307
    %v485 = vunpack.c.h.b16 %v307
    %v486 = vunpack.c.l.b16 %v308
    %v487 = vunpack.c.h.b16 %v308
    %v488 = vunpack.c.l.b16 %v309
    %v489 = vunpack.c.h.b16 %v309
    %v490 = vunpack.c.l.b16 %v310
    %v491 = vunpack.c.h.b16 %v310
    %v492 = vunpack.c.l.b16 %v311
    %v493 = vunpack.c.h.b16 %v311
    %v494 = vunpack.c.l.b16 %v312
    %v495 = vunpack.c.h.b16 %v312
    %v496 = vunpack.c.l.b16 %v313
    %v497 = vunpack.c.h.b16 %v313
    %v498 = vunpack.c.l.b16 %v314
    %v499 = vunpack.c.h.b16 %v314
    %v500 = vunpack.c.l.b16 %v315
    %v501 = vunpack.c.h.b16 %v315
    %v502 = vunpack.c.l.b16 %v316
    %v503 = vunpack.c.h.b16 %v316
    %v504 = vunpack.c.l.b16 %v317
    %v505 = vunpack.c.h.b16 %v317
    %v506 = vunpack.c.l.b16 %v318
    %v507 = vunpack.c.h.b16 %v318
    %v508 = vunpack.c.l.b16 %v319
    %v509 = vunpack.c.h.b16 %v319
    %v510 = vunpack.c.l.b16 %v320
    %v511 = vunpack.c.h.b16 %v320
    %v512 = vunpack.c.l.b16 %v321
    %v513 = vunpack.c.h.b16 %v321
    %v514 = vunpack.c.l.b16 %v322
    %v515 = vunpack.c.h.b16 %v322
    %v516 = vunpack.c.l.b16 %v323
    %v517 = vunpack.c.h.b16 %v323
    %v518 = vunpack.c.l.b16 %v324
    %v519 = vunpack.c.h.b16 %v324
    %v520 = vunpack.c.l.b16 %v325
    %v521 = vunpack.c.h.b16 %v325
    %v522 = vunpack.c.l.b16 %v326
    %v523 = vunpack.c.h.b16 %v326
    %v524 = vunpack.c.l.b16 %v327
    %v525 = vunpack.c.h.b16 %v327
    %v526 = vunpack.c.l.b16 %v328
    %v527 = vunpack.c.h.b16 %v328
    %v528 = vunpack.c.l.b16 %v329
    %v529 = vunpack.c.h.b16 %v329
    %v530 = vunpack.c.l.b16 %v330
    %v531 = vunpack.c.h.b16 %v330
    %v532 = vunpack.c.l.b16 %v331
    %v533 = vunpack.c.h.b16 %v331
    %v534 = vunpack.c.l.b16 %v332
    %v535 = vunpack.c.h.b16 %v332
    %v536 = vunpack.c.l.b16 %v333
    %v537 = vunpack.c.h.b16 %v333
    %v538 = vpack.c.b16 %v412, %v410
    %v539 = vpack.c.b16 %v413, %v411
    %v540 = vpack.c.b16 %v416, %v414
    %v541 = vpack.c.b16 %v417, %v415
    %v542 = vpack.c.b16 %v420, %v418
    %v543 = vpack.c.b16 %v421, %v419
    %v544 = vpack.c.b16 %v424, %v422
    %v545 = vpack.c.b16 %v425, %v423
    %v546 = vpack.c.b16 %v428, %v426
    %v547 = vpack.c.b16 %v429, %v427
    %v548 = vpack.c.b16 %v432, %v430
    %v549 = vpack.c.b16 %v433, %v431
    %v550 = vpack.c.b16 %v436, %v434
    %v551 = vpack.c.b16 %v437, %v435
    %v552 = vpack.c.b16 %v440, %v438
    %v553 = vpack.c.b16 %v441, %v439
    %v554 = vpack.c.b16 %v444, %v442
    %v555 = vpack.c.b16 %v445, %v443
    %v556 = vpack.c.b16 %v448, %v446
    %v557 = vpack.c.b16 %v449, %v447
    %v558 = vpack.c.b16 %v452, %v450
    %v559 = vpack.c.b16 %v453, %v451
    %v560 = vpack.c.b16 %v456, %v454
    %v561 = vpack.c.b16 %v457, %v455
    %v562 = vpack.c.b16 %v460, %v458
    %v563 = vpack.c.b16 %v461, %v459
    %v564 = vpack.c.b16 %v464, %v462
    %v565 = vpack.c.b16 %v465, %v463
    %v566 = vpack.c.b16 %v468, %v466
    %v567 = vpack.c.b16 %v469, %v467
    %v568 = vpack.c.b16 %v472, %v470
    %v569 = vpack.c.b16 %v473, %v471
    %v570 = vpack.c.b16 %v476, %v474
    %v571 = vpack.c.b16 %v477, %v475
    %v572 = vpack.c.b16 %v480, %v478
    %v573 = vpack.c.b16 %v481, %v479
    %v574 = vpack.c.b16 %v484, %v482
    %v575 = vpack.c.b16 %v485, %v483
    %v576 = vpack.c.b16 %v488, %v486
    %v577 = vpack.c.b16 %v489, %v487
    %v578 = vpack.c.b16 %v492, %v490
    %v579 = vpack.c.b16 %v493, %v491
    %v580 = vpack.c.b16 %v496, %v494
    %v581 = vpack.c.b16 %v497, %v495
    %v582 = vpack.c.b16 %v500, %v498
    %v583 = vpack.c.b16 %v501, %v499
    %v584 = vpack.c.b16 %v504, %v502
    %v585 = vpack.c.b16 %v505, %v503
    %v586 = vpack.c.b16 %v508, %v506
    %v587 = vpack.c.b16 %v509, %v507
    %v588 = vpack.c.b16 %v512, %v510
    %v589 = vpack.c.b16 %v513, %v511
    %v590 = vpack.c.b16 %v516, %v514
    %v591 = vpack.c.b16 %v517, %v515
    %v592 = vpack.c.b16 %v520, %v518
    %v593 = vpack.c.b16 %v521, %v519
    %v594 = vpack.c.b16 %v524, %v522
    %v595 = vpack.c.b16 %v525, %v523
    %v596 = vpack.c.b16 %v528, %v526
    %v597 = vpack.c.b16 %v529, %v527
    %v598 = vpack.c.b16 %v532, %v530
    %v599 = vpack.c.b16 %v533, %v531
    %v600 = vpack.c.b16 %v536, %v534
    %v601 = vpack.c.b16 %v537, %v535
    %666 = vmatprep.subr.bf16.mxu0 %v553
    %667 = vmatpush1.bf16.msra.mxu0 %v552
    %668 = vmatprep.subr.bf16.mxu0 %v551
    %669 = vmatpush1.bf16.msra.mxu0 %v550
    %670 = vmatprep.subr.bf16.mxu0 %v549
    %671 = vmatpush1.bf16.msra.mxu0 %v548
    %672 = vmatprep.subr.bf16.mxu0 %v547
    %673 = vmatpush1.bf16.msra.mxu0 %v546
    %674 = vmatprep.subr.bf16.mxu0 %v545
    %675 = vmatpush1.bf16.msra.mxu0 %v544
    %676 = vmatprep.subr.bf16.mxu0 %v543
    %677 = vmatpush1.bf16.msra.mxu0 %v542
    %678 = vmatprep.subr.bf16.mxu0 %v541
    %679 = vmatpush1.bf16.msra.mxu0 %v540
    %680 = vmatprep.subr.bf16.mxu0 %v539
    %681 = vmatpush1.bf16.msra.mxu0 %v538
    %682 = vmatprep.subr.bf16.mxu0 %v569
    %683 = vmatpush2.bf16.msra.mxu0 %v568
    %684 = vmatprep.subr.bf16.mxu0 %v567
    %685 = vmatpush2.bf16.msra.mxu0 %v566
    %686 = vmatprep.subr.bf16.mxu0 %v565
    %687 = vmatpush2.bf16.msra.mxu0 %v564
    %688 = vmatprep.subr.bf16.mxu0 %v563
    %689 = vmatpush2.bf16.msra.mxu0 %v562
    %690 = vmatprep.subr.bf16.mxu0 %v561
    %691 = vmatpush2.bf16.msra.mxu0 %v560
    %692 = vmatprep.subr.bf16.mxu0 %v559
    %693 = vmatpush2.bf16.msra.mxu0 %v558
    %694 = vmatprep.subr.bf16.mxu0 %v557
    %695 = vmatpush2.bf16.msra.mxu0 %v556
    %696 = vmatprep.subr.bf16.mxu0 %v555
    %697 = vmatpush2.bf16.msra.mxu0 %v554
    %698 = vmatprep.mubr.bf16.mxu0 %v195
    %699 = vmatmul.mubr.bf16.gmra.mxu0 %v194
    %v700 = vpop.f32.mrf.mxu0
    %v701 = vadd.f32 %v339, %v700
    %v702 = vpop.f32.mrf.mxu0
    %v703 = vadd.f32 %v343, %v702
    %v704 = vpop.f32.mrf.mxu0
    %v705 = vadd.f32 %v339, %v704
    %v706 = vpop.f32.mrf.mxu0
    %v707 = vadd.f32 %v343, %v706
    %708 = vmatprep.mubr.bf16.mxu0 %v199
    %709 = vmatmul.mubr.bf16.gmra.mxu0 %v198
    %v710 = vpop.f32.mrf.mxu0
    %v711 = vadd.f32 %v339, %v710
    %v712 = vpop.f32.mrf.mxu0
    %v713 = vadd.f32 %v343, %v712
    %v714 = vpop.f32.mrf.mxu0
    %v715 = vadd.f32 %v339, %v714
    %v716 = vpop.f32.mrf.mxu0
    %v717 = vadd.f32 %v343, %v716
    %718 = vmatprep.mubr.bf16.mxu0 %v203
    %719 = vmatmul.mubr.bf16.gmra.mxu0 %v202
    %v720 = vpop.f32.mrf.mxu0
    %v721 = vadd.f32 %v339, %v720
    %v722 = vpop.f32.mrf.mxu0
    %v723 = vadd.f32 %v343, %v722
    %v724 = vpop.f32.mrf.mxu0
    %v725 = vadd.f32 %v339, %v724
    %v726 = vpop.f32.mrf.mxu0
    %v727 = vadd.f32 %v343, %v726
    %728 = vmatprep.mubr.bf16.mxu0 %v207
    %729 = vmatmul.mubr.bf16.gmra.mxu0 %v206
    %v730 = vpop.f32.mrf.mxu0
    %v731 = vadd.f32 %v339, %v730
    %v732 = vpop.f32.mrf.mxu0
    %v733 = vadd.f32 %v343, %v732
    %v734 = vpop.f32.mrf.mxu0
    %v735 = vadd.f32 %v339, %v734
    %v736 = vpop.f32.mrf.mxu0
    %v737 = vadd.f32 %v343, %v736
    %738 = vmatprep.mubr.bf16.mxu0 %v211
    %739 = vmatmul.mubr.bf16.gmra.mxu0 %v210
    %v740 = vpop.f32.mrf.mxu0
    %v741 = vadd.f32 %v339, %v740
    %v742 = vpop.f32.mrf.mxu0
    %v743 = vadd.f32 %v343, %v742
    %v744 = vpop.f32.mrf.mxu0
    %v745 = vadd.f32 %v339, %v744
    %v746 = vpop.f32.mrf.mxu0
    %v747 = vadd.f32 %v343, %v746
    %748 = vmatprep.mubr.bf16.mxu0 %v215
    %749 = vmatmul.mubr.bf16.gmra.mxu0 %v214
    %v750 = vpop.f32.mrf.mxu0
    %v751 = vadd.f32 %v339, %v750
    %v752 = vpop.f32.mrf.mxu0
    %v753 = vadd.f32 %v343, %v752
    %v754 = vpop.f32.mrf.mxu0
    %v755 = vadd.f32 %v339, %v754
    %v756 = vpop.f32.mrf.mxu0
    %v757 = vadd.f32 %v343, %v756
    %758 = vmatprep.mubr.bf16.mxu0 %v219
    %759 = vmatmul.mubr.bf16.gmra.mxu0 %v218
    %v760 = vpop.f32.mrf.mxu0
    %v761 = vadd.f32 %v339, %v760
    %v762 = vpop.f32.mrf.mxu0
    %v763 = vadd.f32 %v343, %v762
    %v764 = vpop.f32.mrf.mxu0
    %v765 = vadd.f32 %v339, %v764
    %v766 = vpop.f32.mrf.mxu0
    %v767 = vadd.f32 %v343, %v766
    %768 = vmatprep.mubr.bf16.mxu0 %v223
    %769 = vmatmul.mubr.bf16.gmra.mxu0 %v222
    %v770 = vpop.f32.mrf.mxu0
    %v771 = vadd.f32 %v339, %v770
    %v772 = vpop.f32.mrf.mxu0
    %v773 = vadd.f32 %v343, %v772
    %v774 = vpop.f32.mrf.mxu0
    %v775 = vadd.f32 %v339, %v774
    %v776 = vpop.f32.mrf.mxu0
    %v777 = vadd.f32 %v343, %v776
    %778 = vmatprep.mubr.bf16.mxu0 %v227
    %779 = vmatmul.mubr.bf16.gmra.mxu0 %v226
    %v780 = vpop.f32.mrf.mxu0
    %v781 = vadd.f32 %v339, %v780
    %v782 = vpop.f32.mrf.mxu0
    %v783 = vadd.f32 %v343, %v782
    %v784 = vpop.f32.mrf.mxu0
    %v785 = vadd.f32 %v339, %v784
    %v786 = vpop.f32.mrf.mxu0
    %v787 = vadd.f32 %v343, %v786
    %788 = vmatprep.mubr.bf16.mxu0 %v231
    %789 = vmatmul.mubr.bf16.gmra.mxu0 %v230
    %v790 = vpop.f32.mrf.mxu0
    %v791 = vadd.f32 %v339, %v790
    %v792 = vpop.f32.mrf.mxu0
    %v793 = vadd.f32 %v343, %v792
    %v794 = vpop.f32.mrf.mxu0
    %v795 = vadd.f32 %v339, %v794
    %v796 = vpop.f32.mrf.mxu0
    %v797 = vadd.f32 %v343, %v796
    %798 = vmatprep.mubr.bf16.mxu0 %v235
    %799 = vmatmul.mubr.bf16.gmra.mxu0 %v234
    %v800 = vpop.f32.mrf.mxu0
    %v801 = vadd.f32 %v339, %v800
    %v802 = vpop.f32.mrf.mxu0
    %v803 = vadd.f32 %v343, %v802
    %v804 = vpop.f32.mrf.mxu0
    %v805 = vadd.f32 %v339, %v804
    %v806 = vpop.f32.mrf.mxu0
    %v807 = vadd.f32 %v343, %v806
    %808 = vmatprep.mubr.bf16.mxu0 %v239
    %809 = vmatmul.mubr.bf16.gmra.mxu0 %v238
    %v810 = vpop.f32.mrf.mxu0
    %v811 = vadd.f32 %v339, %v810
    %v812 = vpop.f32.mrf.mxu0
    %v813 = vadd.f32 %v343, %v812
    %v814 = vpop.f32.mrf.mxu0
    %v815 = vadd.f32 %v339, %v814
    %v816 = vpop.f32.mrf.mxu0
    %v817 = vadd.f32 %v343, %v816
    %818 = vmatprep.mubr.bf16.mxu0 %v243
    %819 = vmatmul.mubr.bf16.gmra.mxu0 %v242
    %v820 = vpop.f32.mrf.mxu0
    %v821 = vadd.f32 %v339, %v820
    %v822 = vpop.f32.mrf.mxu0
    %v823 = vadd.f32 %v343, %v822
    %v824 = vpop.f32.mrf.mxu0
    %v825 = vadd.f32 %v339, %v824
    %v826 = vpop.f32.mrf.mxu0
    %v827 = vadd.f32 %v343, %v826
    %828 = vmatprep.mubr.bf16.mxu0 %v247
    %829 = vmatmul.mubr.bf16.gmra.mxu0 %v246
    %v830 = vpop.f32.mrf.mxu0
    %v831 = vadd.f32 %v339, %v830
    %v832 = vpop.f32.mrf.mxu0
    %v833 = vadd.f32 %v343, %v832
    %v834 = vpop.f32.mrf.mxu0
    %v835 = vadd.f32 %v339, %v834
    %v836 = vpop.f32.mrf.mxu0
    %v837 = vadd.f32 %v343, %v836
    %838 = vmatprep.mubr.bf16.mxu0 %v251
    %839 = vmatmul.mubr.bf16.gmra.mxu0 %v250
    %v840 = vpop.f32.mrf.mxu0
    %v841 = vadd.f32 %v339, %v840
    %v842 = vpop.f32.mrf.mxu0
    %v843 = vadd.f32 %v343, %v842
    %v844 = vpop.f32.mrf.mxu0
    %v845 = vadd.f32 %v339, %v844
    %v846 = vpop.f32.mrf.mxu0
    %v847 = vadd.f32 %v343, %v846
    %848 = vmatprep.mubr.bf16.mxu0 %v255
    %849 = vmatmul.mubr.bf16.gmra.mxu0 %v254
    %v850 = vpop.f32.mrf.mxu0
    %v851 = vadd.f32 %v339, %v850
    %v852 = vpop.f32.mrf.mxu0
    %v853 = vadd.f32 %v343, %v852
    %v854 = vpop.f32.mrf.mxu0
    %v855 = vadd.f32 %v339, %v854
    %v856 = vpop.f32.mrf.mxu0
    %v857 = vadd.f32 %v343, %v856
    %858 = vmatprep.mubr.bf16.mxu0 %v259
    %859 = vmatmul.mubr.bf16.gmra.mxu0 %v258
    %v860 = vpop.f32.mrf.mxu0
    %v861 = vadd.f32 %v339, %v860
    %v862 = vpop.f32.mrf.mxu0
    %v863 = vadd.f32 %v343, %v862
    %v864 = vpop.f32.mrf.mxu0
    %v865 = vadd.f32 %v339, %v864
    %v866 = vpop.f32.mrf.mxu0
    %v867 = vadd.f32 %v343, %v866
    %868 = vmatprep.mubr.bf16.mxu0 %v263
    %869 = vmatmul.mubr.bf16.gmra.mxu0 %v262
    %v870 = vpop.f32.mrf.mxu0
    %v871 = vadd.f32 %v339, %v870
    %v872 = vpop.f32.mrf.mxu0
    %v873 = vadd.f32 %v343, %v872
    %v874 = vpop.f32.mrf.mxu0
    %v875 = vadd.f32 %v339, %v874
    %v876 = vpop.f32.mrf.mxu0
    %v877 = vadd.f32 %v343, %v876
    %878 = vmatprep.mubr.bf16.mxu0 %v267
    %879 = vmatmul.mubr.bf16.gmra.mxu0 %v266
    %v880 = vpop.f32.mrf.mxu0
    %v881 = vadd.f32 %v339, %v880
    %v882 = vpop.f32.mrf.mxu0
    %v883 = vadd.f32 %v343, %v882
    %v884 = vpop.f32.mrf.mxu0
    %v885 = vadd.f32 %v339, %v884
    %v886 = vpop.f32.mrf.mxu0
    %v887 = vadd.f32 %v343, %v886
    %888 = vdwg.mxu0
    %889 = vmatprep.subr.bf16.mxu0 %v585
    %890 = vmatpush1.bf16.msra.mxu0 %v584
    %891 = vmatprep.subr.bf16.mxu0 %v583
    %892 = vmatpush1.bf16.msra.mxu0 %v582
    %893 = vmatprep.subr.bf16.mxu0 %v581
    %894 = vmatpush1.bf16.msra.mxu0 %v580
    %895 = vmatprep.subr.bf16.mxu0 %v579
    %896 = vmatpush1.bf16.msra.mxu0 %v578
    %897 = vmatprep.subr.bf16.mxu0 %v577
    %898 = vmatpush1.bf16.msra.mxu0 %v576
    %899 = vmatprep.subr.bf16.mxu0 %v575
    %900 = vmatpush1.bf16.msra.mxu0 %v574
    %901 = vmatprep.subr.bf16.mxu0 %v573
    %902 = vmatpush1.bf16.msra.mxu0 %v572
    %903 = vmatprep.subr.bf16.mxu0 %v571
    %904 = vmatpush1.bf16.msra.mxu0 %v570
    %905 = vmatprep.subr.bf16.mxu0 %v601
    %906 = vmatpush2.bf16.msra.mxu0 %v600
    %907 = vmatprep.subr.bf16.mxu0 %v599
    %908 = vmatpush2.bf16.msra.mxu0 %v598
    %909 = vmatprep.subr.bf16.mxu0 %v597
    %910 = vmatpush2.bf16.msra.mxu0 %v596
    %911 = vmatprep.subr.bf16.mxu0 %v595
    %912 = vmatpush2.bf16.msra.mxu0 %v594
    %913 = vmatprep.subr.bf16.mxu0 %v593
    %914 = vmatpush2.bf16.msra.mxu0 %v592
    %915 = vmatprep.subr.bf16.mxu0 %v591
    %916 = vmatpush2.bf16.msra.mxu0 %v590
    %917 = vmatprep.subr.bf16.mxu0 %v589
    %918 = vmatpush2.bf16.msra.mxu0 %v588
    %919 = vmatprep.subr.bf16.mxu0 %v587
    %920 = vmatpush2.bf16.msra.mxu0 %v586
    %921 = vmatprep.mubr.bf16.mxu0 %v197
    %922 = vmatmul.mubr.bf16.gmra.mxu0 %v196
    %v923 = vpop.f32.mrf.mxu0
    %v924 = vadd.f32 %v701, %v923
    %v925 = vpop.f32.mrf.mxu0
    %v926 = vadd.f32 %v703, %v925
    %v927 = vpop.f32.mrf.mxu0
    %v928 = vadd.f32 %v705, %v927
    %v929 = vpop.f32.mrf.mxu0
    %v930 = vadd.f32 %v707, %v929
    %931 = vmatprep.mubr.bf16.mxu0 %v201
    %932 = vmatmul.mubr.bf16.gmra.mxu0 %v200
    %v933 = vpop.f32.mrf.mxu0
    %v934 = vadd.f32 %v711, %v933
    %v935 = vpop.f32.mrf.mxu0
    %v936 = vadd.f32 %v713, %v935
    %v937 = vpop.f32.mrf.mxu0
    %v938 = vadd.f32 %v715, %v937
    %v939 = vpop.f32.mrf.mxu0
    %v940 = vadd.f32 %v717, %v939
    %941 = vmatprep.mubr.bf16.mxu0 %v205
    %942 = vmatmul.mubr.bf16.gmra.mxu0 %v204
    %v943 = vpop.f32.mrf.mxu0
    %v944 = vadd.f32 %v721, %v943
    %v945 = vpop.f32.mrf.mxu0
    %v946 = vadd.f32 %v723, %v945
    %v947 = vpop.f32.mrf.mxu0
    %v948 = vadd.f32 %v725, %v947
    %v949 = vpop.f32.mrf.mxu0
    %v950 = vadd.f32 %v727, %v949
    %951 = vmatprep.mubr.bf16.mxu0 %v209
    %952 = vmatmul.mubr.bf16.gmra.mxu0 %v208
    %v953 = vpop.f32.mrf.mxu0
    %v954 = vadd.f32 %v731, %v953
    %v955 = vpop.f32.mrf.mxu0
    %v956 = vadd.f32 %v733, %v955
    %v957 = vpop.f32.mrf.mxu0
    %v958 = vadd.f32 %v735, %v957
    %v959 = vpop.f32.mrf.mxu0
    %v960 = vadd.f32 %v737, %v959
    %961 = vmatprep.mubr.bf16.mxu0 %v213
    %962 = vmatmul.mubr.bf16.gmra.mxu0 %v212
    %v963 = vpop.f32.mrf.mxu0
    %v964 = vadd.f32 %v741, %v963
    %v965 = vpop.f32.mrf.mxu0
    %v966 = vadd.f32 %v743, %v965
    %v967 = vpop.f32.mrf.mxu0
    %v968 = vadd.f32 %v745, %v967
    %v969 = vpop.f32.mrf.mxu0
    %v970 = vadd.f32 %v747, %v969
    %971 = vmatprep.mubr.bf16.mxu0 %v217
    %972 = vmatmul.mubr.bf16.gmra.mxu0 %v216
    %v973 = vpop.f32.mrf.mxu0
    %v974 = vadd.f32 %v751, %v973
    %v975 = vpop.f32.mrf.mxu0
    %v976 = vadd.f32 %v753, %v975
    %v977 = vpop.f32.mrf.mxu0
    %v978 = vadd.f32 %v755, %v977
    %v979 = vpop.f32.mrf.mxu0
    %v980 = vadd.f32 %v757, %v979
    %981 = vmatprep.mubr.bf16.mxu0 %v221
    %982 = vmatmul.mubr.bf16.gmra.mxu0 %v220
    %v983 = vpop.f32.mrf.mxu0
    %v984 = vadd.f32 %v761, %v983
    %v985 = vpop.f32.mrf.mxu0
    %v986 = vadd.f32 %v763, %v985
    %v987 = vpop.f32.mrf.mxu0
    %v988 = vadd.f32 %v765, %v987
    %v989 = vpop.f32.mrf.mxu0
    %v990 = vadd.f32 %v767, %v989
    %991 = vmatprep.mubr.bf16.mxu0 %v225
    %992 = vmatmul.mubr.bf16.gmra.mxu0 %v224
    %v993 = vpop.f32.mrf.mxu0
    %v994 = vadd.f32 %v771, %v993
    %v995 = vpop.f32.mrf.mxu0
    %v996 = vadd.f32 %v773, %v995
    %v997 = vpop.f32.mrf.mxu0
    %v998 = vadd.f32 %v775, %v997
    %v999 = vpop.f32.mrf.mxu0
    %v1000 = vadd.f32 %v777, %v999
    %1001 = vmatprep.mubr.bf16.mxu0 %v229
    %1002 = vmatmul.mubr.bf16.gmra.mxu0 %v228
    %v1003 = vpop.f32.mrf.mxu0
    %v1004 = vadd.f32 %v781, %v1003
    %v1005 = vpop.f32.mrf.mxu0
    %v1006 = vadd.f32 %v783, %v1005
    %v1007 = vpop.f32.mrf.mxu0
    %v1008 = vadd.f32 %v785, %v1007
    %v1009 = vpop.f32.mrf.mxu0
    %v1010 = vadd.f32 %v787, %v1009
    %1011 = vmatprep.mubr.bf16.mxu0 %v233
    %1012 = vmatmul.mubr.bf16.gmra.mxu0 %v232
    %v1013 = vpop.f32.mrf.mxu0
    %v1014 = vadd.f32 %v791, %v1013
    %v1015 = vpop.f32.mrf.mxu0
    %v1016 = vadd.f32 %v793, %v1015
    %v1017 = vpop.f32.mrf.mxu0
    %v1018 = vadd.f32 %v795, %v1017
    %v1019 = vpop.f32.mrf.mxu0
    %v1020 = vadd.f32 %v797, %v1019
    %1021 = vmatprep.mubr.bf16.mxu0 %v237
    %1022 = vmatmul.mubr.bf16.gmra.mxu0 %v236
    %v1023 = vpop.f32.mrf.mxu0
    %v1024 = vadd.f32 %v801, %v1023
    %v1025 = vpop.f32.mrf.mxu0
    %v1026 = vadd.f32 %v803, %v1025
    %v1027 = vpop.f32.mrf.mxu0
    %v1028 = vadd.f32 %v805, %v1027
    %v1029 = vpop.f32.mrf.mxu0
    %v1030 = vadd.f32 %v807, %v1029
    %1031 = vmatprep.mubr.bf16.mxu0 %v241
    %1032 = vmatmul.mubr.bf16.gmra.mxu0 %v240
    %v1033 = vpop.f32.mrf.mxu0
    %v1034 = vadd.f32 %v811, %v1033
    %v1035 = vpop.f32.mrf.mxu0
    %v1036 = vadd.f32 %v813, %v1035
    %v1037 = vpop.f32.mrf.mxu0
    %v1038 = vadd.f32 %v815, %v1037
    %v1039 = vpop.f32.mrf.mxu0
    %v1040 = vadd.f32 %v817, %v1039
    %1041 = vmatprep.mubr.bf16.mxu0 %v245
    %1042 = vmatmul.mubr.bf16.gmra.mxu0 %v244
    %v1043 = vpop.f32.mrf.mxu0
    %v1044 = vadd.f32 %v821, %v1043
    %v1045 = vpop.f32.mrf.mxu0
    %v1046 = vadd.f32 %v823, %v1045
    %v1047 = vpop.f32.mrf.mxu0
    %v1048 = vadd.f32 %v825, %v1047
    %v1049 = vpop.f32.mrf.mxu0
    %v1050 = vadd.f32 %v827, %v1049
    %1051 = vmatprep.mubr.bf16.mxu0 %v249
    %1052 = vmatmul.mubr.bf16.gmra.mxu0 %v248
    %v1053 = vpop.f32.mrf.mxu0
    %v1054 = vadd.f32 %v831, %v1053
    %v1055 = vpop.f32.mrf.mxu0
    %v1056 = vadd.f32 %v833, %v1055
    %v1057 = vpop.f32.mrf.mxu0
    %v1058 = vadd.f32 %v835, %v1057
    %v1059 = vpop.f32.mrf.mxu0
    %v1060 = vadd.f32 %v837, %v1059
    %1061 = vmatprep.mubr.bf16.mxu0 %v253
    %1062 = vmatmul.mubr.bf16.gmra.mxu0 %v252
    %v1063 = vpop.f32.mrf.mxu0
    %v1064 = vadd.f32 %v841, %v1063
    %v1065 = vpop.f32.mrf.mxu0
    %v1066 = vadd.f32 %v843, %v1065
    %v1067 = vpop.f32.mrf.mxu0
    %v1068 = vadd.f32 %v845, %v1067
    %v1069 = vpop.f32.mrf.mxu0
    %v1070 = vadd.f32 %v847, %v1069
    %1071 = vmatprep.mubr.bf16.mxu0 %v257
    %1072 = vmatmul.mubr.bf16.gmra.mxu0 %v256
    %v1073 = vpop.f32.mrf.mxu0
    %v1074 = vadd.f32 %v851, %v1073
    %v1075 = vpop.f32.mrf.mxu0
    %v1076 = vadd.f32 %v853, %v1075
    %v1077 = vpop.f32.mrf.mxu0
    %v1078 = vadd.f32 %v855, %v1077
    %v1079 = vpop.f32.mrf.mxu0
    %v1080 = vadd.f32 %v857, %v1079
    %1081 = vmatprep.mubr.bf16.mxu0 %v261
    %1082 = vmatmul.mubr.bf16.gmra.mxu0 %v260
    %v1083 = vpop.f32.mrf.mxu0
    %v1084 = vadd.f32 %v861, %v1083
    %v1085 = vpop.f32.mrf.mxu0
    %v1086 = vadd.f32 %v863, %v1085
    %v1087 = vpop.f32.mrf.mxu0
    %v1088 = vadd.f32 %v865, %v1087
    %v1089 = vpop.f32.mrf.mxu0
    %v1090 = vadd.f32 %v867, %v1089
    %1091 = vmatprep.mubr.bf16.mxu0 %v265
    %1092 = vmatmul.mubr.bf16.gmra.mxu0 %v264
    %v1093 = vpop.f32.mrf.mxu0
    %v1094 = vadd.f32 %v871, %v1093
    %v1095 = vpop.f32.mrf.mxu0
    %v1096 = vadd.f32 %v873, %v1095
    %v1097 = vpop.f32.mrf.mxu0
    %v1098 = vadd.f32 %v875, %v1097
    %v1099 = vpop.f32.mrf.mxu0
    %v1100 = vadd.f32 %v877, %v1099
    %1101 = vmatprep.mubr.bf16.mxu0 %v269
    %1102 = vmatmul.mubr.bf16.gmra.mxu0 %v268
    %v1103 = vpop.f32.mrf.mxu0
    %v1104 = vadd.f32 %v881, %v1103
    %v1105 = vpop.f32.mrf.mxu0
    %v1106 = vadd.f32 %v883, %v1105
    %v1107 = vpop.f32.mrf.mxu0
    %v1108 = vadd.f32 %v885, %v1107
    %v1109 = vpop.f32.mrf.mxu0
    %v1110 = vadd.f32 %v887, %v1109
    %1111 = vdwg.mxu0
    %v1112 = vtanh.pop %v924
    %v1113 = vtanh.pop %v928
    %v1114 = vtanh.pop %v934
    %v1115 = vtanh.pop %v938
    %v1116 = vtanh.pop %v944
    %v1117 = vtanh.pop %v948
    %v1118 = vtanh.pop %v954
    %v1119 = vtanh.pop %v958
    %v1120 = vtanh.pop %v964
    %v1121 = vtanh.pop %v968
    %v1122 = vtanh.pop %v974
    %v1123 = vtanh.pop %v978
    %v1124 = vtanh.pop %v984
    %v1125 = vtanh.pop %v988
    %v1126 = vtanh.pop %v994
    %v1127 = vtanh.pop %v998
    %v1128 = vtanh.pop %v1004
    %v1129 = vtanh.pop %v1008
    %v1130 = vtanh.pop %v1014
    %v1131 = vtanh.pop %v1018
    %v1132 = vtanh.pop %v1024
    %v1133 = vtanh.pop %v1028
    %v1134 = vtanh.pop %v1034
    %v1135 = vtanh.pop %v1038
    %v1136 = vtanh.pop %v1044
    %v1137 = vtanh.pop %v1048
    %v1138 = vtanh.pop %v1054
    %v1139 = vtanh.pop %v1058
    %v1140 = vtanh.pop %v1064
    %v1141 = vtanh.pop %v1068
    %v1142 = vtanh.pop %v1074
    %v1143 = vtanh.pop %v1078
    %v1144 = vtanh.pop %v1084
    %v1145 = vtanh.pop %v1088
    %v1146 = vtanh.pop %v1094
    %v1147 = vtanh.pop %v1098
    %v1148 = vtanh.pop %v1104
    %v1149 = vtanh.pop %v1108
    %v1150 = vxor.u32 %v926, 2147483648
    %v1151 = vxor.u32 %v930, 2147483648
    %v1152 = vxor.u32 %v936, 2147483648
    %v1153 = vxor.u32 %v940, 2147483648
    %v1154 = vxor.u32 %v946, 2147483648
    %v1155 = vxor.u32 %v950, 2147483648
    %v1156 = vxor.u32 %v956, 2147483648
    %v1157 = vxor.u32 %v960, 2147483648
    %v1158 = vxor.u32 %v966, 2147483648
    %v1159 = vxor.u32 %v970, 2147483648
    %v1160 = vxor.u32 %v976, 2147483648
    %v1161 = vxor.u32 %v980, 2147483648
    %v1162 = vxor.u32 %v986, 2147483648
    %v1163 = vxor.u32 %v990, 2147483648
    %v1164 = vxor.u32 %v996, 2147483648
    %v1165 = vxor.u32 %v1000, 2147483648
    %v1166 = vxor.u32 %v1006, 2147483648
    %v1167 = vxor.u32 %v1010, 2147483648
    %v1168 = vxor.u32 %v1016, 2147483648
    %v1169 = vxor.u32 %v1020, 2147483648
    %v1170 = vxor.u32 %v1026, 2147483648
    %v1171 = vxor.u32 %v1030, 2147483648
    %v1172 = vxor.u32 %v1036, 2147483648
    %v1173 = vxor.u32 %v1040, 2147483648
    %v1174 = vxor.u32 %v1046, 2147483648
    %v1175 = vxor.u32 %v1050, 2147483648
    %v1176 = vxor.u32 %v1056, 2147483648
    %v1177 = vxor.u32 %v1060, 2147483648
    %v1178 = vxor.u32 %v1066, 2147483648
    %v1179 = vxor.u32 %v1070, 2147483648
    %v1180 = vxor.u32 %v1076, 2147483648
    %v1181 = vxor.u32 %v1080, 2147483648
    %v1182 = vxor.u32 %v1086, 2147483648
    %v1183 = vxor.u32 %v1090, 2147483648
    %v1184 = vxor.u32 %v1096, 2147483648
    %v1185 = vxor.u32 %v1100, 2147483648
    %v1186 = vxor.u32 %v1106, 2147483648
    %v1187 = vxor.u32 %v1110, 2147483648
    %v1188 = vmul.f32 %v1150, 1.442695
    %v1189 = vpow.pop %v1188
    %v1190 = vmul.f32 %v1151, 1.442695
    %v1191 = vpow.pop %v1190
    %v1192 = vmul.f32 %v1152, 1.442695
    %v1193 = vpow.pop %v1192
    %v1194 = vmul.f32 %v1153, 1.442695
    %v1195 = vpow.pop %v1194
    %v1196 = vmul.f32 %v1154, 1.442695
    %v1197 = vpow.pop %v1196
    %v1198 = vmul.f32 %v1155, 1.442695
    %v1199 = vpow.pop %v1198
    %v1200 = vmul.f32 %v1156, 1.442695
    %v1201 = vpow.pop %v1200
    %v1202 = vmul.f32 %v1157, 1.442695
    %v1203 = vpow.pop %v1202
    %v1204 = vmul.f32 %v1158, 1.442695
    %v1205 = vpow.pop %v1204
    %v1206 = vmul.f32 %v1159, 1.442695
    %v1207 = vpow.pop %v1206
    %v1208 = vmul.f32 %v1160, 1.442695
    %v1209 = vpow.pop %v1208
    %v1210 = vmul.f32 %v1161, 1.442695
    %v1211 = vpow.pop %v1210
    %v1212 = vmul.f32 %v1162, 1.442695
    %v1213 = vpow.pop %v1212
    %v1214 = vmul.f32 %v1163, 1.442695
    %v1215 = vpow.pop %v1214
    %v1216 = vmul.f32 %v1164, 1.442695
    %v1217 = vpow.pop %v1216
    %v1218 = vmul.f32 %v1165, 1.442695
    %v1219 = vpow.pop %v1218
    %v1220 = vmul.f32 %v1166, 1.442695
    %v1221 = vpow.pop %v1220
    %v1222 = vmul.f32 %v1167, 1.442695
    %v1223 = vpow.pop %v1222
    %v1224 = vmul.f32 %v1168, 1.442695
    %v1225 = vpow.pop %v1224
    %v1226 = vmul.f32 %v1169, 1.442695
    %v1227 = vpow.pop %v1226
    %v1228 = vmul.f32 %v1170, 1.442695
    %v1229 = vpow.pop %v1228
    %v1230 = vmul.f32 %v1171, 1.442695
    %v1231 = vpow.pop %v1230
    %v1232 = vmul.f32 %v1172, 1.442695
    %v1233 = vpow.pop %v1232
    %v1234 = vmul.f32 %v1173, 1.442695
    %v1235 = vpow.pop %v1234
    %v1236 = vmul.f32 %v1174, 1.442695
    %v1237 = vpow.pop %v1236
    %v1238 = vmul.f32 %v1175, 1.442695
    %v1239 = vpow.pop %v1238
    %v1240 = vmul.f32 %v1176, 1.442695
    %v1241 = vpow.pop %v1240
    %v1242 = vmul.f32 %v1177, 1.442695
    %v1243 = vpow.pop %v1242
    %v1244 = vmul.f32 %v1178, 1.442695
    %v1245 = vpow.pop %v1244
    %v1246 = vmul.f32 %v1179, 1.442695
    %v1247 = vpow.pop %v1246
    %v1248 = vmul.f32 %v1180, 1.442695
    %v1249 = vpow.pop %v1248
    %v1250 = vmul.f32 %v1181, 1.442695
    %v1251 = vpow.pop %v1250
    %v1252 = vmul.f32 %v1182, 1.442695
    %v1253 = vpow.pop %v1252
    %v1254 = vmul.f32 %v1183, 1.442695
    %v1255 = vpow.pop %v1254
    %v1256 = vmul.f32 %v1184, 1.442695
    %v1257 = vpow.pop %v1256
    %v1258 = vmul.f32 %v1185, 1.442695
    %v1259 = vpow.pop %v1258
    %v1260 = vmul.f32 %v1186, 1.442695
    %v1261 = vpow.pop %v1260
    %v1262 = vmul.f32 %v1187, 1.442695
    %v1263 = vpow.pop %v1262
    %v1264 = vadd.f32 %v1189, 1.0
    %v1265 = vadd.f32 %v1191, 1.0
    %v1266 = vadd.f32 %v1193, 1.0
    %v1267 = vadd.f32 %v1195, 1.0
    %v1268 = vadd.f32 %v1197, 1.0
    %v1269 = vadd.f32 %v1199, 1.0
    %v1270 = vadd.f32 %v1201, 1.0
    %v1271 = vadd.f32 %v1203, 1.0
    %v1272 = vadd.f32 %v1205, 1.0
    %v1273 = vadd.f32 %v1207, 1.0
    %v1274 = vadd.f32 %v1209, 1.0
    %v1275 = vadd.f32 %v1211, 1.0
    %v1276 = vadd.f32 %v1213, 1.0
    %v1277 = vadd.f32 %v1215, 1.0
    %v1278 = vadd.f32 %v1217, 1.0
    %v1279 = vadd.f32 %v1219, 1.0
    %v1280 = vadd.f32 %v1221, 1.0
    %v1281 = vadd.f32 %v1223, 1.0
    %v1282 = vadd.f32 %v1225, 1.0
    %v1283 = vadd.f32 %v1227, 1.0
    %v1284 = vadd.f32 %v1229, 1.0
    %v1285 = vadd.f32 %v1231, 1.0
    %v1286 = vadd.f32 %v1233, 1.0
    %v1287 = vadd.f32 %v1235, 1.0
    %v1288 = vadd.f32 %v1237, 1.0
    %v1289 = vadd.f32 %v1239, 1.0
    %v1290 = vadd.f32 %v1241, 1.0
    %v1291 = vadd.f32 %v1243, 1.0
    %v1292 = vadd.f32 %v1245, 1.0
    %v1293 = vadd.f32 %v1247, 1.0
    %v1294 = vadd.f32 %v1249, 1.0
    %v1295 = vadd.f32 %v1251, 1.0
    %v1296 = vadd.f32 %v1253, 1.0
    %v1297 = vadd.f32 %v1255, 1.0
    %v1298 = vadd.f32 %v1257, 1.0
    %v1299 = vadd.f32 %v1259, 1.0
    %v1300 = vadd.f32 %v1261, 1.0
    %v1301 = vadd.f32 %v1263, 1.0
    %v1302 = vrcp.pop %v1264
    %v1303 = vmul.f32 1.0, %v1302
    %v1304 = vrcp.pop %v1265
    %v1305 = vmul.f32 1.0, %v1304
    %v1306 = vrcp.pop %v1266
    %v1307 = vmul.f32 1.0, %v1306
    %v1308 = vrcp.pop %v1267
    %v1309 = vmul.f32 1.0, %v1308
    %v1310 = vrcp.pop %v1268
    %v1311 = vmul.f32 1.0, %v1310
    %v1312 = vrcp.pop %v1269
    %v1313 = vmul.f32 1.0, %v1312
    %v1314 = vrcp.pop %v1270
    %v1315 = vmul.f32 1.0, %v1314
    %v1316 = vrcp.pop %v1271
    %v1317 = vmul.f32 1.0, %v1316
    %v1318 = vrcp.pop %v1272
    %v1319 = vmul.f32 1.0, %v1318
    %v1320 = vrcp.pop %v1273
    %v1321 = vmul.f32 1.0, %v1320
    %v1322 = vrcp.pop %v1274
    %v1323 = vmul.f32 1.0, %v1322
    %v1324 = vrcp.pop %v1275
    %v1325 = vmul.f32 1.0, %v1324
    %v1326 = vrcp.pop %v1276
    %v1327 = vmul.f32 1.0, %v1326
    %v1328 = vrcp.pop %v1277
    %v1329 = vmul.f32 1.0, %v1328
    %v1330 = vrcp.pop %v1278
    %v1331 = vmul.f32 1.0, %v1330
    %v1332 = vrcp.pop %v1279
    %v1333 = vmul.f32 1.0, %v1332
    %v1334 = vrcp.pop %v1280
    %v1335 = vmul.f32 1.0, %v1334
    %v1336 = vrcp.pop %v1281
    %v1337 = vmul.f32 1.0, %v1336
    %v1338 = vrcp.pop %v1282
    %v1339 = vmul.f32 1.0, %v1338
    %v1340 = vrcp.pop %v1283
    %v1341 = vmul.f32 1.0, %v1340
    %v1342 = vrcp.pop %v1284
    %v1343 = vmul.f32 1.0, %v1342
    %v1344 = vrcp.pop %v1285
    %v1345 = vmul.f32 1.0, %v1344
    %v1346 = vrcp.pop %v1286
    %v1347 = vmul.f32 1.0, %v1346
    %v1348 = vrcp.pop %v1287
    %v1349 = vmul.f32 1.0, %v1348
    %v1350 = vrcp.pop %v1288
    %v1351 = vmul.f32 1.0, %v1350
    %v1352 = vrcp.pop %v1289
    %v1353 = vmul.f32 1.0, %v1352
    %v1354 = vrcp.pop %v1290
    %v1355 = vmul.f32 1.0, %v1354
    %v1356 = vrcp.pop %v1291
    %v1357 = vmul.f32 1.0, %v1356
    %v1358 = vrcp.pop %v1292
    %v1359 = vmul.f32 1.0, %v1358
    %v1360 = vrcp.pop %v1293
    %v1361 = vmul.f32 1.0, %v1360
    %v1362 = vrcp.pop %v1294
    %v1363 = vmul.f32 1.0, %v1362
    %v1364 = vrcp.pop %v1295
    %v1365 = vmul.f32 1.0, %v1364
    %v1366 = vrcp.pop %v1296
    %v1367 = vmul.f32 1.0, %v1366
    %v1368 = vrcp.pop %v1297
    %v1369 = vmul.f32 1.0, %v1368
    %v1370 = vrcp.pop %v1298
    %v1371 = vmul.f32 1.0, %v1370
    %v1372 = vrcp.pop %v1299
    %v1373 = vmul.f32 1.0, %v1372
    %v1374 = vrcp.pop %v1300
    %v1375 = vmul.f32 1.0, %v1374
    %v1376 = vrcp.pop %v1301
    %v1377 = vmul.f32 1.0, %v1376
    %v1378 = vmul.f32 %v1112, %v1303
    %v1379 = vmul.f32 %v1113, %v1305
    %v1380 = vmul.f32 %v1114, %v1307
    %v1381 = vmul.f32 %v1115, %v1309
    %v1382 = vmul.f32 %v1116, %v1311
    %v1383 = vmul.f32 %v1117, %v1313
    %v1384 = vmul.f32 %v1118, %v1315
    %v1385 = vmul.f32 %v1119, %v1317
    %v1386 = vmul.f32 %v1120, %v1319
    %v1387 = vmul.f32 %v1121, %v1321
    %v1388 = vmul.f32 %v1122, %v1323
    %v1389 = vmul.f32 %v1123, %v1325
    %v1390 = vmul.f32 %v1124, %v1327
    %v1391 = vmul.f32 %v1125, %v1329
    %v1392 = vmul.f32 %v1126, %v1331
    %v1393 = vmul.f32 %v1127, %v1333
    %v1394 = vmul.f32 %v1128, %v1335
    %v1395 = vmul.f32 %v1129, %v1337
    %v1396 = vmul.f32 %v1130, %v1339
    %v1397 = vmul.f32 %v1131, %v1341
    %v1398 = vmul.f32 %v1132, %v1343
    %v1399 = vmul.f32 %v1133, %v1345
    %v1400 = vmul.f32 %v1134, %v1347
    %v1401 = vmul.f32 %v1135, %v1349
    %v1402 = vmul.f32 %v1136, %v1351
    %v1403 = vmul.f32 %v1137, %v1353
    %v1404 = vmul.f32 %v1138, %v1355
    %v1405 = vmul.f32 %v1139, %v1357
    %v1406 = vmul.f32 %v1140, %v1359
    %v1407 = vmul.f32 %v1141, %v1361
    %v1408 = vmul.f32 %v1142, %v1363
    %v1409 = vmul.f32 %v1143, %v1365
    %v1410 = vmul.f32 %v1144, %v1367
    %v1411 = vmul.f32 %v1145, %v1369
    %v1412 = vmul.f32 %v1146, %v1371
    %v1413 = vmul.f32 %v1147, %v1373
    %v1414 = vmul.f32 %v1148, %v1375
    %v1415 = vmul.f32 %v1149, %v1377
    %v1416 = vld [vmem:[%s3] sm:$0x1]
    %v1418 = vlaneseq
    %v1419 = vshrl.u32 %v1418, 7
    %v1420 = vsub.s32 0, %v1419
    %v1421 = vrot.slane %v1416, %v1420
    %v1423 = vmul.f32 %v1378, %v1421
    %v1424 = vmul.f32 %v1379, %v1421
    %v1425 = vmul.f32 %v1380, %v1421
    %v1426 = vmul.f32 %v1381, %v1421
    %v1427 = vmul.f32 %v1382, %v1421
    %v1428 = vmul.f32 %v1383, %v1421
    %v1429 = vmul.f32 %v1384, %v1421
    %v1430 = vmul.f32 %v1385, %v1421
    %v1431 = vmul.f32 %v1386, %v1421
    %v1432 = vmul.f32 %v1387, %v1421
    %v1433 = vmul.f32 %v1388, %v1421
    %v1434 = vmul.f32 %v1389, %v1421
    %v1435 = vmul.f32 %v1390, %v1421
    %v1436 = vmul.f32 %v1391, %v1421
    %v1437 = vmul.f32 %v1392, %v1421
    %v1438 = vmul.f32 %v1393, %v1421
    %v1439 = vmul.f32 %v1394, %v1421
    %v1440 = vmul.f32 %v1395, %v1421
    %v1441 = vmul.f32 %v1396, %v1421
    %v1442 = vmul.f32 %v1397, %v1421
    %v1443 = vmul.f32 %v1398, %v1421
    %v1444 = vmul.f32 %v1399, %v1421
    %v1445 = vmul.f32 %v1400, %v1421
    %v1446 = vmul.f32 %v1401, %v1421
    %v1447 = vmul.f32 %v1402, %v1421
    %v1448 = vmul.f32 %v1403, %v1421
    %v1449 = vmul.f32 %v1404, %v1421
    %v1450 = vmul.f32 %v1405, %v1421
    %v1451 = vmul.f32 %v1406, %v1421
    %v1452 = vmul.f32 %v1407, %v1421
    %v1453 = vmul.f32 %v1408, %v1421
    %v1454 = vmul.f32 %v1409, %v1421
    %v1455 = vmul.f32 %v1410, %v1421
    %v1456 = vmul.f32 %v1411, %v1421
    %v1457 = vmul.f32 %v1412, %v1421
    %v1458 = vmul.f32 %v1413, %v1421
    %v1459 = vmul.f32 %v1414, %v1421
    %v1460 = vmul.f32 %v1415, %v1421
    %1461 = vadd.xlane.f32.xlu0 %v1423
    %v1462 = vpop.xlane.xlu0 %1461
    %1463 = vadd.xlane.f32.xlu0 %v1424
    %v1464 = vpop.xlane.xlu0 %1463
    %1465 = vadd.xlane.f32.xlu0 %v1425
    %v1466 = vpop.xlane.xlu0 %1465
    %1467 = vadd.xlane.f32.xlu0 %v1426
    %v1468 = vpop.xlane.xlu0 %1467
    %1469 = vadd.xlane.f32.xlu0 %v1427
    %v1470 = vpop.xlane.xlu0 %1469
    %1471 = vadd.xlane.f32.xlu0 %v1428
    %v1472 = vpop.xlane.xlu0 %1471
    %1473 = vadd.xlane.f32.xlu0 %v1429
    %v1474 = vpop.xlane.xlu0 %1473
    %1475 = vadd.xlane.f32.xlu0 %v1430
    %v1476 = vpop.xlane.xlu0 %1475
    %1477 = vadd.xlane.f32.xlu0 %v1431
    %v1478 = vpop.xlane.xlu0 %1477
    %1479 = vadd.xlane.f32.xlu0 %v1432
    %v1480 = vpop.xlane.xlu0 %1479
    %1481 = vadd.xlane.f32.xlu0 %v1433
    %v1482 = vpop.xlane.xlu0 %1481
    %1483 = vadd.xlane.f32.xlu0 %v1434
    %v1484 = vpop.xlane.xlu0 %1483
    %1485 = vadd.xlane.f32.xlu0 %v1435
    %v1486 = vpop.xlane.xlu0 %1485
    %1487 = vadd.xlane.f32.xlu0 %v1436
    %v1488 = vpop.xlane.xlu0 %1487
    %1489 = vadd.xlane.f32.xlu0 %v1437
    %v1490 = vpop.xlane.xlu0 %1489
    %1491 = vadd.xlane.f32.xlu0 %v1438
    %v1492 = vpop.xlane.xlu0 %1491
    %1493 = vadd.xlane.f32.xlu0 %v1439
    %v1494 = vpop.xlane.xlu0 %1493
    %1495 = vadd.xlane.f32.xlu0 %v1440
    %v1496 = vpop.xlane.xlu0 %1495
    %1497 = vadd.xlane.f32.xlu0 %v1441
    %v1498 = vpop.xlane.xlu0 %1497
    %1499 = vadd.xlane.f32.xlu0 %v1442
    %v1500 = vpop.xlane.xlu0 %1499
    %1501 = vadd.xlane.f32.xlu0 %v1443
    %v1502 = vpop.xlane.xlu0 %1501
    %1503 = vadd.xlane.f32.xlu0 %v1444
    %v1504 = vpop.xlane.xlu0 %1503
    %1505 = vadd.xlane.f32.xlu0 %v1445
    %v1506 = vpop.xlane.xlu0 %1505
    %1507 = vadd.xlane.f32.xlu0 %v1446
    %v1508 = vpop.xlane.xlu0 %1507
    %1509 = vadd.xlane.f32.xlu0 %v1447
    %v1510 = vpop.xlane.xlu0 %1509
    %1511 = vadd.xlane.f32.xlu0 %v1448
    %v1512 = vpop.xlane.xlu0 %1511
    %1513 = vadd.xlane.f32.xlu0 %v1449
    %v1514 = vpop.xlane.xlu0 %1513
    %1515 = vadd.xlane.f32.xlu0 %v1450
    %v1516 = vpop.xlane.xlu0 %1515
    %1517 = vadd.xlane.f32.xlu0 %v1451
    %v1518 = vpop.xlane.xlu0 %1517
    %1519 = vadd.xlane.f32.xlu0 %v1452
    %v1520 = vpop.xlane.xlu0 %1519
    %1521 = vadd.xlane.f32.xlu0 %v1453
    %v1522 = vpop.xlane.xlu0 %1521
    %1523 = vadd.xlane.f32.xlu0 %v1454
    %v1524 = vpop.xlane.xlu0 %1523
    %1525 = vadd.xlane.f32.xlu0 %v1455
    %v1526 = vpop.xlane.xlu0 %1525
    %1527 = vadd.xlane.f32.xlu0 %v1456
    %v1528 = vpop.xlane.xlu0 %1527
    %1529 = vadd.xlane.f32.xlu0 %v1457
    %v1530 = vpop.xlane.xlu0 %1529
    %1531 = vadd.xlane.f32.xlu0 %v1458
    %v1532 = vpop.xlane.xlu0 %1531
    %1533 = vadd.xlane.f32.xlu0 %v1459
    %v1534 = vpop.xlane.xlu0 %1533
    %1535 = vadd.xlane.f32.xlu0 %v1460
    %v1536 = vpop.xlane.xlu0 %1535
    %v1537 = vld [vmem:[#allocation5] sm:$0x1]
    %v1539 = vlaneseq
    %v1540 = vshrl.u32 %v1539, 7
    %v1541 = vsub.s32 0, %v1540
    %v1542 = vrot.slane %v1537, %v1541
    %v1544 = vadd.f32 %v1462, %v1542
    %v1545 = vadd.f32 %v1464, %v1542
    %v1546 = vadd.f32 %v1466, %v1542
    %v1547 = vadd.f32 %v1468, %v1542
    %v1548 = vadd.f32 %v1470, %v1542
    %v1549 = vadd.f32 %v1472, %v1542
    %v1550 = vadd.f32 %v1474, %v1542
    %v1551 = vadd.f32 %v1476, %v1542
    %v1552 = vadd.f32 %v1478, %v1542
    %v1553 = vadd.f32 %v1480, %v1542
    %v1554 = vadd.f32 %v1482, %v1542
    %v1555 = vadd.f32 %v1484, %v1542
    %v1556 = vadd.f32 %v1486, %v1542
    %v1557 = vadd.f32 %v1488, %v1542
    %v1558 = vadd.f32 %v1490, %v1542
    %v1559 = vadd.f32 %v1492, %v1542
    %v1560 = vadd.f32 %v1494, %v1542
    %v1561 = vadd.f32 %v1496, %v1542
    %v1562 = vadd.f32 %v1498, %v1542
    %v1563 = vadd.f32 %v1500, %v1542
    %v1564 = vadd.f32 %v1502, %v1542
    %v1565 = vadd.f32 %v1504, %v1542
    %v1566 = vadd.f32 %v1506, %v1542
    %v1567 = vadd.f32 %v1508, %v1542
    %v1568 = vadd.f32 %v1510, %v1542
    %v1569 = vadd.f32 %v1512, %v1542
    %v1570 = vadd.f32 %v1514, %v1542
    %v1571 = vadd.f32 %v1516, %v1542
    %v1572 = vadd.f32 %v1518, %v1542
    %v1573 = vadd.f32 %v1520, %v1542
    %v1574 = vadd.f32 %v1522, %v1542
    %v1575 = vadd.f32 %v1524, %v1542
    %v1576 = vadd.f32 %v1526, %v1542
    %v1577 = vadd.f32 %v1528, %v1542
    %v1578 = vadd.f32 %v1530, %v1542
    %v1579 = vadd.f32 %v1532, %v1542
    %v1580 = vadd.f32 %v1534, %v1542
    %v1581 = vadd.f32 %v1536, %v1542
    %v1582 = vlaneseq
    %v1583 = vshrl.u32 %v1582, 7
    %v1584 = vadd.s32 %v1583, 8
    %v1585 = vadd.s32 %v1583, 16
    %v1586 = vadd.s32 %v1583, 24
    %v1587 = vadd.s32 %v1583, 32
    %v1588 = vadd.s32 %v1583, 40
    %v1589 = vadd.s32 %v1583, 48
    %v1590 = vadd.s32 %v1583, 56
    %v1591 = vadd.s32 %v1583, 64
    %v1592 = vadd.s32 %v1583, 72
    %v1593 = vadd.s32 %v1583, 80
    %v1594 = vadd.s32 %v1583, 88
    %v1595 = vadd.s32 %v1583, 96
    %v1596 = vadd.s32 %v1583, 104
    %v1597 = vadd.s32 %v1583, 112
    %v1598 = vadd.s32 %v1583, 120
    %v1599 = vadd.s32 %v1583, 128
    %v1600 = vadd.s32 %v1583, 136
    %v1601 = vadd.s32 %v1583, 144
    %v1602 = vadd.s32 %v1583, 152
    %v1603 = vadd.s32 %v1583, 160
    %v1604 = vadd.s32 %v1583, 168
    %v1605 = vadd.s32 %v1583, 176
    %v1606 = vadd.s32 %v1583, 184
    %v1607 = vadd.s32 %v1583, 192
    %v1608 = vadd.s32 %v1583, 200
    %v1609 = vadd.s32 %v1583, 208
    %v1610 = vadd.s32 %v1583, 216
    %v1611 = vadd.s32 %v1583, 224
    %v1612 = vadd.s32 %v1583, 232
    %v1613 = vadd.s32 %v1583, 240
    %v1614 = vadd.s32 %v1583, 248
    %v1615 = vadd.s32 %v1583, 256
    %v1616 = vadd.s32 %v1583, 264
    %v1617 = vadd.s32 %v1583, 272
    %v1618 = vadd.s32 %v1583, 280
    %v1619 = vadd.s32 %v1583, 288
    %v1620 = vadd.s32 %v1583, 296
    %vm1621 = vcmp.lt.s32.totalorder %v1583, 300
    %vm1622 = vcmp.lt.s32.totalorder %v1584, 300
    %vm1623 = vcmp.lt.s32.totalorder %v1585, 300
    %vm1624 = vcmp.lt.s32.totalorder %v1586, 300
    %vm1625 = vcmp.lt.s32.totalorder %v1587, 300
    %vm1626 = vcmp.lt.s32.totalorder %v1588, 300
    %vm1627 = vcmp.lt.s32.totalorder %v1589, 300
    %vm1628 = vcmp.lt.s32.totalorder %v1590, 300
    %vm1629 = vcmp.lt.s32.totalorder %v1591, 300
    %vm1630 = vcmp.lt.s32.totalorder %v1592, 300
    %vm1631 = vcmp.lt.s32.totalorder %v1593, 300
    %vm1632 = vcmp.lt.s32.totalorder %v1594, 300
    %vm1633 = vcmp.lt.s32.totalorder %v1595, 300
    %vm1634 = vcmp.lt.s32.totalorder %v1596, 300
    %vm1635 = vcmp.lt.s32.totalorder %v1597, 300
    %vm1636 = vcmp.lt.s32.totalorder %v1598, 300
    %vm1637 = vcmp.lt.s32.totalorder %v1599, 300
    %vm1638 = vcmp.lt.s32.totalorder %v1600, 300
    %vm1639 = vcmp.lt.s32.totalorder %v1601, 300
    %vm1640 = vcmp.lt.s32.totalorder %v1602, 300
    %vm1641 = vcmp.lt.s32.totalorder %v1603, 300
    %vm1642 = vcmp.lt.s32.totalorder %v1604, 300
    %vm1643 = vcmp.lt.s32.totalorder %v1605, 300
    %vm1644 = vcmp.lt.s32.totalorder %v1606, 300
    %vm1645 = vcmp.lt.s32.totalorder %v1607, 300
    %vm1646 = vcmp.lt.s32.totalorder %v1608, 300
    %vm1647 = vcmp.lt.s32.totalorder %v1609, 300
    %vm1648 = vcmp.lt.s32.totalorder %v1610, 300
    %vm1649 = vcmp.lt.s32.totalorder %v1611, 300
    %vm1650 = vcmp.lt.s32.totalorder %v1612, 300
    %vm1651 = vcmp.lt.s32.totalorder %v1613, 300
    %vm1652 = vcmp.lt.s32.totalorder %v1614, 300
    %vm1653 = vcmp.lt.s32.totalorder %v1615, 300
    %vm1654 = vcmp.lt.s32.totalorder %v1616, 300
    %vm1655 = vcmp.lt.s32.totalorder %v1617, 300
    %vm1656 = vcmp.lt.s32.totalorder %v1618, 300
    %vm1657 = vcmp.lt.s32.totalorder %v1619, 300
    %vm1658 = vcmp.lt.s32.totalorder %v1620, 300
    %v1659 = vsel %vm1621, 1, 0
    %v1660 = vsel %vm1622, 1, 0
    %v1661 = vsel %vm1623, 1, 0
    %v1662 = vsel %vm1624, 1, 0
    %v1663 = vsel %vm1625, 1, 0
    %v1664 = vsel %vm1626, 1, 0
    %v1665 = vsel %vm1627, 1, 0
    %v1666 = vsel %vm1628, 1, 0
    %v1667 = vsel %vm1629, 1, 0
    %v1668 = vsel %vm1630, 1, 0
    %v1669 = vsel %vm1631, 1, 0
    %v1670 = vsel %vm1632, 1, 0
    %v1671 = vsel %vm1633, 1, 0
    %v1672 = vsel %vm1634, 1, 0
    %v1673 = vsel %vm1635, 1, 0
    %v1674 = vsel %vm1636, 1, 0
    %v1675 = vsel %vm1637, 1, 0
    %v1676 = vsel %vm1638, 1, 0
    %v1677 = vsel %vm1639, 1, 0
    %v1678 = vsel %vm1640, 1, 0
    %v1679 = vsel %vm1641, 1, 0
    %v1680 = vsel %vm1642, 1, 0
    %v1681 = vsel %vm1643, 1, 0
    %v1682 = vsel %vm1644, 1, 0
    %v1683 = vsel %vm1645, 1, 0
    %v1684 = vsel %vm1646, 1, 0
    %v1685 = vsel %vm1647, 1, 0
    %v1686 = vsel %vm1648, 1, 0
    %v1687 = vsel %vm1649, 1, 0
    %v1688 = vsel %vm1650, 1, 0
    %v1689 = vsel %vm1651, 1, 0
    %v1690 = vsel %vm1652, 1, 0
    %v1691 = vsel %vm1653, 1, 0
    %v1692 = vsel %vm1654, 1, 0
    %v1693 = vsel %vm1655, 1, 0
    %v1694 = vsel %vm1656, 1, 0
    %v1695 = vsel %vm1657, 1, 0
    %v1696 = vsel %vm1658, 1, 0
    %vm1697 = vcmp.eq.s32.totalorder %v1659, 1
    %vm1698 = vcmp.eq.s32.totalorder %v1660, 1
    %vm1699 = vcmp.eq.s32.totalorder %v1661, 1
    %vm1700 = vcmp.eq.s32.totalorder %v1662, 1
    %vm1701 = vcmp.eq.s32.totalorder %v1663, 1
    %vm1702 = vcmp.eq.s32.totalorder %v1664, 1
    %vm1703 = vcmp.eq.s32.totalorder %v1665, 1
    %vm1704 = vcmp.eq.s32.totalorder %v1666, 1
    %vm1705 = vcmp.eq.s32.totalorder %v1667, 1
    %vm1706 = vcmp.eq.s32.totalorder %v1668, 1
    %vm1707 = vcmp.eq.s32.totalorder %v1669, 1
    %vm1708 = vcmp.eq.s32.totalorder %v1670, 1
    %vm1709 = vcmp.eq.s32.totalorder %v1671, 1
    %vm1710 = vcmp.eq.s32.totalorder %v1672, 1
    %vm1711 = vcmp.eq.s32.totalorder %v1673, 1
    %vm1712 = vcmp.eq.s32.totalorder %v1674, 1
    %vm1713 = vcmp.eq.s32.totalorder %v1675, 1
    %vm1714 = vcmp.eq.s32.totalorder %v1676, 1
    %vm1715 = vcmp.eq.s32.totalorder %v1677, 1
    %vm1716 = vcmp.eq.s32.totalorder %v1678, 1
    %vm1717 = vcmp.eq.s32.totalorder %v1679, 1
    %vm1718 = vcmp.eq.s32.totalorder %v1680, 1
    %vm1719 = vcmp.eq.s32.totalorder %v1681, 1
    %vm1720 = vcmp.eq.s32.totalorder %v1682, 1
    %vm1721 = vcmp.eq.s32.totalorder %v1683, 1
    %vm1722 = vcmp.eq.s32.totalorder %v1684, 1
    %vm1723 = vcmp.eq.s32.totalorder %v1685, 1
    %vm1724 = vcmp.eq.s32.totalorder %v1686, 1
    %vm1725 = vcmp.eq.s32.totalorder %v1687, 1
    %vm1726 = vcmp.eq.s32.totalorder %v1688, 1
    %vm1727 = vcmp.eq.s32.totalorder %v1689, 1
    %vm1728 = vcmp.eq.s32.totalorder %v1690, 1
    %vm1729 = vcmp.eq.s32.totalorder %v1691, 1
    %vm1730 = vcmp.eq.s32.totalorder %v1692, 1
    %vm1731 = vcmp.eq.s32.totalorder %v1693, 1
    %vm1732 = vcmp.eq.s32.totalorder %v1694, 1
    %vm1733 = vcmp.eq.s32.totalorder %v1695, 1
    %vm1734 = vcmp.eq.s32.totalorder %v1696, 1
    %v1735 = vsel %vm1697, %v42, 0.0
    %v1736 = vsel %vm1697, %v43, 0.0
    %v1737 = vsel %vm1697, %v44, 0.0
    %v1738 = vsel %vm1697, %v45, 0.0
    %v1739 = vsel %vm1698, %v46, 0.0
    %v1740 = vsel %vm1698, %v47, 0.0
    %v1741 = vsel %vm1698, %v48, 0.0
    %v1742 = vsel %vm1698, %v49, 0.0
    %v1743 = vsel %vm1699, %v50, 0.0
    %v1744 = vsel %vm1699, %v51, 0.0
    %v1745 = vsel %vm1699, %v52, 0.0
    %v1746 = vsel %vm1699, %v53, 0.0
    %v1747 = vsel %vm1700, %v54, 0.0
    %v1748 = vsel %vm1700, %v55, 0.0
    %v1749 = vsel %vm1700, %v56, 0.0
    %v1750 = vsel %vm1700, %v57, 0.0
    %v1751 = vsel %vm1701, %v58, 0.0
    %v1752 = vsel %vm1701, %v59, 0.0
    %v1753 = vsel %vm1701, %v60, 0.0
    %v1754 = vsel %vm1701, %v61, 0.0
    %v1755 = vsel %vm1702, %v62, 0.0
    %v1756 = vsel %vm1702, %v63, 0.0
    %v1757 = vsel %vm1702, %v64, 0.0
    %v1758 = vsel %vm1702, %v65, 0.0
    %v1759 = vsel %vm1703, %v66, 0.0
    %v1760 = vsel %vm1703, %v67, 0.0
    %v1761 = vsel %vm1703, %v68, 0.0
    %v1762 = vsel %vm1703, %v69, 0.0
    %v1763 = vsel %vm1704, %v70, 0.0
    %v1764 = vsel %vm1704, %v71, 0.0
    %v1765 = vsel %vm1704, %v72, 0.0
    %v1766 = vsel %vm1704, %v73, 0.0
    %v1767 = vsel %vm1705, %v74, 0.0
    %v1768 = vsel %vm1705, %v75, 0.0
    %v1769 = vsel %vm1705, %v76, 0.0
    %v1770 = vsel %vm1705, %v77, 0.0
    %v1771 = vsel %vm1706, %v78, 0.0
    %v1772 = vsel %vm1706, %v79, 0.0
    %v1773 = vsel %vm1706, %v80, 0.0
    %v1774 = vsel %vm1706, %v81, 0.0
    %v1775 = vsel %vm1707, %v82, 0.0
    %v1776 = vsel %vm1707, %v83, 0.0
    %v1777 = vsel %vm1707, %v84, 0.0
    %v1778 = vsel %vm1707, %v85, 0.0
    %v1779 = vsel %vm1708, %v86, 0.0
    %v1780 = vsel %vm1708, %v87, 0.0
    %v1781 = vsel %vm1708, %v88, 0.0
    %v1782 = vsel %vm1708, %v89, 0.0
    %v1783 = vsel %vm1709, %v90, 0.0
    %v1784 = vsel %vm1709, %v91, 0.0
    %v1785 = vsel %vm1709, %v92, 0.0
    %v1786 = vsel %vm1709, %v93, 0.0
    %v1787 = vsel %vm1710, %v94, 0.0
    %v1788 = vsel %vm1710, %v95, 0.0
    %v1789 = vsel %vm1710, %v96, 0.0
    %v1790 = vsel %vm1710, %v97, 0.0
    %v1791 = vsel %vm1711, %v98, 0.0
    %v1792 = vsel %vm1711, %v99, 0.0
    %v1793 = vsel %vm1711, %v100, 0.0
    %v1794 = vsel %vm1711, %v101, 0.0
    %v1795 = vsel %vm1712, %v102, 0.0
    %v1796 = vsel %vm1712, %v103, 0.0
    %v1797 = vsel %vm1712, %v104, 0.0
    %v1798 = vsel %vm1712, %v105, 0.0
    %v1799 = vsel %vm1713, %v106, 0.0
    %v1800 = vsel %vm1713, %v107, 0.0
    %v1801 = vsel %vm1713, %v108, 0.0
    %v1802 = vsel %vm1713, %v109, 0.0
    %v1803 = vsel %vm1714, %v110, 0.0
    %v1804 = vsel %vm1714, %v111, 0.0
    %v1805 = vsel %vm1714, %v112, 0.0
    %v1806 = vsel %vm1714, %v113, 0.0
    %v1807 = vsel %vm1715, %v114, 0.0
    %v1808 = vsel %vm1715, %v115, 0.0
    %v1809 = vsel %vm1715, %v116, 0.0
    %v1810 = vsel %vm1715, %v117, 0.0
    %v1811 = vsel %vm1716, %v118, 0.0
    %v1812 = vsel %vm1716, %v119, 0.0
    %v1813 = vsel %vm1716, %v120, 0.0
    %v1814 = vsel %vm1716, %v121, 0.0
    %v1815 = vsel %vm1717, %v122, 0.0
    %v1816 = vsel %vm1717, %v123, 0.0
    %v1817 = vsel %vm1717, %v124, 0.0
    %v1818 = vsel %vm1717, %v125, 0.0
    %v1819 = vsel %vm1718, %v126, 0.0
    %v1820 = vsel %vm1718, %v127, 0.0
    %v1821 = vsel %vm1718, %v128, 0.0
    %v1822 = vsel %vm1718, %v129, 0.0
    %v1823 = vsel %vm1719, %v130, 0.0
    %v1824 = vsel %vm1719, %v131, 0.0
    %v1825 = vsel %vm1719, %v132, 0.0
    %v1826 = vsel %vm1719, %v133, 0.0
    %v1827 = vsel %vm1720, %v134, 0.0
    %v1828 = vsel %vm1720, %v135, 0.0
    %v1829 = vsel %vm1720, %v136, 0.0
    %v1830 = vsel %vm1720, %v137, 0.0
    %v1831 = vsel %vm1721, %v138, 0.0
    %v1832 = vsel %vm1721, %v139, 0.0
    %v1833 = vsel %vm1721, %v140, 0.0
    %v1834 = vsel %vm1721, %v141, 0.0
    %v1835 = vsel %vm1722, %v142, 0.0
    %v1836 = vsel %vm1722, %v143, 0.0
    %v1837 = vsel %vm1722, %v144, 0.0
    %v1838 = vsel %vm1722, %v145, 0.0
    %v1839 = vsel %vm1723, %v146, 0.0
    %v1840 = vsel %vm1723, %v147, 0.0
    %v1841 = vsel %vm1723, %v148, 0.0
    %v1842 = vsel %vm1723, %v149, 0.0
    %v1843 = vsel %vm1724, %v150, 0.0
    %v1844 = vsel %vm1724, %v151, 0.0
    %v1845 = vsel %vm1724, %v152, 0.0
    %v1846 = vsel %vm1724, %v153, 0.0
    %v1847 = vsel %vm1725, %v154, 0.0
    %v1848 = vsel %vm1725, %v155, 0.0
    %v1849 = vsel %vm1725, %v156, 0.0
    %v1850 = vsel %vm1725, %v157, 0.0
    %v1851 = vsel %vm1726, %v158, 0.0
    %v1852 = vsel %vm1726, %v159, 0.0
    %v1853 = vsel %vm1726, %v160, 0.0
    %v1854 = vsel %vm1726, %v161, 0.0
    %v1855 = vsel %vm1727, %v162, 0.0
    %v1856 = vsel %vm1727, %v163, 0.0
    %v1857 = vsel %vm1727, %v164, 0.0
    %v1858 = vsel %vm1727, %v165, 0.0
    %v1859 = vsel %vm1728, %v166, 0.0
    %v1860 = vsel %vm1728, %v167, 0.0
    %v1861 = vsel %vm1728, %v168, 0.0
    %v1862 = vsel %vm1728, %v169, 0.0
    %v1863 = vsel %vm1729, %v170, 0.0
    %v1864 = vsel %vm1729, %v171, 0.0
    %v1865 = vsel %vm1729, %v172, 0.0
    %v1866 = vsel %vm1729, %v173, 0.0
    %v1867 = vsel %vm1730, %v174, 0.0
    %v1868 = vsel %vm1730, %v175, 0.0
    %v1869 = vsel %vm1730, %v176, 0.0
    %v1870 = vsel %vm1730, %v177, 0.0
    %v1871 = vsel %vm1731, %v178, 0.0
    %v1872 = vsel %vm1731, %v179, 0.0
    %v1873 = vsel %vm1731, %v180, 0.0
    %v1874 = vsel %vm1731, %v181, 0.0
    %v1875 = vsel %vm1732, %v182, 0.0
    %v1876 = vsel %vm1732, %v183, 0.0
    %v1877 = vsel %vm1732, %v184, 0.0
    %v1878 = vsel %vm1732, %v185, 0.0
    %v1879 = vsel %vm1733, %v186, 0.0
    %v1880 = vsel %vm1733, %v187, 0.0
    %v1881 = vsel %vm1733, %v188, 0.0
    %v1882 = vsel %vm1733, %v189, 0.0
    %v1883 = vsel %vm1734, %v190, 0.0
    %v1884 = vsel %vm1734, %v191, 0.0
    %v1885 = vsel %vm1734, %v192, 0.0
    %v1886 = vsel %vm1734, %v193, 0.0
    %v1887 = vsel %vm1621, %v1544, -inf
    %v1888 = vsel %vm1622, %v1545, -inf
    %v1889 = vsel %vm1623, %v1546, -inf
    %v1890 = vsel %vm1624, %v1547, -inf
    %v1891 = vsel %vm1625, %v1548, -inf
    %v1892 = vsel %vm1626, %v1549, -inf
    %v1893 = vsel %vm1627, %v1550, -inf
    %v1894 = vsel %vm1628, %v1551, -inf
    %v1895 = vsel %vm1629, %v1552, -inf
    %v1896 = vsel %vm1630, %v1553, -inf
    %v1897 = vsel %vm1631, %v1554, -inf
    %v1898 = vsel %vm1632, %v1555, -inf
    %v1899 = vsel %vm1633, %v1556, -inf
    %v1900 = vsel %vm1634, %v1557, -inf
    %v1901 = vsel %vm1635, %v1558, -inf
    %v1902 = vsel %vm1636, %v1559, -inf
    %v1903 = vsel %vm1637, %v1560, -inf
    %v1904 = vsel %vm1638, %v1561, -inf
    %v1905 = vsel %vm1639, %v1562, -inf
    %v1906 = vsel %vm1640, %v1563, -inf
    %v1907 = vsel %vm1641, %v1564, -inf
    %v1908 = vsel %vm1642, %v1565, -inf
    %v1909 = vsel %vm1643, %v1566, -inf
    %v1910 = vsel %vm1644, %v1567, -inf
    %v1911 = vsel %vm1645, %v1568, -inf
    %v1912 = vsel %vm1646, %v1569, -inf
    %v1913 = vsel %vm1647, %v1570, -inf
    %v1914 = vsel %vm1648, %v1571, -inf
    %v1915 = vsel %vm1649, %v1572, -inf
    %v1916 = vsel %vm1650, %v1573, -inf
    %v1917 = vsel %vm1651, %v1574, -inf
    %v1918 = vsel %vm1652, %v1575, -inf
    %v1919 = vsel %vm1653, %v1576, -inf
    %v1920 = vsel %vm1654, %v1577, -inf
    %v1921 = vsel %vm1655, %v1578, -inf
    %v1922 = vsel %vm1656, %v1579, -inf
    %v1923 = vsel %vm1657, %v1580, -inf
    %v1924 = vsel %vm1658, %v1581, -inf
    %v1925 = vld [vmem:[#allocation2] sm:$0x1]
    %vm1926 = vcmask 7168
    %v1927 = vsel %vm1926, %v1887, -inf
    %v1928 = vsel %vm1926, %v1888, -inf
    %v1929 = vsel %vm1926, %v1889, -inf
    %v1930 = vsel %vm1926, %v1890, -inf
    %v1931 = vsel %vm1926, %v1891, -inf
    %v1932 = vmax.f32 %v1927, %v1931
    %v1933 = vsel %vm1926, %v1892, -inf
    %v1934 = vmax.f32 %v1928, %v1933
    %v1935 = vsel %vm1926, %v1893, -inf
    %v1936 = vmax.f32 %v1929, %v1935
    %v1937 = vsel %vm1926, %v1894, -inf
    %v1938 = vmax.f32 %v1930, %v1937
    %v1939 = vsel %vm1926, %v1895, -inf
    %v1940 = vmax.f32 %v1932, %v1939
    %v1941 = vsel %vm1926, %v1896, -inf
    %v1942 = vmax.f32 %v1934, %v1941
    %v1943 = vsel %vm1926, %v1897, -inf
    %v1944 = vmax.f32 %v1936, %v1943
    %v1945 = vsel %vm1926, %v1898, -inf
    %v1946 = vmax.f32 %v1938, %v1945
    %v1947 = vsel %vm1926, %v1899, -inf
    %v1948 = vmax.f32 %v1940, %v1947
    %v1949 = vsel %vm1926, %v1900, -inf
    %v1950 = vmax.f32 %v1942, %v1949
    %v1951 = vsel %vm1926, %v1901, -inf
    %v1952 = vmax.f32 %v1944, %v1951
    %v1953 = vsel %vm1926, %v1902, -inf
    %v1954 = vmax.f32 %v1946, %v1953
    %v1955 = vsel %vm1926, %v1903, -inf
    %v1956 = vmax.f32 %v1948, %v1955
    %v1957 = vsel %vm1926, %v1904, -inf
    %v1958 = vmax.f32 %v1950, %v1957
    %v1959 = vsel %vm1926, %v1905, -inf
    %v1960 = vmax.f32 %v1952, %v1959
    %v1961 = vsel %vm1926, %v1906, -inf
    %v1962 = vmax.f32 %v1954, %v1961
    %v1963 = vsel %vm1926, %v1907, -inf
    %v1964 = vmax.f32 %v1956, %v1963
    %v1965 = vsel %vm1926, %v1908, -inf
    %v1966 = vmax.f32 %v1958, %v1965
    %v1967 = vsel %vm1926, %v1909, -inf
    %v1968 = vmax.f32 %v1960, %v1967
    %v1969 = vsel %vm1926, %v1910, -inf
    %v1970 = vmax.f32 %v1962, %v1969
    %v1971 = vsel %vm1926, %v1911, -inf
    %v1972 = vmax.f32 %v1964, %v1971
    %v1973 = vsel %vm1926, %v1912, -inf
    %v1974 = vmax.f32 %v1966, %v1973
    %v1975 = vsel %vm1926, %v1913, -inf
    %v1976 = vmax.f32 %v1968, %v1975
    %v1977 = vsel %vm1926, %v1914, -inf
    %v1978 = vmax.f32 %v1970, %v1977
    %v1979 = vsel %vm1926, %v1915, -inf
    %v1980 = vmax.f32 %v1972, %v1979
    %v1981 = vsel %vm1926, %v1916, -inf
    %v1982 = vmax.f32 %v1974, %v1981
    %v1983 = vsel %vm1926, %v1917, -inf
    %v1984 = vmax.f32 %v1976, %v1983
    %v1985 = vsel %vm1926, %v1918, -inf
    %v1986 = vmax.f32 %v1978, %v1985
    %v1987 = vsel %vm1926, %v1919, -inf
    %v1988 = vmax.f32 %v1980, %v1987
    %v1989 = vsel %vm1926, %v1920, -inf
    %v1990 = vmax.f32 %v1982, %v1989
    %v1991 = vsel %vm1926, %v1921, -inf
    %v1992 = vmax.f32 %v1984, %v1991
    %v1993 = vsel %vm1926, %v1922, -inf
    %v1994 = vmax.f32 %v1986, %v1993
    %v1995 = vsel %vm1926, %v1923, -inf
    %v1996 = vmax.f32 %v1988, %v1995
    %v1997 = vsel %vm1926, %v1924, -inf
    %v1998 = vmax.f32 %v1990, %v1997
    %v1999 = vmax.f32 %v1996, %v1998
    %v2000 = vmax.f32 %v1992, %v1994
    %v2001 = vmax.f32 %v1999, %v2000
    %v2002 = vrot.slane %v2001, 4
    %v2003 = vmax.f32 %v2001, %v2002
    %v2004 = vrot.slane %v2003, 2
    %v2005 = vmax.f32 %v2003, %v2004
    %v2006 = vrot.slane %v2005, 1
    %v2007 = vmax.f32 %v2005, %v2006
    %v2008 = vmax.f32 %v1925, %v2007
    %v2009 = vsub.f32 %v1925, %v2008
    %v2010 = vmul.f32 %v2009, 1.442695
    %v2011 = vpow.pop %v2010
    %v2013 = vlaneseq
    %v2014 = vshrl.u32 %v2013, 7
    %v2015 = vsub.s32 0, %v2014
    %v2016 = vrot.slane %v2008, %v2015
    %v2018 = vsub.f32 %v1887, %v2016
    %v2019 = vsub.f32 %v1888, %v2016
    %v2020 = vsub.f32 %v1889, %v2016
    %v2021 = vsub.f32 %v1890, %v2016
    %v2022 = vsub.f32 %v1891, %v2016
    %v2023 = vsub.f32 %v1892, %v2016
    %v2024 = vsub.f32 %v1893, %v2016
    %v2025 = vsub.f32 %v1894, %v2016
    %v2026 = vsub.f32 %v1895, %v2016
    %v2027 = vsub.f32 %v1896, %v2016
    %v2028 = vsub.f32 %v1897, %v2016
    %v2029 = vsub.f32 %v1898, %v2016
    %v2030 = vsub.f32 %v1899, %v2016
    %v2031 = vsub.f32 %v1900, %v2016
    %v2032 = vsub.f32 %v1901, %v2016
    %v2033 = vsub.f32 %v1902, %v2016
    %v2034 = vsub.f32 %v1903, %v2016
    %v2035 = vsub.f32 %v1904, %v2016
    %v2036 = vsub.f32 %v1905, %v2016
    %v2037 = vsub.f32 %v1906, %v2016
    %v2038 = vsub.f32 %v1907, %v2016
    %v2039 = vsub.f32 %v1908, %v2016
    %v2040 = vsub.f32 %v1909, %v2016
    %v2041 = vsub.f32 %v1910, %v2016
    %v2042 = vsub.f32 %v1911, %v2016
    %v2043 = vsub.f32 %v1912, %v2016
    %v2044 = vsub.f32 %v1913, %v2016
    %v2045 = vsub.f32 %v1914, %v2016
    %v2046 = vsub.f32 %v1915, %v2016
    %v2047 = vsub.f32 %v1916, %v2016
    %v2048 = vsub.f32 %v1917, %v2016
    %v2049 = vsub.f32 %v1918, %v2016
    %v2050 = vsub.f32 %v1919, %v2016
    %v2051 = vsub.f32 %v1920, %v2016
    %v2052 = vsub.f32 %v1921, %v2016
    %v2053 = vsub.f32 %v1922, %v2016
    %v2054 = vsub.f32 %v1923, %v2016
    %v2055 = vsub.f32 %v1924, %v2016
    %v2056 = vmul.f32 %v2018, 1.442695
    %v2057 = vpow.pop %v2056
    %v2058 = vmul.f32 %v2019, 1.442695
    %v2059 = vpow.pop %v2058
    %v2060 = vmul.f32 %v2020, 1.442695
    %v2061 = vpow.pop %v2060
    %v2062 = vmul.f32 %v2021, 1.442695
    %v2063 = vpow.pop %v2062
    %v2064 = vmul.f32 %v2022, 1.442695
    %v2065 = vpow.pop %v2064
    %v2066 = vmul.f32 %v2023, 1.442695
    %v2067 = vpow.pop %v2066
    %v2068 = vmul.f32 %v2024, 1.442695
    %v2069 = vpow.pop %v2068
    %v2070 = vmul.f32 %v2025, 1.442695
    %v2071 = vpow.pop %v2070
    %v2072 = vmul.f32 %v2026, 1.442695
    %v2073 = vpow.pop %v2072
    %v2074 = vmul.f32 %v2027, 1.442695
    %v2075 = vpow.pop %v2074
    %v2076 = vmul.f32 %v2028, 1.442695
    %v2077 = vpow.pop %v2076
    %v2078 = vmul.f32 %v2029, 1.442695
    %v2079 = vpow.pop %v2078
    %v2080 = vmul.f32 %v2030, 1.442695
    %v2081 = vpow.pop %v2080
    %v2082 = vmul.f32 %v2031, 1.442695
    %v2083 = vpow.pop %v2082
    %v2084 = vmul.f32 %v2032, 1.442695
    %v2085 = vpow.pop %v2084
    %v2086 = vmul.f32 %v2033, 1.442695
    %v2087 = vpow.pop %v2086
    %v2088 = vmul.f32 %v2034, 1.442695
    %v2089 = vpow.pop %v2088
    %v2090 = vmul.f32 %v2035, 1.442695
    %v2091 = vpow.pop %v2090
    %v2092 = vmul.f32 %v2036, 1.442695
    %v2093 = vpow.pop %v2092
    %v2094 = vmul.f32 %v2037, 1.442695
    %v2095 = vpow.pop %v2094
    %v2096 = vmul.f32 %v2038, 1.442695
    %v2097 = vpow.pop %v2096
    %v2098 = vmul.f32 %v2039, 1.442695
    %v2099 = vpow.pop %v2098
    %v2100 = vmul.f32 %v2040, 1.442695
    %v2101 = vpow.pop %v2100
    %v2102 = vmul.f32 %v2041, 1.442695
    %v2103 = vpow.pop %v2102
    %v2104 = vmul.f32 %v2042, 1.442695
    %v2105 = vpow.pop %v2104
    %v2106 = vmul.f32 %v2043, 1.442695
    %v2107 = vpow.pop %v2106
    %v2108 = vmul.f32 %v2044, 1.442695
    %v2109 = vpow.pop %v2108
    %v2110 = vmul.f32 %v2045, 1.442695
    %v2111 = vpow.pop %v2110
    %v2112 = vmul.f32 %v2046, 1.442695
    %v2113 = vpow.pop %v2112
    %v2114 = vmul.f32 %v2047, 1.442695
    %v2115 = vpow.pop %v2114
    %v2116 = vmul.f32 %v2048, 1.442695
    %v2117 = vpow.pop %v2116
    %v2118 = vmul.f32 %v2049, 1.442695
    %v2119 = vpow.pop %v2118
    %v2120 = vmul.f32 %v2050, 1.442695
    %v2121 = vpow.pop %v2120
    %v2122 = vmul.f32 %v2051, 1.442695
    %v2123 = vpow.pop %v2122
    %v2124 = vmul.f32 %v2052, 1.442695
    %v2125 = vpow.pop %v2124
    %v2126 = vmul.f32 %v2053, 1.442695
    %v2127 = vpow.pop %v2126
    %v2128 = vmul.f32 %v2054, 1.442695
    %v2129 = vpow.pop %v2128
    %v2130 = vmul.f32 %v2055, 1.442695
    %v2131 = vpow.pop %v2130
    %v2132 = vld [vmem:[#allocation3] sm:$0x1]
    %v2133 = vmul.f32 %v2011, %v2132
    %v2134 = vsel %vm1926, %v2057, 0.0
    %v2135 = vsel %vm1926, %v2059, 0.0
    %v2136 = vadd.f32 %v2134, %v2135
    %v2137 = vsel %vm1926, %v2061, 0.0
    %v2138 = vadd.f32 %v2136, %v2137
    %v2139 = vsel %vm1926, %v2063, 0.0
    %v2140 = vadd.f32 %v2138, %v2139
    %v2141 = vsel %vm1926, %v2065, 0.0
    %v2142 = vadd.f32 %v2140, %v2141
    %v2143 = vsel %vm1926, %v2067, 0.0
    %v2144 = vadd.f32 %v2142, %v2143
    %v2145 = vsel %vm1926, %v2069, 0.0
    %v2146 = vadd.f32 %v2144, %v2145
    %v2147 = vsel %vm1926, %v2071, 0.0
    %v2148 = vadd.f32 %v2146, %v2147
    %v2149 = vsel %vm1926, %v2073, 0.0
    %v2150 = vadd.f32 %v2148, %v2149
    %v2151 = vsel %vm1926, %v2075, 0.0
    %v2152 = vadd.f32 %v2150, %v2151
    %v2153 = vsel %vm1926, %v2077, 0.0
    %v2154 = vadd.f32 %v2152, %v2153
    %v2155 = vsel %vm1926, %v2079, 0.0
    %v2156 = vadd.f32 %v2154, %v2155
    %v2157 = vsel %vm1926, %v2081, 0.0
    %v2158 = vadd.f32 %v2156, %v2157
    %v2159 = vsel %vm1926, %v2083, 0.0
    %v2160 = vadd.f32 %v2158, %v2159
    %v2161 = vsel %vm1926, %v2085, 0.0
    %v2162 = vadd.f32 %v2160, %v2161
    %v2163 = vsel %vm1926, %v2087, 0.0
    %v2164 = vadd.f32 %v2162, %v2163
    %v2165 = vsel %vm1926, %v2089, 0.0
    %v2166 = vadd.f32 %v2164, %v2165
    %v2167 = vsel %vm1926, %v2091, 0.0
    %v2168 = vadd.f32 %v2166, %v2167
    %v2169 = vsel %vm1926, %v2093, 0.0
    %v2170 = vadd.f32 %v2168, %v2169
    %v2171 = vsel %vm1926, %v2095, 0.0
    %v2172 = vadd.f32 %v2170, %v2171
    %v2173 = vsel %vm1926, %v2097, 0.0
    %v2174 = vadd.f32 %v2172, %v2173
    %v2175 = vsel %vm1926, %v2099, 0.0
    %v2176 = vadd.f32 %v2174, %v2175
    %v2177 = vsel %vm1926, %v2101, 0.0
    %v2178 = vadd.f32 %v2176, %v2177
    %v2179 = vsel %vm1926, %v2103, 0.0
    %v2180 = vadd.f32 %v2178, %v2179
    %v2181 = vsel %vm1926, %v2105, 0.0
    %v2182 = vadd.f32 %v2180, %v2181
    %v2183 = vsel %vm1926, %v2107, 0.0
    %v2184 = vadd.f32 %v2182, %v2183
    %v2185 = vsel %vm1926, %v2109, 0.0
    %v2186 = vadd.f32 %v2184, %v2185
    %v2187 = vsel %vm1926, %v2111, 0.0
    %v2188 = vadd.f32 %v2186, %v2187
    %v2189 = vsel %vm1926, %v2113, 0.0
    %v2190 = vadd.f32 %v2188, %v2189
    %v2191 = vsel %vm1926, %v2115, 0.0
    %v2192 = vadd.f32 %v2190, %v2191
    %v2193 = vsel %vm1926, %v2117, 0.0
    %v2194 = vadd.f32 %v2192, %v2193
    %v2195 = vsel %vm1926, %v2119, 0.0
    %v2196 = vadd.f32 %v2194, %v2195
    %v2197 = vsel %vm1926, %v2121, 0.0
    %v2198 = vadd.f32 %v2196, %v2197
    %v2199 = vsel %vm1926, %v2123, 0.0
    %v2200 = vadd.f32 %v2198, %v2199
    %v2201 = vsel %vm1926, %v2125, 0.0
    %v2202 = vadd.f32 %v2200, %v2201
    %v2203 = vsel %vm1926, %v2127, 0.0
    %v2204 = vadd.f32 %v2202, %v2203
    %v2205 = vsel %vm1926, %v2129, 0.0
    %v2206 = vadd.f32 %v2204, %v2205
    %v2207 = vsel %vm1926, %v2131, 0.0
    %v2208 = vadd.f32 %v2206, %v2207
    %v2209 = vrot.slane %v2208, 4
    %v2210 = vadd.f32 %v2208, %v2209
    %v2211 = vrot.slane %v2210, 2
    %v2212 = vadd.f32 %v2210, %v2211
    %v2213 = vrot.slane %v2212, 1
    %v2214 = vadd.f32 %v2212, %v2213
    %v2215 = vadd.f32 %v2133, %v2214
    %vm2216 = vcmask 0
    %2217 = vst.msk [vmem:[#allocation3] sm:$0x1] %vm2216, %v2215
    %2219 = vset.pattern.permute.xlu0 0
    %2220 = vperm.xlu0 %2219, %v2057
    %v2221 = vpop.permute.xlu0 %2220
    %2224 = vset.pattern.permute.xlu0 0
    %2225 = vperm.xlu0 %2224, %v2059
    %v2226 = vpop.permute.xlu0 %2225
    %2229 = vset.pattern.permute.xlu0 0
    %2230 = vperm.xlu0 %2229, %v2061
    %v2231 = vpop.permute.xlu0 %2230
    %2234 = vset.pattern.permute.xlu0 0
    %2235 = vperm.xlu0 %2234, %v2063
    %v2236 = vpop.permute.xlu0 %2235
    %2239 = vset.pattern.permute.xlu0 0
    %2240 = vperm.xlu0 %2239, %v2065
    %v2241 = vpop.permute.xlu0 %2240
    %2244 = vset.pattern.permute.xlu0 0
    %2245 = vperm.xlu0 %2244, %v2067
    %v2246 = vpop.permute.xlu0 %2245
    %2249 = vset.pattern.permute.xlu0 0
    %2250 = vperm.xlu0 %2249, %v2069
    %v2251 = vpop.permute.xlu0 %2250
    %2254 = vset.pattern.permute.xlu0 0
    %2255 = vperm.xlu0 %2254, %v2071
    %v2256 = vpop.permute.xlu0 %2255
    %2259 = vset.pattern.permute.xlu0 0
    %2260 = vperm.xlu0 %2259, %v2073
    %v2261 = vpop.permute.xlu0 %2260
    %2264 = vset.pattern.permute.xlu0 0
    %2265 = vperm.xlu0 %2264, %v2075
    %v2266 = vpop.permute.xlu0 %2265
    %2269 = vset.pattern.permute.xlu0 0
    %2270 = vperm.xlu0 %2269, %v2077
    %v2271 = vpop.permute.xlu0 %2270
    %2274 = vset.pattern.permute.xlu0 0
    %2275 = vperm.xlu0 %2274, %v2079
    %v2276 = vpop.permute.xlu0 %2275
    %2279 = vset.pattern.permute.xlu0 0
    %2280 = vperm.xlu0 %2279, %v2081
    %v2281 = vpop.permute.xlu0 %2280
    %2284 = vset.pattern.permute.xlu0 0
    %2285 = vperm.xlu0 %2284, %v2083
    %v2286 = vpop.permute.xlu0 %2285
    %2289 = vset.pattern.permute.xlu0 0
    %2290 = vperm.xlu0 %2289, %v2085
    %v2291 = vpop.permute.xlu0 %2290
    %2294 = vset.pattern.permute.xlu0 0
    %2295 = vperm.xlu0 %2294, %v2087
    %v2296 = vpop.permute.xlu0 %2295
    %2299 = vset.pattern.permute.xlu0 0
    %2300 = vperm.xlu0 %2299, %v2089
    %v2301 = vpop.permute.xlu0 %2300
    %2304 = vset.pattern.permute.xlu0 0
    %2305 = vperm.xlu0 %2304, %v2091
    %v2306 = vpop.permute.xlu0 %2305
    %2309 = vset.pattern.permute.xlu0 0
    %2310 = vperm.xlu0 %2309, %v2093
    %v2311 = vpop.permute.xlu0 %2310
    %2314 = vset.pattern.permute.xlu0 0
    %2315 = vperm.xlu0 %2314, %v2095
    %v2316 = vpop.permute.xlu0 %2315
    %2319 = vset.pattern.permute.xlu0 0
    %2320 = vperm.xlu0 %2319, %v2097
    %v2321 = vpop.permute.xlu0 %2320
    %2324 = vset.pattern.permute.xlu0 0
    %2325 = vperm.xlu0 %2324, %v2099
    %v2326 = vpop.permute.xlu0 %2325
    %2329 = vset.pattern.permute.xlu0 0
    %2330 = vperm.xlu0 %2329, %v2101
    %v2331 = vpop.permute.xlu0 %2330
    %2334 = vset.pattern.permute.xlu0 0
    %2335 = vperm.xlu0 %2334, %v2103
    %v2336 = vpop.permute.xlu0 %2335
    %2339 = vset.pattern.permute.xlu0 0
    %2340 = vperm.xlu0 %2339, %v2105
    %v2341 = vpop.permute.xlu0 %2340
    %2344 = vset.pattern.permute.xlu0 0
    %2345 = vperm.xlu0 %2344, %v2107
    %v2346 = vpop.permute.xlu0 %2345
    %2349 = vset.pattern.permute.xlu0 0
    %2350 = vperm.xlu0 %2349, %v2109
    %v2351 = vpop.permute.xlu0 %2350
    %2354 = vset.pattern.permute.xlu0 0
    %2355 = vperm.xlu0 %2354, %v2111
    %v2356 = vpop.permute.xlu0 %2355
    %2359 = vset.pattern.permute.xlu0 0
    %2360 = vperm.xlu0 %2359, %v2113
    %v2361 = vpop.permute.xlu0 %2360
    %2364 = vset.pattern.permute.xlu0 0
    %2365 = vperm.xlu0 %2364, %v2115
    %v2366 = vpop.permute.xlu0 %2365
    %2369 = vset.pattern.permute.xlu0 0
    %2370 = vperm.xlu0 %2369, %v2117
    %v2371 = vpop.permute.xlu0 %2370
    %2374 = vset.pattern.permute.xlu0 0
    %2375 = vperm.xlu0 %2374, %v2119
    %v2376 = vpop.permute.xlu0 %2375
    %2379 = vset.pattern.permute.xlu0 0
    %2380 = vperm.xlu0 %2379, %v2121
    %v2381 = vpop.permute.xlu0 %2380
    %2384 = vset.pattern.permute.xlu0 0
    %2385 = vperm.xlu0 %2384, %v2123
    %v2386 = vpop.permute.xlu0 %2385
    %2389 = vset.pattern.permute.xlu0 0
    %2390 = vperm.xlu0 %2389, %v2125
    %v2391 = vpop.permute.xlu0 %2390
    %2394 = vset.pattern.permute.xlu0 0
    %2395 = vperm.xlu0 %2394, %v2127
    %v2396 = vpop.permute.xlu0 %2395
    %2399 = vset.pattern.permute.xlu0 0
    %2400 = vperm.xlu0 %2399, %v2129
    %v2401 = vpop.permute.xlu0 %2400
    %2404 = vset.pattern.permute.xlu0 0
    %2405 = vperm.xlu0 %2404, %v2131
    %v2406 = vpop.permute.xlu0 %2405
    %v2408 = vmul.f32 %v2221, %v1735
    %v2409 = vmul.f32 %v2221, %v1736
    %v2410 = vmul.f32 %v2221, %v1737
    %v2411 = vmul.f32 %v2221, %v1738
    %v2412 = vmul.f32 %v2226, %v1739
    %v2413 = vmul.f32 %v2226, %v1740
    %v2414 = vmul.f32 %v2226, %v1741
    %v2415 = vmul.f32 %v2226, %v1742
    %v2416 = vmul.f32 %v2231, %v1743
    %v2417 = vmul.f32 %v2231, %v1744
    %v2418 = vmul.f32 %v2231, %v1745
    %v2419 = vmul.f32 %v2231, %v1746
    %v2420 = vmul.f32 %v2236, %v1747
    %v2421 = vmul.f32 %v2236, %v1748
    %v2422 = vmul.f32 %v2236, %v1749
    %v2423 = vmul.f32 %v2236, %v1750
    %v2424 = vmul.f32 %v2241, %v1751
    %v2425 = vmul.f32 %v2241, %v1752
    %v2426 = vmul.f32 %v2241, %v1753
    %v2427 = vmul.f32 %v2241, %v1754
    %v2428 = vmul.f32 %v2246, %v1755
    %v2429 = vmul.f32 %v2246, %v1756
    %v2430 = vmul.f32 %v2246, %v1757
    %v2431 = vmul.f32 %v2246, %v1758
    %v2432 = vmul.f32 %v2251, %v1759
    %v2433 = vmul.f32 %v2251, %v1760
    %v2434 = vmul.f32 %v2251, %v1761
    %v2435 = vmul.f32 %v2251, %v1762
    %v2436 = vmul.f32 %v2256, %v1763
    %v2437 = vmul.f32 %v2256, %v1764
    %v2438 = vmul.f32 %v2256, %v1765
    %v2439 = vmul.f32 %v2256, %v1766
    %v2440 = vmul.f32 %v2261, %v1767
    %v2441 = vmul.f32 %v2261, %v1768
    %v2442 = vmul.f32 %v2261, %v1769
    %v2443 = vmul.f32 %v2261, %v1770
    %v2444 = vmul.f32 %v2266, %v1771
    %v2445 = vmul.f32 %v2266, %v1772
    %v2446 = vmul.f32 %v2266, %v1773
    %v2447 = vmul.f32 %v2266, %v1774
    %v2448 = vmul.f32 %v2271, %v1775
    %v2449 = vmul.f32 %v2271, %v1776
    %v2450 = vmul.f32 %v2271, %v1777
    %v2451 = vmul.f32 %v2271, %v1778
    %v2452 = vmul.f32 %v2276, %v1779
    %v2453 = vmul.f32 %v2276, %v1780
    %v2454 = vmul.f32 %v2276, %v1781
    %v2455 = vmul.f32 %v2276, %v1782
    %v2456 = vmul.f32 %v2281, %v1783
    %v2457 = vmul.f32 %v2281, %v1784
    %v2458 = vmul.f32 %v2281, %v1785
    %v2459 = vmul.f32 %v2281, %v1786
    %v2460 = vmul.f32 %v2286, %v1787
    %v2461 = vmul.f32 %v2286, %v1788
    %v2462 = vmul.f32 %v2286, %v1789
    %v2463 = vmul.f32 %v2286, %v1790
    %v2464 = vmul.f32 %v2291, %v1791
    %v2465 = vmul.f32 %v2291, %v1792
    %v2466 = vmul.f32 %v2291, %v1793
    %v2467 = vmul.f32 %v2291, %v1794
    %v2468 = vmul.f32 %v2296, %v1795
    %v2469 = vmul.f32 %v2296, %v1796
    %v2470 = vmul.f32 %v2296, %v1797
    %v2471 = vmul.f32 %v2296, %v1798
    %v2472 = vmul.f32 %v2301, %v1799
    %v2473 = vmul.f32 %v2301, %v1800
    %v2474 = vmul.f32 %v2301, %v1801
    %v2475 = vmul.f32 %v2301, %v1802
    %v2476 = vmul.f32 %v2306, %v1803
    %v2477 = vmul.f32 %v2306, %v1804
    %v2478 = vmul.f32 %v2306, %v1805
    %v2479 = vmul.f32 %v2306, %v1806
    %v2480 = vmul.f32 %v2311, %v1807
    %v2481 = vmul.f32 %v2311, %v1808
    %v2482 = vmul.f32 %v2311, %v1809
    %v2483 = vmul.f32 %v2311, %v1810
    %v2484 = vmul.f32 %v2316, %v1811
    %v2485 = vmul.f32 %v2316, %v1812
    %v2486 = vmul.f32 %v2316, %v1813
    %v2487 = vmul.f32 %v2316, %v1814
    %v2488 = vmul.f32 %v2321, %v1815
    %v2489 = vmul.f32 %v2321, %v1816
    %v2490 = vmul.f32 %v2321, %v1817
    %v2491 = vmul.f32 %v2321, %v1818
    %v2492 = vmul.f32 %v2326, %v1819
    %v2493 = vmul.f32 %v2326, %v1820
    %v2494 = vmul.f32 %v2326, %v1821
    %v2495 = vmul.f32 %v2326, %v1822
    %v2496 = vmul.f32 %v2331, %v1823
    %v2497 = vmul.f32 %v2331, %v1824
    %v2498 = vmul.f32 %v2331, %v1825
    %v2499 = vmul.f32 %v2331, %v1826
    %v2500 = vmul.f32 %v2336, %v1827
    %v2501 = vmul.f32 %v2336, %v1828
    %v2502 = vmul.f32 %v2336, %v1829
    %v2503 = vmul.f32 %v2336, %v1830
    %v2504 = vmul.f32 %v2341, %v1831
    %v2505 = vmul.f32 %v2341, %v1832
    %v2506 = vmul.f32 %v2341, %v1833
    %v2507 = vmul.f32 %v2341, %v1834
    %v2508 = vmul.f32 %v2346, %v1835
    %v2509 = vmul.f32 %v2346, %v1836
    %v2510 = vmul.f32 %v2346, %v1837
    %v2511 = vmul.f32 %v2346, %v1838
    %v2512 = vmul.f32 %v2351, %v1839
    %v2513 = vmul.f32 %v2351, %v1840
    %v2514 = vmul.f32 %v2351, %v1841
    %v2515 = vmul.f32 %v2351, %v1842
    %v2516 = vmul.f32 %v2356, %v1843
    %v2517 = vmul.f32 %v2356, %v1844
    %v2518 = vmul.f32 %v2356, %v1845
    %v2519 = vmul.f32 %v2356, %v1846
    %v2520 = vmul.f32 %v2361, %v1847
    %v2521 = vmul.f32 %v2361, %v1848
    %v2522 = vmul.f32 %v2361, %v1849
    %v2523 = vmul.f32 %v2361, %v1850
    %v2524 = vmul.f32 %v2366, %v1851
    %v2525 = vmul.f32 %v2366, %v1852
    %v2526 = vmul.f32 %v2366, %v1853
    %v2527 = vmul.f32 %v2366, %v1854
    %v2528 = vmul.f32 %v2371, %v1855
    %v2529 = vmul.f32 %v2371, %v1856
    %v2530 = vmul.f32 %v2371, %v1857
    %v2531 = vmul.f32 %v2371, %v1858
    %v2532 = vmul.f32 %v2376, %v1859
    %v2533 = vmul.f32 %v2376, %v1860
    %v2534 = vmul.f32 %v2376, %v1861
    %v2535 = vmul.f32 %v2376, %v1862
    %v2536 = vmul.f32 %v2381, %v1863
    %v2537 = vmul.f32 %v2381, %v1864
    %v2538 = vmul.f32 %v2381, %v1865
    %v2539 = vmul.f32 %v2381, %v1866
    %v2540 = vmul.f32 %v2386, %v1867
    %v2541 = vmul.f32 %v2386, %v1868
    %v2542 = vmul.f32 %v2386, %v1869
    %v2543 = vmul.f32 %v2386, %v1870
    %v2544 = vmul.f32 %v2391, %v1871
    %v2545 = vmul.f32 %v2391, %v1872
    %v2546 = vmul.f32 %v2391, %v1873
    %v2547 = vmul.f32 %v2391, %v1874
    %v2548 = vmul.f32 %v2396, %v1875
    %v2549 = vmul.f32 %v2396, %v1876
    %v2550 = vmul.f32 %v2396, %v1877
    %v2551 = vmul.f32 %v2396, %v1878
    %v2552 = vmul.f32 %v2401, %v1879
    %v2553 = vmul.f32 %v2401, %v1880
    %v2554 = vmul.f32 %v2401, %v1881
    %v2555 = vmul.f32 %v2401, %v1882
    %v2556 = vmul.f32 %v2406, %v1883
    %v2557 = vmul.f32 %v2406, %v1884
    %v2558 = vmul.f32 %v2406, %v1885
    %v2559 = vmul.f32 %v2406, %v1886
    %v2560 = vadd.f32 %v2408, %v2412
    %v2561 = vadd.f32 %v2560, %v2416
    %v2562 = vadd.f32 %v2561, %v2420
    %v2563 = vadd.f32 %v2562, %v2424
    %v2564 = vadd.f32 %v2563, %v2428
    %v2565 = vadd.f32 %v2564, %v2432
    %v2566 = vadd.f32 %v2565, %v2436
    %v2567 = vadd.f32 %v2566, %v2440
    %v2568 = vadd.f32 %v2567, %v2444
    %v2569 = vadd.f32 %v2568, %v2448
    %v2570 = vadd.f32 %v2569, %v2452
    %v2571 = vadd.f32 %v2570, %v2456
    %v2572 = vadd.f32 %v2571, %v2460
    %v2573 = vadd.f32 %v2572, %v2464
    %v2574 = vadd.f32 %v2573, %v2468
    %v2575 = vadd.f32 %v2574, %v2472
    %v2576 = vadd.f32 %v2575, %v2476
    %v2577 = vadd.f32 %v2576, %v2480
    %v2578 = vadd.f32 %v2577, %v2484
    %v2579 = vadd.f32 %v2578, %v2488
    %v2580 = vadd.f32 %v2579, %v2492
    %v2581 = vadd.f32 %v2580, %v2496
    %v2582 = vadd.f32 %v2581, %v2500
    %v2583 = vadd.f32 %v2582, %v2504
    %v2584 = vadd.f32 %v2583, %v2508
    %v2585 = vadd.f32 %v2584, %v2512
    %v2586 = vadd.f32 %v2585, %v2516
    %v2587 = vadd.f32 %v2586, %v2520
    %v2588 = vadd.f32 %v2587, %v2524
    %v2589 = vadd.f32 %v2588, %v2528
    %v2590 = vadd.f32 %v2589, %v2532
    %v2591 = vadd.f32 %v2590, %v2536
    %v2592 = vadd.f32 %v2591, %v2540
    %v2593 = vadd.f32 %v2592, %v2544
    %v2594 = vadd.f32 %v2593, %v2548
    %v2595 = vadd.f32 %v2594, %v2552
    %v2596 = vadd.f32 %v2595, %v2556
    %v2597 = vrot.slane %v2596, 4
    %v2598 = vadd.f32 %v2596, %v2597
    %v2599 = vrot.slane %v2598, 2
    %v2600 = vadd.f32 %v2598, %v2599
    %v2601 = vrot.slane %v2600, 1
    %v2602 = vadd.f32 %v2600, %v2601
    %v2603 = vadd.f32 %v2409, %v2413
    %v2604 = vadd.f32 %v2603, %v2417
    %v2605 = vadd.f32 %v2604, %v2421
    %v2606 = vadd.f32 %v2605, %v2425
    %v2607 = vadd.f32 %v2606, %v2429
    %v2608 = vadd.f32 %v2607, %v2433
    %v2609 = vadd.f32 %v2608, %v2437
    %v2610 = vadd.f32 %v2609, %v2441
    %v2611 = vadd.f32 %v2610, %v2445
    %v2612 = vadd.f32 %v2611, %v2449
    %v2613 = vadd.f32 %v2612, %v2453
    %v2614 = vadd.f32 %v2613, %v2457
    %v2615 = vadd.f32 %v2614, %v2461
    %v2616 = vadd.f32 %v2615, %v2465
    %v2617 = vadd.f32 %v2616, %v2469
    %v2618 = vadd.f32 %v2617, %v2473
    %v2619 = vadd.f32 %v2618, %v2477
    %v2620 = vadd.f32 %v2619, %v2481
    %v2621 = vadd.f32 %v2620, %v2485
    %v2622 = vadd.f32 %v2621, %v2489
    %v2623 = vadd.f32 %v2622, %v2493
    %v2624 = vadd.f32 %v2623, %v2497
    %v2625 = vadd.f32 %v2624, %v2501
    %v2626 = vadd.f32 %v2625, %v2505
    %v2627 = vadd.f32 %v2626, %v2509
    %v2628 = vadd.f32 %v2627, %v2513
    %v2629 = vadd.f32 %v2628, %v2517
    %v2630 = vadd.f32 %v2629, %v2521
    %v2631 = vadd.f32 %v2630, %v2525
    %v2632 = vadd.f32 %v2631, %v2529
    %v2633 = vadd.f32 %v2632, %v2533
    %v2634 = vadd.f32 %v2633, %v2537
    %v2635 = vadd.f32 %v2634, %v2541
    %v2636 = vadd.f32 %v2635, %v2545
    %v2637 = vadd.f32 %v2636, %v2549
    %v2638 = vadd.f32 %v2637, %v2553
    %v2639 = vadd.f32 %v2638, %v2557
    %v2640 = vrot.slane %v2639, 4
    %v2641 = vadd.f32 %v2639, %v2640
    %v2642 = vrot.slane %v2641, 2
    %v2643 = vadd.f32 %v2641, %v2642
    %v2644 = vrot.slane %v2643, 1
    %v2645 = vadd.f32 %v2643, %v2644
    %v2646 = vadd.f32 %v2410, %v2414
    %v2647 = vadd.f32 %v2646, %v2418
    %v2648 = vadd.f32 %v2647, %v2422
    %v2649 = vadd.f32 %v2648, %v2426
    %v2650 = vadd.f32 %v2649, %v2430
    %v2651 = vadd.f32 %v2650, %v2434
    %v2652 = vadd.f32 %v2651, %v2438
    %v2653 = vadd.f32 %v2652, %v2442
    %v2654 = vadd.f32 %v2653, %v2446
    %v2655 = vadd.f32 %v2654, %v2450
    %v2656 = vadd.f32 %v2655, %v2454
    %v2657 = vadd.f32 %v2656, %v2458
    %v2658 = vadd.f32 %v2657, %v2462
    %v2659 = vadd.f32 %v2658, %v2466
    %v2660 = vadd.f32 %v2659, %v2470
    %v2661 = vadd.f32 %v2660, %v2474
    %v2662 = vadd.f32 %v2661, %v2478
    %v2663 = vadd.f32 %v2662, %v2482
    %v2664 = vadd.f32 %v2663, %v2486
    %v2665 = vadd.f32 %v2664, %v2490
    %v2666 = vadd.f32 %v2665, %v2494
    %v2667 = vadd.f32 %v2666, %v2498
    %v2668 = vadd.f32 %v2667, %v2502
    %v2669 = vadd.f32 %v2668, %v2506
    %v2670 = vadd.f32 %v2669, %v2510
    %v2671 = vadd.f32 %v2670, %v2514
    %v2672 = vadd.f32 %v2671, %v2518
    %v2673 = vadd.f32 %v2672, %v2522
    %v2674 = vadd.f32 %v2673, %v2526
    %v2675 = vadd.f32 %v2674, %v2530
    %v2676 = vadd.f32 %v2675, %v2534
    %v2677 = vadd.f32 %v2676, %v2538
    %v2678 = vadd.f32 %v2677, %v2542
    %v2679 = vadd.f32 %v2678, %v2546
    %v2680 = vadd.f32 %v2679, %v2550
    %v2681 = vadd.f32 %v2680, %v2554
    %v2682 = vadd.f32 %v2681, %v2558
    %v2683 = vrot.slane %v2682, 4
    %v2684 = vadd.f32 %v2682, %v2683
    %v2685 = vrot.slane %v2684, 2
    %v2686 = vadd.f32 %v2684, %v2685
    %v2687 = vrot.slane %v2686, 1
    %v2688 = vadd.f32 %v2686, %v2687
    %v2689 = vadd.f32 %v2411, %v2415
    %v2690 = vadd.f32 %v2689, %v2419
    %v2691 = vadd.f32 %v2690, %v2423
    %v2692 = vadd.f32 %v2691, %v2427
    %v2693 = vadd.f32 %v2692, %v2431
    %v2694 = vadd.f32 %v2693, %v2435
    %v2695 = vadd.f32 %v2694, %v2439
    %v2696 = vadd.f32 %v2695, %v2443
    %v2697 = vadd.f32 %v2696, %v2447
    %v2698 = vadd.f32 %v2697, %v2451
    %v2699 = vadd.f32 %v2698, %v2455
    %v2700 = vadd.f32 %v2699, %v2459
    %v2701 = vadd.f32 %v2700, %v2463
    %v2702 = vadd.f32 %v2701, %v2467
    %v2703 = vadd.f32 %v2702, %v2471
    %v2704 = vadd.f32 %v2703, %v2475
    %v2705 = vadd.f32 %v2704, %v2479
    %v2706 = vadd.f32 %v2705, %v2483
    %v2707 = vadd.f32 %v2706, %v2487
    %v2708 = vadd.f32 %v2707, %v2491
    %v2709 = vadd.f32 %v2708, %v2495
    %v2710 = vadd.f32 %v2709, %v2499
    %v2711 = vadd.f32 %v2710, %v2503
    %v2712 = vadd.f32 %v2711, %v2507
    %v2713 = vadd.f32 %v2712, %v2511
    %v2714 = vadd.f32 %v2713, %v2515
    %v2715 = vadd.f32 %v2714, %v2519
    %v2716 = vadd.f32 %v2715, %v2523
    %v2717 = vadd.f32 %v2716, %v2527
    %v2718 = vadd.f32 %v2717, %v2531
    %v2719 = vadd.f32 %v2718, %v2535
    %v2720 = vadd.f32 %v2719, %v2539
    %v2721 = vadd.f32 %v2720, %v2543
    %v2722 = vadd.f32 %v2721, %v2547
    %v2723 = vadd.f32 %v2722, %v2551
    %v2724 = vadd.f32 %v2723, %v2555
    %v2725 = vadd.f32 %v2724, %v2559
    %v2726 = vrot.slane %v2725, 4
    %v2727 = vadd.f32 %v2725, %v2726
    %v2728 = vrot.slane %v2727, 2
    %v2729 = vadd.f32 %v2727, %v2728
    %v2730 = vrot.slane %v2729, 1
    %v2731 = vadd.f32 %v2729, %v2730
    %v2732 = vld [vmem:[#allocation4] sm:$0xf]
    %2734 = vset.pattern.permute.xlu0 0
    %2735 = vperm.xlu0 %2734, %v2011
    %v2736 = vpop.permute.xlu0 %2735
    %v2738 = vlaneseq
    %v2739 = vshrl.u32 %v2738, 7
    %v2740 = vsub.s32 0, %v2739
    %v2741 = vrot.slane %v2736, %v2740
    %v2742 = vmul.f32 %v2741, %v2732
    %v2747 = vcombine.low %v2602, %v2645
    %v2748 = vcombine.low %v2688, %v2731
    %v2750 = vunpack.c.l.s4 1966171168
    %v2751 = vunpack.c.0.s8 %v2750
    %v2752 = vlaneseq
    %v2753 = vshrl.u32 %v2752, 7
    %v2754 = vsub.s32 %v2751, %v2753
    %v2755 = vrot.slane %v2747, %v2754
    %v2757 = vunpack.c.l.s4 1966171168
    %v2758 = vunpack.c.0.s8 %v2757
    %v2759 = vlaneseq
    %v2760 = vshrl.u32 %v2759, 7
    %v2761 = vsub.s32 %v2758, %v2760
    %v2762 = vrot.slane %v2748, %v2761
    %v2763 = vcombine.low %v2755, %v2762
    %v2765 = vunpack.c.l.s4 1966171168
    %v2766 = vunpack.c.0.s8 %v2765
    %v2767 = vlaneseq
    %v2768 = vshrl.u32 %v2767, 7
    %v2769 = vsub.s32 %v2766, %v2768
    %v2770 = vrot.slane %v2763, %v2769
    %v2772 = vadd.f32 %v2742, %v2770
    %v2773 = vlaneseq
    %vm2774 = vcmp.ge.s32.totalorder %v2773, 0
    %vm2775 = vcmp.lt.s32.totalorder %v2773, 512
    %vm2776 = vmand %vm2774, %vm2775
    %2777 = vst.msk [vmem:[#allocation4] sm:$0xf] %vm2776, %v2772
    %2778 = vst.msk [vmem:[#allocation2] sm:$0x1] %vm2216, %v2008
    // Predicated region
    $region34: #{attention_with_classifier_batched.1} parent=1 // pred_check
      %p2779 = pneg %p30
    $region35: #{attention_with_classifier_batched.1} parent=1 // pred_check_branch
      %2781 = sbr.rel (%p2779) target = $region37
    $region36: #{attention_with_classifier_batched.1} parent=1 // pred_region
      %v2782 = vld [vmem:[#allocation4] sm:$0xf]
      %v2783 = vld [vmem:[#allocation3] sm:$0x1]
      %2785 = vset.pattern.permute.xlu0 0
      %2786 = vperm.xlu0 %2785, %v2783
      %v2787 = vpop.permute.xlu0 %2786
      %v2789 = vlaneseq
      %v2790 = vshrl.u32 %v2789, 7
      %v2791 = vsub.s32 0, %v2790
      %v2792 = vrot.slane %v2787, %v2791
      %v2793 = vrcp.pop %v2792
      %v2794 = vmul.f32 %v2782, %v2793
      %v2796 = vlaneseq
      %v2797 = vshrl.u32 %v2796, 7
      %v2798 = vsub.s32 0, %v2797
      %v2799 = vrot.slane %v2794, %v2798
      %v2800 = vlaneseq
      %v2801 = vshrl.u32 %v2800, 7
      %v2802 = vsub.s32 1, %v2801
      %v2803 = vrot.slane %v2794, %v2802
      %v2804 = vlaneseq
      %v2805 = vshrl.u32 %v2804, 7
      %v2806 = vsub.s32 2, %v2805
      %v2807 = vrot.slane %v2794, %v2806
      %v2808 = vlaneseq
      %v2809 = vshrl.u32 %v2808, 7
      %v2810 = vsub.s32 3, %v2809
      %v2811 = vrot.slane %v2794, %v2810
      %v2816 = vpack.c.bf16 %v2799, %v2799
      %v2817 = vpack.c.bf16 %v2803, %v2803
      %v2818 = vpack.c.bf16 %v2807, %v2807
      %v2819 = vpack.c.bf16 %v2811, %v2811
      %v2820 = vld [vmem:[%s5] sm:$0xf]
      %v2821 = vld [vmem:[%s5 + $0x4] sm:$0xf]
      %v2822 = vld [vmem:[%s5 + $0x8] sm:$0xf]
      %v2823 = vld [vmem:[%s5 + $0xc] sm:$0xf]
      %v2824 = vld [vmem:[%s5 + $0x10] sm:$0xf]
      %v2825 = vld [vmem:[%s5 + $0x14] sm:$0xf]
      %v2826 = vld [vmem:[%s5 + $0x18] sm:$0xf]
      %v2827 = vld [vmem:[%s5 + $0x1c] sm:$0xf]
      %v2828 = vld [vmem:[%s5 + $0x20] sm:$0xf]
      %v2829 = vld [vmem:[%s5 + $0x24] sm:$0xf]
      %v2830 = vld [vmem:[%s5 + $0x28] sm:$0xf]
      %v2831 = vld [vmem:[%s5 + $0x2c] sm:$0xf]
      %v2832 = vld [vmem:[%s5 + $0x30] sm:$0xf]
      %v2833 = vld [vmem:[%s5 + $0x34] sm:$0xf]
      %v2834 = vld [vmem:[%s5 + $0x38] sm:$0xf]
      %v2835 = vld [vmem:[%s5 + $0x3c] sm:$0xf]
      %v2836 = vld [vmem:[%s5 + $0x40] sm:$0xf]
      %v2837 = vld [vmem:[%s5 + $0x44] sm:$0xf]
      %v2838 = vld [vmem:[%s5 + $0x48] sm:$0xf]
      %v2839 = vld [vmem:[%s5 + $0x4c] sm:$0xf]
      %v2840 = vld [vmem:[%s5 + $0x50] sm:$0xf]
      %v2841 = vld [vmem:[%s5 + $0x54] sm:$0xf]
      %v2842 = vld [vmem:[%s5 + $0x58] sm:$0xf]
      %v2843 = vld [vmem:[%s5 + $0x5c] sm:$0xf]
      %v2844 = vld [vmem:[%s5 + $0x60] sm:$0xf]
      %v2845 = vld [vmem:[%s5 + $0x64] sm:$0xf]
      %v2846 = vld [vmem:[%s5 + $0x68] sm:$0xf]
      %v2847 = vld [vmem:[%s5 + $0x6c] sm:$0xf]
      %v2848 = vld [vmem:[%s5 + $0x70] sm:$0xf]
      %v2849 = vld [vmem:[%s5 + $0x74] sm:$0xf]
      %v2850 = vld [vmem:[%s5 + $0x78] sm:$0xf]
      %v2851 = vld [vmem:[%s5 + $0x7c] sm:$0xf]
      %v2852 = vld [vmem:[%s5 + $0x80] sm:$0xf]
      %v2853 = vld [vmem:[%s5 + $0x84] sm:$0xf]
      %v2854 = vld [vmem:[%s5 + $0x88] sm:$0xf]
      %v2855 = vld [vmem:[%s5 + $0x8c] sm:$0xf]
      %v2856 = vld [vmem:[%s5 + $0x90] sm:$0xf]
      %v2857 = vld [vmem:[%s5 + $0x94] sm:$0xf]
      %v2858 = vld [vmem:[%s5 + $0x98] sm:$0xf]
      %v2859 = vld [vmem:[%s5 + $0x9c] sm:$0xf]
      %v2860 = vld [vmem:[%s5 + $0xa0] sm:$0xf]
      %v2861 = vld [vmem:[%s5 + $0xa4] sm:$0xf]
      %v2862 = vld [vmem:[%s5 + $0xa8] sm:$0xf]
      %v2863 = vld [vmem:[%s5 + $0xac] sm:$0xf]
      %v2864 = vld [vmem:[%s5 + $0xb0] sm:$0xf]
      %v2865 = vld [vmem:[%s5 + $0xb4] sm:$0xf]
      %v2866 = vld [vmem:[%s5 + $0xb8] sm:$0xf]
      %v2867 = vld [vmem:[%s5 + $0xbc] sm:$0xf]
      %v2868 = vld [vmem:[%s5 + $0xc0] sm:$0xf]
      %v2869 = vld [vmem:[%s5 + $0xc4] sm:$0xf]
      %v2870 = vld [vmem:[%s5 + $0xc8] sm:$0xf]
      %v2871 = vld [vmem:[%s5 + $0xcc] sm:$0xf]
      %v2872 = vld [vmem:[%s5 + $0xd0] sm:$0xf]
      %v2873 = vld [vmem:[%s5 + $0xd4] sm:$0xf]
      %v2874 = vld [vmem:[%s5 + $0xd8] sm:$0xf]
      %v2875 = vld [vmem:[%s5 + $0xdc] sm:$0xf]
      %v2876 = vld [vmem:[%s5 + $0xe0] sm:$0xf]
      %v2877 = vld [vmem:[%s5 + $0xe4] sm:$0xf]
      %v2878 = vld [vmem:[%s5 + $0xe8] sm:$0xf]
      %v2879 = vld [vmem:[%s5 + $0xec] sm:$0xf]
      %v2880 = vld [vmem:[%s5 + $0xf0] sm:$0xf]
      %v2881 = vld [vmem:[%s5 + $0xf4] sm:$0xf]
      %v2882 = vld [vmem:[%s5 + $0xf8] sm:$0xf]
      %v2883 = vld [vmem:[%s5 + $0xfc] sm:$0xf]
      %v2884 = vld [vmem:[%s6] sm:$0x1]
      %v2949 = vunpack.c.l.b16 %v2820
      %v2950 = vunpack.c.l.b16 %v2821
      %v2951 = vunpack.c.l.b16 %v2822
      %v2952 = vunpack.c.l.b16 %v2823
      %v2953 = vunpack.c.l.b16 %v2824
      %v2954 = vunpack.c.l.b16 %v2825
      %v2955 = vunpack.c.l.b16 %v2826
      %v2956 = vunpack.c.l.b16 %v2827
      %v2957 = vunpack.c.l.b16 %v2828
      %v2958 = vunpack.c.l.b16 %v2829
      %v2959 = vunpack.c.l.b16 %v2830
      %v2960 = vunpack.c.l.b16 %v2831
      %v2961 = vunpack.c.l.b16 %v2832
      %v2962 = vunpack.c.l.b16 %v2833
      %v2963 = vunpack.c.l.b16 %v2834
      %v2964 = vunpack.c.l.b16 %v2835
      %v2965 = vunpack.c.l.b16 %v2836
      %v2966 = vunpack.c.l.b16 %v2837
      %v2967 = vunpack.c.l.b16 %v2838
      %v2968 = vunpack.c.l.b16 %v2839
      %v2969 = vunpack.c.l.b16 %v2840
      %v2970 = vunpack.c.l.b16 %v2841
      %v2971 = vunpack.c.l.b16 %v2842
      %v2972 = vunpack.c.l.b16 %v2843
      %v2973 = vunpack.c.l.b16 %v2844
      %v2974 = vunpack.c.l.b16 %v2845
      %v2975 = vunpack.c.l.b16 %v2846
      %v2976 = vunpack.c.l.b16 %v2847
      %v2977 = vunpack.c.l.b16 %v2848
      %v2978 = vunpack.c.l.b16 %v2849
      %v2979 = vunpack.c.l.b16 %v2850
      %v2980 = vunpack.c.l.b16 %v2851
      %v2981 = vunpack.c.l.b16 %v2852
      %v2982 = vunpack.c.l.b16 %v2853
      %v2983 = vunpack.c.l.b16 %v2854
      %v2984 = vunpack.c.l.b16 %v2855
      %v2985 = vunpack.c.l.b16 %v2856
      %v2986 = vunpack.c.l.b16 %v2857
      %v2987 = vunpack.c.l.b16 %v2858
      %v2988 = vunpack.c.l.b16 %v2859
      %v2989 = vunpack.c.l.b16 %v2860
      %v2990 = vunpack.c.l.b16 %v2861
      %v2991 = vunpack.c.l.b16 %v2862
      %v2992 = vunpack.c.l.b16 %v2863
      %v2993 = vunpack.c.l.b16 %v2864
      %v2994 = vunpack.c.l.b16 %v2865
      %v2995 = vunpack.c.l.b16 %v2866
      %v2996 = vunpack.c.l.b16 %v2867
      %v2997 = vunpack.c.l.b16 %v2868
      %v2998 = vunpack.c.l.b16 %v2869
      %v2999 = vunpack.c.l.b16 %v2870
      %v3000 = vunpack.c.l.b16 %v2871
      %v3001 = vunpack.c.l.b16 %v2872
      %v3002 = vunpack.c.l.b16 %v2873
      %v3003 = vunpack.c.l.b16 %v2874
      %v3004 = vunpack.c.l.b16 %v2875
      %v3005 = vunpack.c.l.b16 %v2876
      %v3006 = vunpack.c.l.b16 %v2877
      %v3007 = vunpack.c.l.b16 %v2878
      %v3008 = vunpack.c.l.b16 %v2879
      %v3009 = vunpack.c.l.b16 %v2880
      %v3010 = vunpack.c.l.b16 %v2881
      %v3011 = vunpack.c.l.b16 %v2882
      %v3012 = vunpack.c.l.b16 %v2883
      %v3013 = vpack.c.b16 %v2950, %v2949
      %v3014 = vpack.c.b16 %v2952, %v2951
      %v3015 = vpack.c.b16 %v2954, %v2953
      %v3016 = vpack.c.b16 %v2956, %v2955
      %v3017 = vpack.c.b16 %v2958, %v2957
      %v3018 = vpack.c.b16 %v2960, %v2959
      %v3019 = vpack.c.b16 %v2962, %v2961
      %v3020 = vpack.c.b16 %v2964, %v2963
      %v3021 = vpack.c.b16 %v2966, %v2965
      %v3022 = vpack.c.b16 %v2968, %v2967
      %v3023 = vpack.c.b16 %v2970, %v2969
      %v3024 = vpack.c.b16 %v2972, %v2971
      %v3025 = vpack.c.b16 %v2974, %v2973
      %v3026 = vpack.c.b16 %v2976, %v2975
      %v3027 = vpack.c.b16 %v2978, %v2977
      %v3028 = vpack.c.b16 %v2980, %v2979
      %v3029 = vpack.c.b16 %v2982, %v2981
      %v3030 = vpack.c.b16 %v2984, %v2983
      %v3031 = vpack.c.b16 %v2986, %v2985
      %v3032 = vpack.c.b16 %v2988, %v2987
      %v3033 = vpack.c.b16 %v2990, %v2989
      %v3034 = vpack.c.b16 %v2992, %v2991
      %v3035 = vpack.c.b16 %v2994, %v2993
      %v3036 = vpack.c.b16 %v2996, %v2995
      %v3037 = vpack.c.b16 %v2998, %v2997
      %v3038 = vpack.c.b16 %v3000, %v2999
      %v3039 = vpack.c.b16 %v3002, %v3001
      %v3040 = vpack.c.b16 %v3004, %v3003
      %v3041 = vpack.c.b16 %v3006, %v3005
      %v3042 = vpack.c.b16 %v3008, %v3007
      %v3043 = vpack.c.b16 %v3010, %v3009
      %v3044 = vpack.c.b16 %v3012, %v3011
      %3077 = vmatprep.subr.bf16.mxu0 0
      %3078 = vmatpush1.bf16.msra.mxu0 %v3020
      %3079 = vmatprep.subr.bf16.mxu0 0
      %3080 = vmatpush1.bf16.msra.mxu0 %v3019
      %3081 = vmatprep.subr.bf16.mxu0 0
      %3082 = vmatpush1.bf16.msra.mxu0 %v3018
      %3083 = vmatprep.subr.bf16.mxu0 0
      %3084 = vmatpush1.bf16.msra.mxu0 %v3017
      %3085 = vmatprep.subr.bf16.mxu0 0
      %3086 = vmatpush1.bf16.msra.mxu0 %v3016
      %3087 = vmatprep.subr.bf16.mxu0 0
      %3088 = vmatpush1.bf16.msra.mxu0 %v3015
      %3089 = vmatprep.subr.bf16.mxu0 0
      %3090 = vmatpush1.bf16.msra.mxu0 %v3014
      %3091 = vmatprep.subr.bf16.mxu0 0
      %3092 = vmatpush1.bf16.msra.mxu0 %v3013
      %3093 = vmatprep.subr.bf16.mxu0 0
      %3094 = vmatpush2.bf16.msra.mxu0 %v3028
      %3095 = vmatprep.subr.bf16.mxu0 0
      %3096 = vmatpush2.bf16.msra.mxu0 %v3027
      %3097 = vmatprep.subr.bf16.mxu0 0
      %3098 = vmatpush2.bf16.msra.mxu0 %v3026
      %3099 = vmatprep.subr.bf16.mxu0 0
      %3100 = vmatpush2.bf16.msra.mxu0 %v3025
      %3101 = vmatprep.subr.bf16.mxu0 0
      %3102 = vmatpush2.bf16.msra.mxu0 %v3024
      %3103 = vmatprep.subr.bf16.mxu0 0
      %3104 = vmatpush2.bf16.msra.mxu0 %v3023
      %3105 = vmatprep.subr.bf16.mxu0 0
      %3106 = vmatpush2.bf16.msra.mxu0 %v3022
      %3107 = vmatprep.subr.bf16.mxu0 0
      %3108 = vmatpush2.bf16.msra.mxu0 %v3021
      %3109 = vmatprep.mubr.bf16.mxu0 %v2817
      %3110 = vmatmul.mubr.bf16.gmra.mxu0 %v2816
      %v3111 = vpop.f32.mrf.mxu0
      %v3112 = vadd.f32 %v2884, %v3111
      %v3113 = vpop.f32.mrf.mxu0
      %v3114 = vpop.f32.mrf.mxu0
      %v3115 = vpop.f32.mrf.mxu0
      %3116 = vdwg.mxu0
      %3117 = vmatprep.subr.bf16.mxu0 0
      %3118 = vmatpush1.bf16.msra.mxu0 %v3036
      %3119 = vmatprep.subr.bf16.mxu0 0
      %3120 = vmatpush1.bf16.msra.mxu0 %v3035
      %3121 = vmatprep.subr.bf16.mxu0 0
      %3122 = vmatpush1.bf16.msra.mxu0 %v3034
      %3123 = vmatprep.subr.bf16.mxu0 0
      %3124 = vmatpush1.bf16.msra.mxu0 %v3033
      %3125 = vmatprep.subr.bf16.mxu0 0
      %3126 = vmatpush1.bf16.msra.mxu0 %v3032
      %3127 = vmatprep.subr.bf16.mxu0 0
      %3128 = vmatpush1.bf16.msra.mxu0 %v3031
      %3129 = vmatprep.subr.bf16.mxu0 0
      %3130 = vmatpush1.bf16.msra.mxu0 %v3030
      %3131 = vmatprep.subr.bf16.mxu0 0
      %3132 = vmatpush1.bf16.msra.mxu0 %v3029
      %3133 = vmatprep.subr.bf16.mxu0 0
      %3134 = vmatpush2.bf16.msra.mxu0 %v3044
      %3135 = vmatprep.subr.bf16.mxu0 0
      %3136 = vmatpush2.bf16.msra.mxu0 %v3043
      %3137 = vmatprep.subr.bf16.mxu0 0
      %3138 = vmatpush2.bf16.msra.mxu0 %v3042
      %3139 = vmatprep.subr.bf16.mxu0 0
      %3140 = vmatpush2.bf16.msra.mxu0 %v3041
      %3141 = vmatprep.subr.bf16.mxu0 0
      %3142 = vmatpush2.bf16.msra.mxu0 %v3040
      %3143 = vmatprep.subr.bf16.mxu0 0
      %3144 = vmatpush2.bf16.msra.mxu0 %v3039
      %3145 = vmatprep.subr.bf16.mxu0 0
      %3146 = vmatpush2.bf16.msra.mxu0 %v3038
      %3147 = vmatprep.subr.bf16.mxu0 0
      %3148 = vmatpush2.bf16.msra.mxu0 %v3037
      %3149 = vmatprep.mubr.bf16.mxu0 %v2819
      %3150 = vmatmul.mubr.bf16.gmra.mxu0 %v2818
      %v3151 = vpop.f32.mrf.mxu0
      %v3152 = vadd.f32 %v3112, %v3151
      %v3153 = vpop.f32.mrf.mxu0
      %v3154 = vpop.f32.mrf.mxu0
      %v3155 = vpop.f32.mrf.mxu0
      %3156 = vdwg.mxu0
      %3157 = vst [vmem:[#allocation6] sm:$0x1] %v3152
    $region37: #{attention_with_classifier_batched.1} parent=1 // pred_fallthru
      _
    // Predicated region
    $region38: #{attention_with_classifier_batched.1} parent=1 // pred_check
      _
    $region39: #{attention_with_classifier_batched.1} parent=1 // pred_check_branch
      %3159 = sbr.rel (0) target = $region41
    $region40: #{attention_with_classifier_batched.1} parent=1 // pred_region
      %s3161 = ssub.s32 16, 16
      %3162 = vsyncadd [#allocation7], %s3161
      %s3164 = sshll.u32 [#allocation6], 4
      %s3165 = int_to_ptr.vmem [resolvable:$true] %s3164
      %3167 = dma.vmem_to_hbm [thread:$0]  %s3165, 16, %s7, [#allocation7]
    $region41: #{attention_with_classifier_batched.1} parent=1 // pred_fallthru
      _
    // Predicated region
    $region42: #{attention_with_classifier_batched.1} parent=1 // pred_check
      _
    $region43: #{attention_with_classifier_batched.1} parent=1 // pred_check_branch
      %3169 = sbr.rel (0) target = $region45
    $region44: #{attention_with_classifier_batched.1} parent=1 // pred_region
      %3170 = dma.done [#allocation7], 16
    $region45: #{attention_with_classifier_batched.1} parent=1 // pred_fallthru
      _
    %3171 = vsyncpa [#allocation7], 1

</llo_original>
